<compile_context>
chip_gen: v6e
topology: v6e:2x2x1
jax: 0.10.0
libtpu: 0.0.40
codegen_flags: <defaults>
</compile_context>

<pallas_src>
import jax
import jax.numpy as jnp
from jax import lax
from jax.experimental import pallas as pl
from jax.experimental.pallas import tpu as pltpu


XOFF = 8  # sublane-aligned left padding of the W axis inside the VMEM feature scratch


# ----------------------------- fused Pallas kernel --------------------------

def _make_rdb_kernel(H, W, G0, G, C):
    """Build the fused RDB kernel for static (H, W, G0, G, C)."""
    CT = G0 + C * G

    def kernel(*refs):
        # refs = (x, w0, b0, ..., w_{C-1}, b_{C-1}, w_lff, b_lff, o, feat_scratch)
        x_ref = refs[0]
        conv_refs = refs[1:1 + 2 * C]
        w_lff_ref = refs[1 + 2 * C]
        b_lff_ref = refs[2 + 2 * C]
        o_ref = refs[3 + 2 * C]
        feat_ref = refs[4 + 2 * C]

        # Zero the scratch each step (cheap VMEM write); the untouched spatial border
        # is the conv zero padding.  Re-zeroing per step keeps each grid iteration
        # independent, which is required for the "parallel" (megacore) grid axis.
        feat_ref[...] = jnp.zeros_like(feat_ref)

        # Input occupies channels [0, G0) of the interior (rows 1..H, cols XOFF..XOFF+W).
        feat_ref[1:1 + H, XOFF:XOFF + W, 0:G0] = x_ref[0]

        # C x (3x3 conv + ReLU); each layer = one im2col matmul.  The output is appended
        # to the next channel slice of the resident feature map (== torch.cat((x, out), 1)).
        for c in range(C):
            Cin = G0 + c * G
            w_ref = conv_refs[2 * c]       # (9*Cin, G)  pre-packed
            b_ref = conv_refs[2 * c + 1]   # (1, G)
            feat = feat_ref[...]           # features stay resident in VMEM
            cols = []
            for ky in range(3):
                for kx in range(3):
                    win = feat[ky:ky + H,
                               XOFF - 1 + kx:XOFF - 1 + kx + W,
                               0:Cin]
                    cols.append(win.reshape(H * W, Cin))
            patch = jnp.concatenate(cols, axis=-1)            # (H*W, 9*Cin)
            out = jnp.dot(patch, w_ref[...],
                          preferred_element_type=jnp.float32)  # single MXU push
            out = jnp.maximum(out + b_ref[0], 0.0)
            feat_ref[1:1 + H, XOFF:XOFF + W,
                     G0 + c * G:G0 + (c + 1) * G] = out.reshape(H, W, G)

        # LFF 1x1 conv over all CT channels + residual add, fused in the same kernel.
        feat = feat_ref[...]
        full = feat[1:1 + H, XOFF:XOFF + W, :].reshape(H * W, CT)
        y = jnp.dot(full, w_lff_ref[...],
                    preferred_element_type=jnp.float32) + b_lff_ref[0]
        y = y + x_ref[0].reshape(H * W, G0)                    # residual
        o_ref[0] = y.reshape(H, W, G0)

    return kernel


# ----------------------------- wrapper ---------------------------------------

def rdb_forward(x_nchw, packed):
    """Fused RDB forward. x_nchw: (N, G0, H, W) float32. `packed` = pack_rdb_params(...)."""
    conv_ws = packed["conv_w"]
    conv_bs = packed["conv_b"]
    w_lff = packed["lff_w"]
    b_lff = packed["lff_b"]

    N, G0, H, W = x_nchw.shape
    C = len(conv_ws)
    G = conv_ws[0].shape[1]
    CT = G0 + C * G

    x_nhwc = jnp.transpose(x_nchw, (0, 2, 3, 1))  # channels-last for the kernel

    in_specs = [pl.BlockSpec((1, H, W, G0), lambda n: (n, 0, 0, 0))]
    operands = [x_nhwc]
    for c in range(C):
        wc, bc = conv_ws[c], conv_bs[c]
        in_specs.append(pl.BlockSpec(tuple(wc.shape), lambda n: (0, 0)))
        in_specs.append(pl.BlockSpec(tuple(bc.shape), lambda n: (0, 0)))
        operands += [wc, bc]
    in_specs.append(pl.BlockSpec(tuple(w_lff.shape), lambda n: (0, 0)))
    in_specs.append(pl.BlockSpec(tuple(b_lff.shape), lambda n: (0, 0)))
    operands += [w_lff, b_lff]

    y_nhwc = pl.pallas_call(
        _make_rdb_kernel(H, W, G0, G, C),
        out_shape=jax.ShapeDtypeStruct((N, H, W, G0), jnp.float32),
        grid_spec=pltpu.PrefetchScalarGridSpec(
            num_scalar_prefetch=0,
            grid=(N,),
            in_specs=in_specs,
            out_specs=pl.BlockSpec((1, H, W, G0), lambda n: (n, 0, 0, 0)),
            scratch_shapes=[pltpu.VMEM((H + 2, W + 2 * XOFF, CT), jnp.float32)],
        ),
        compiler_params=pltpu.CompilerParams(
            dimension_semantics=("parallel",)),  # v7x: 2 TCs each take a batch item
    )(*operands)

    return jnp.transpose(y_nhwc, (0, 3, 1, 2))  # back to NCHW


# ----------------------------- parameters ------------------------------------

def init_rdb_params(key, G0, G, C, kSize=3):
    """Parameters in the torch layout (Cout, Cin, kH, kW); used by the reference."""
    params = {"convs": [], "lff": None}
    for c in range(C):
        Cin = G0 + c * G
        key, kw, kb = jax.random.split(key, 3)
        w = jax.random.normal(kw, (G, Cin, kSize, kSize), jnp.float32) * 0.05
        b = jax.random.normal(kb, (G,), jnp.float32) * 0.05
        params["convs"].append((w, b))
    key, kw, kb = jax.random.split(key, 3)
    Cin = G0 + C * G
    w = jax.random.normal(kw, (G0, Cin, 1, 1), jnp.float32) * 0.05
    b = jax.random.normal(kb, (G0,), jnp.float32) * 0.05
    params["lff"] = (w, b)
    return params


def pack_rdb_params(params):
    """One-time weight re-layout to exactly what the kernel's MXU matmuls want
    (hoisted out of the forward path)."""
    packed = {"conv_w": [], "conv_b": []}
    for (w, b) in params["convs"]:
        Cout, Cin, kH, kW = w.shape
        # torch (Cout, Cin, kH, kW) -> (kH, kW, Cin, Cout) -> (kH*kW*Cin, Cout)
        wk = jnp.transpose(w, (2, 3, 1, 0)).reshape(kH * kW * Cin, Cout)
        packed["conv_w"].append(wk)
        packed["conv_b"].append(b.reshape(1, Cout))
    w_lff, b_lff = params["lff"]
    G0, CT = w_lff.shape[0], w_lff.shape[1]
    packed["lff_w"] = jnp.transpose(w_lff, (2, 3, 1, 0)).reshape(CT, G0)
    packed["lff_b"] = b_lff.reshape(1, G0)
    return packed


# ----------------------------- reference (plain JAX) -------------------------

def _ref_conv2d_nchw(x, w, b, pad):
    y = lax.conv_general_dilated(
        x, w, window_strides=(1, 1), padding=((pad, pad), (pad, pad)),
        dimension_numbers=("NCHW", "OIHW", "NCHW"))
    return y + b.reshape(1, -1, 1, 1)


def rdb_reference(x_nchw, params):
    feat = x_nchw
    for (w, b) in params["convs"]:
        out = jnp.maximum(_ref_conv2d_nchw(feat, w, b, pad=1), 0.0)
        feat = jnp.concatenate([feat, out], axis=1)
    w_lff, b_lff = params["lff"]
    return _ref_conv2d_nchw(feat, w_lff, b_lff, pad=0) + x_nchw


# ----------------------------- main -------------------------------------------

if __name__ == "__main__":
    # RDB(growRate0=8, growRate=8, nConvLayers=3), input (N=2, G0=8, H=16, W=16)
    G0, G, C = 8, 8, 3
    N, H, W = 2, 16, 16

    key = jax.random.PRNGKey(0)
    key, kx = jax.random.split(key)
    x = jax.random.normal(kx, (N, G0, H, W), jnp.float32)

    params = init_rdb_params(key, G0, G, C)
    packed = pack_rdb_params(params)  # one-time weight re-layout (not in the fwd path)

    fwd = jax.jit(rdb_forward)
    y = jax.block_until_ready(fwd(x, packed))

    y_ref = rdb_reference(x, params)
    assert y.shape == x.shape
    assert jnp.allclose(y, y_ref, atol=1e-4, rtol=1e-4), "mismatch vs reference"

    print("KERNEL_OK")
</pallas_src>

<mosaic_0001>
module attributes {stable_mosaic.version = 11 : i64} {
  func.func @kernel(%arg0: i32, %arg1: memref<1x16x16x8xf32, #tpu.memory_space<vmem>>, %arg2: memref<72x8xf32, #tpu.memory_space<vmem>>, %arg3: memref<1x8xf32, #tpu.memory_space<vmem>>, %arg4: memref<144x8xf32, #tpu.memory_space<vmem>>, %arg5: memref<1x8xf32, #tpu.memory_space<vmem>>, %arg6: memref<216x8xf32, #tpu.memory_space<vmem>>, %arg7: memref<1x8xf32, #tpu.memory_space<vmem>>, %arg8: memref<32x8xf32, #tpu.memory_space<vmem>>, %arg9: memref<1x8xf32, #tpu.memory_space<vmem>>, %arg10: memref<1x16x16x8xf32, #tpu.memory_space<vmem>>, %arg11: memref<18x32x32xf32, #tpu.memory_space<vmem>>) attributes {dimension_semantics = [#tpu.dimension_semantics<parallel>], iteration_bounds = array<i64: 2>, scalar_prefetch = 0 : i64, scratch_operands = 1 : i64, tpu.core_type = #tpu.core_type<tc>, window_params = [{transform_indices = @transform_0, window_bounds = array<i64: 1, 16, 16, 8>}, {pipeline_mode = #tpu.pipeline_mode<synchronous>, transform_indices = @transform_1, window_bounds = array<i64: 72, 8>}, {pipeline_mode = #tpu.pipeline_mode<synchronous>, transform_indices = @transform_2, window_bounds = array<i64: 1, 8>}, {pipeline_mode = #tpu.pipeline_mode<synchronous>, transform_indices = @transform_3, window_bounds = array<i64: 144, 8>}, {pipeline_mode = #tpu.pipeline_mode<synchronous>, transform_indices = @transform_4, window_bounds = array<i64: 1, 8>}, {pipeline_mode = #tpu.pipeline_mode<synchronous>, transform_indices = @transform_5, window_bounds = array<i64: 216, 8>}, {pipeline_mode = #tpu.pipeline_mode<synchronous>, transform_indices = @transform_6, window_bounds = array<i64: 1, 8>}, {pipeline_mode = #tpu.pipeline_mode<synchronous>, transform_indices = @transform_7, window_bounds = array<i64: 32, 8>}, {pipeline_mode = #tpu.pipeline_mode<synchronous>, transform_indices = @transform_8, window_bounds = array<i64: 1, 8>}, {transform_indices = @transform_9, window_bounds = array<i64: 1, 16, 16, 8>}]} {
    %cst = arith.constant 0.000000e+00 : f32
    %0 = vector.broadcast %cst : f32 to vector<18x32x32xf32>
    %c0 = arith.constant 0 : index
    %c0_0 = arith.constant 0 : index
    %c0_1 = arith.constant 0 : index
    %1 = vector.load %arg11[%c0, %c0_0, %c0_1] : memref<18x32x32xf32, #tpu.memory_space<vmem>>, vector<18x32x32xf32>
    tpu.vector_store %arg11[%c0, %c0_0, %c0_1], %0 {strides = array<i32>} : memref<18x32x32xf32, #tpu.memory_space<vmem>>, vector<18x32x32xf32>,
    %c0_2 = arith.constant 0 : index
    %c0_3 = arith.constant 0 : index
    %c0_4 = arith.constant 0 : index
    %c0_5 = arith.constant 0 : index
    %2 = vector.load %arg1[%c0_2, %c0_3, %c0_4, %c0_5] : memref<1x16x16x8xf32, #tpu.memory_space<vmem>>, vector<1x16x16x8xf32>
    %3 = vector.shape_cast %2 : vector<1x16x16x8xf32> to vector<16x16x8xf32>
    %c1 = arith.constant 1 : index
    %c8 = arith.constant 8 : index
    %c0_6 = arith.constant 0 : index
    %4 = vector.load %arg11[%c1, %c8, %c0_6] : memref<18x32x32xf32, #tpu.memory_space<vmem>>, vector<16x16x8xf32>
    tpu.vector_store %arg11[%c1, %c8, %c0_6], %3 {strides = array<i32>} : memref<18x32x32xf32, #tpu.memory_space<vmem>>, vector<16x16x8xf32>,
    %c0_7 = arith.constant 0 : index
    %c0_8 = arith.constant 0 : index
    %c0_9 = arith.constant 0 : index
    %5 = vector.load %arg11[%c0_7, %c0_8, %c0_9] : memref<18x32x32xf32, #tpu.memory_space<vmem>>, vector<18x32x32xf32>
    %6 = vector.extract_strided_slice %5 {offsets = [0, 7, 0], sizes = [16, 16, 8], strides = [1, 1, 1]} : vector<18x32x32xf32> to vector<16x16x8xf32>
    %7 = vector.shape_cast %6 : vector<16x16x8xf32> to vector<256x8xf32>
    %8 = vector.extract_strided_slice %5 {offsets = [0, 8, 0], sizes = [16, 16, 8], strides = [1, 1, 1]} : vector<18x32x32xf32> to vector<16x16x8xf32>
    %9 = vector.shape_cast %8 : vector<16x16x8xf32> to vector<256x8xf32>
    %10 = vector.extract_strided_slice %5 {offsets = [0, 9, 0], sizes = [16, 16, 8], strides = [1, 1, 1]} : vector<18x32x32xf32> to vector<16x16x8xf32>
    %11 = vector.shape_cast %10 : vector<16x16x8xf32> to vector<256x8xf32>
    %12 = vector.extract_strided_slice %5 {offsets = [1, 7, 0], sizes = [16, 16, 8], strides = [1, 1, 1]} : vector<18x32x32xf32> to vector<16x16x8xf32>
    %13 = vector.shape_cast %12 : vector<16x16x8xf32> to vector<256x8xf32>
    %14 = vector.extract_strided_slice %5 {offsets = [1, 8, 0], sizes = [16, 16, 8], strides = [1, 1, 1]} : vector<18x32x32xf32> to vector<16x16x8xf32>
    %15 = vector.shape_cast %14 : vector<16x16x8xf32> to vector<256x8xf32>
    %16 = vector.extract_strided_slice %5 {offsets = [1, 9, 0], sizes = [16, 16, 8], strides = [1, 1, 1]} : vector<18x32x32xf32> to vector<16x16x8xf32>
    %17 = vector.shape_cast %16 : vector<16x16x8xf32> to vector<256x8xf32>
    %18 = vector.extract_strided_slice %5 {offsets = [2, 7, 0], sizes = [16, 16, 8], strides = [1, 1, 1]} : vector<18x32x32xf32> to vector<16x16x8xf32>
    %19 = vector.shape_cast %18 : vector<16x16x8xf32> to vector<256x8xf32>
    %20 = vector.extract_strided_slice %5 {offsets = [2, 8, 0], sizes = [16, 16, 8], strides = [1, 1, 1]} : vector<18x32x32xf32> to vector<16x16x8xf32>
    %21 = vector.shape_cast %20 : vector<16x16x8xf32> to vector<256x8xf32>
    %22 = vector.extract_strided_slice %5 {offsets = [2, 9, 0], sizes = [16, 16, 8], strides = [1, 1, 1]} : vector<18x32x32xf32> to vector<16x16x8xf32>
    %23 = vector.shape_cast %22 : vector<16x16x8xf32> to vector<256x8xf32>
    %24 = tpu.concatenate %7, %9, %11, %13, %15, %17, %19, %21, %23 in 1 : vector<256x8xf32>, vector<256x8xf32>, vector<256x8xf32>, vector<256x8xf32>, vector<256x8xf32>, vector<256x8xf32>, vector<256x8xf32>, vector<256x8xf32>, vector<256x8xf32> -> vector<256x72xf32>
    %c0_10 = arith.constant 0 : index
    %c0_11 = arith.constant 0 : index
    %25 = vector.load %arg2[%c0_10, %c0_11] : memref<72x8xf32, #tpu.memory_space<vmem>>, vector<72x8xf32>
    %cst_12 = arith.constant dense<0.000000e+00> : vector<256x8xf32>
    %26 = tpu.matmul %24, %25, %cst_12 {dimension_numbers = #tpu.dot_dimension_numbers<[1], [0], [0], [1], [0, 0, 1, 1], [], []>} : vector<256x72xf32>, vector<72x8xf32>, vector<256x8xf32> -> vector<256x8xf32>
    %c0_13 = arith.constant 0 : index
    %c0_14 = arith.constant 0 : index
    %27 = vector.load %arg3[%c0_13, %c0_14] : memref<1x8xf32, #tpu.memory_space<vmem>>, vector<1x8xf32>
    %28 = vector.shape_cast %27 : vector<1x8xf32> to vector<8xf32>
    %29 = vector.shape_cast %28 : vector<8xf32> to vector<1x8xf32>
    %30 = vector.broadcast %29 : vector<1x8xf32> to vector<256x8xf32>
    %31 = arith.addf %26, %30 : vector<256x8xf32>
    %cst_15 = arith.constant 0.000000e+00 : f32
    %32 = vector.broadcast %cst_15 : f32 to vector<256x8xf32>
    %33 = arith.maximumf %31, %32 : vector<256x8xf32>
    %34 = vector.shape_cast %33 : vector<256x8xf32> to vector<16x16x8xf32>
    %c1_16 = arith.constant 1 : index
    %c8_17 = arith.constant 8 : index
    %c8_18 = arith.constant 8 : index
    %35 = vector.load %arg11[%c1_16, %c8_17, %c8_18] : memref<18x32x32xf32, #tpu.memory_space<vmem>>, vector<16x16x8xf32>
    tpu.vector_store %arg11[%c1_16, %c8_17, %c8_18], %34 {strides = array<i32>} : memref<18x32x32xf32, #tpu.memory_space<vmem>>, vector<16x16x8xf32>,
    %c0_19 = arith.constant 0 : index
    %c0_20 = arith.constant 0 : index
    %c0_21 = arith.constant 0 : index
    %36 = vector.load %arg11[%c0_19, %c0_20, %c0_21] : memref<18x32x32xf32, #tpu.memory_space<vmem>>, vector<18x32x32xf32>
    %37 = vector.extract_strided_slice %36 {offsets = [0, 7, 0], sizes = [16, 16, 16], strides = [1, 1, 1]} : vector<18x32x32xf32> to vector<16x16x16xf32>
    %38 = vector.shape_cast %37 : vector<16x16x16xf32> to vector<256x16xf32>
    %39 = vector.extract_strided_slice %36 {offsets = [0, 8, 0], sizes = [16, 16, 16], strides = [1, 1, 1]} : vector<18x32x32xf32> to vector<16x16x16xf32>
    %40 = vector.shape_cast %39 : vector<16x16x16xf32> to vector<256x16xf32>
    %41 = vector.extract_strided_slice %36 {offsets = [0, 9, 0], sizes = [16, 16, 16], strides = [1, 1, 1]} : vector<18x32x32xf32> to vector<16x16x16xf32>
    %42 = vector.shape_cast %41 : vector<16x16x16xf32> to vector<256x16xf32>
    %43 = vector.extract_strided_slice %36 {offsets = [1, 7, 0], sizes = [16, 16, 16], strides = [1, 1, 1]} : vector<18x32x32xf32> to vector<16x16x16xf32>
    %44 = vector.shape_cast %43 : vector<16x16x16xf32> to vector<256x16xf32>
    %45 = vector.extract_strided_slice %36 {offsets = [1, 8, 0], sizes = [16, 16, 16], strides = [1, 1, 1]} : vector<18x32x32xf32> to vector<16x16x16xf32>
    %46 = vector.shape_cast %45 : vector<16x16x16xf32> to vector<256x16xf32>
    %47 = vector.extract_strided_slice %36 {offsets = [1, 9, 0], sizes = [16, 16, 16], strides = [1, 1, 1]} : vector<18x32x32xf32> to vector<16x16x16xf32>
    %48 = vector.shape_cast %47 : vector<16x16x16xf32> to vector<256x16xf32>
    %49 = vector.extract_strided_slice %36 {offsets = [2, 7, 0], sizes = [16, 16, 16], strides = [1, 1, 1]} : vector<18x32x32xf32> to vector<16x16x16xf32>
    %50 = vector.shape_cast %49 : vector<16x16x16xf32> to vector<256x16xf32>
    %51 = vector.extract_strided_slice %36 {offsets = [2, 8, 0], sizes = [16, 16, 16], strides = [1, 1, 1]} : vector<18x32x32xf32> to vector<16x16x16xf32>
    %52 = vector.shape_cast %51 : vector<16x16x16xf32> to vector<256x16xf32>
    %53 = vector.extract_strided_slice %36 {offsets = [2, 9, 0], sizes = [16, 16, 16], strides = [1, 1, 1]} : vector<18x32x32xf32> to vector<16x16x16xf32>
    %54 = vector.shape_cast %53 : vector<16x16x16xf32> to vector<256x16xf32>
    %55 = tpu.concatenate %38, %40, %42, %44, %46, %48, %50, %52, %54 in 1 : vector<256x16xf32>, vector<256x16xf32>, vector<256x16xf32>, vector<256x16xf32>, vector<256x16xf32>, vector<256x16xf32>, vector<256x16xf32>, vector<256x16xf32>, vector<256x16xf32> -> vector<256x144xf32>
    %c0_22 = arith.constant 0 : index
    %c0_23 = arith.constant 0 : index
    %56 = vector.load %arg4[%c0_22, %c0_23] : memref<144x8xf32, #tpu.memory_space<vmem>>, vector<144x8xf32>
    %cst_24 = arith.constant dense<0.000000e+00> : vector<256x8xf32>
    %57 = tpu.matmul %55, %56, %cst_24 {dimension_numbers = #tpu.dot_dimension_numbers<[1], [0], [0], [1], [0, 0, 1, 1], [], []>} : vector<256x144xf32>, vector<144x8xf32>, vector<256x8xf32> -> vector<256x8xf32>
    %c0_25 = arith.constant 0 : index
    %c0_26 = arith.constant 0 : index
    %58 = vector.load %arg5[%c0_25, %c0_26] : memref<1x8xf32, #tpu.memory_space<vmem>>, vector<1x8xf32>
    %59 = vector.shape_cast %58 : vector<1x8xf32> to vector<8xf32>
    %60 = vector.shape_cast %59 : vector<8xf32> to vector<1x8xf32>
    %61 = vector.broadcast %60 : vector<1x8xf32> to vector<256x8xf32>
    %62 = arith.addf %57, %61 : vector<256x8xf32>
    %cst_27 = arith.constant 0.000000e+00 : f32
    %63 = vector.broadcast %cst_27 : f32 to vector<256x8xf32>
    %64 = arith.maximumf %62, %63 : vector<256x8xf32>
    %65 = vector.shape_cast %64 : vector<256x8xf32> to vector<16x16x8xf32>
    %c1_28 = arith.constant 1 : index
    %c8_29 = arith.constant 8 : index
    %c16 = arith.constant 16 : index
    %66 = vector.load %arg11[%c1_28, %c8_29, %c16] : memref<18x32x32xf32, #tpu.memory_space<vmem>>, vector<16x16x8xf32>
    tpu.vector_store %arg11[%c1_28, %c8_29, %c16], %65 {strides = array<i32>} : memref<18x32x32xf32, #tpu.memory_space<vmem>>, vector<16x16x8xf32>,
    %c0_30 = arith.constant 0 : index
    %c0_31 = arith.constant 0 : index
    %c0_32 = arith.constant 0 : index
    %67 = vector.load %arg11[%c0_30, %c0_31, %c0_32] : memref<18x32x32xf32, #tpu.memory_space<vmem>>, vector<18x32x32xf32>
    %68 = vector.extract_strided_slice %67 {offsets = [0, 7, 0], sizes = [16, 16, 24], strides = [1, 1, 1]} : vector<18x32x32xf32> to vector<16x16x24xf32>
    %69 = vector.shape_cast %68 : vector<16x16x24xf32> to vector<256x24xf32>
    %70 = vector.extract_strided_slice %67 {offsets = [0, 8, 0], sizes = [16, 16, 24], strides = [1, 1, 1]} : vector<18x32x32xf32> to vector<16x16x24xf32>
    %71 = vector.shape_cast %70 : vector<16x16x24xf32> to vector<256x24xf32>
    %72 = vector.extract_strided_slice %67 {offsets = [0, 9, 0], sizes = [16, 16, 24], strides = [1, 1, 1]} : vector<18x32x32xf32> to vector<16x16x24xf32>
    %73 = vector.shape_cast %72 : vector<16x16x24xf32> to vector<256x24xf32>
    %74 = vector.extract_strided_slice %67 {offsets = [1, 7, 0], sizes = [16, 16, 24], strides = [1, 1, 1]} : vector<18x32x32xf32> to vector<16x16x24xf32>
    %75 = vector.shape_cast %74 : vector<16x16x24xf32> to vector<256x24xf32>
    %76 = vector.extract_strided_slice %67 {offsets = [1, 8, 0], sizes = [16, 16, 24], strides = [1, 1, 1]} : vector<18x32x32xf32> to vector<16x16x24xf32>
    %77 = vector.shape_cast %76 : vector<16x16x24xf32> to vector<256x24xf32>
    %78 = vector.extract_strided_slice %67 {offsets = [1, 9, 0], sizes = [16, 16, 24], strides = [1, 1, 1]} : vector<18x32x32xf32> to vector<16x16x24xf32>
    %79 = vector.shape_cast %78 : vector<16x16x24xf32> to vector<256x24xf32>
    %80 = vector.extract_strided_slice %67 {offsets = [2, 7, 0], sizes = [16, 16, 24], strides = [1, 1, 1]} : vector<18x32x32xf32> to vector<16x16x24xf32>
    %81 = vector.shape_cast %80 : vector<16x16x24xf32> to vector<256x24xf32>
    %82 = vector.extract_strided_slice %67 {offsets = [2, 8, 0], sizes = [16, 16, 24], strides = [1, 1, 1]} : vector<18x32x32xf32> to vector<16x16x24xf32>
    %83 = vector.shape_cast %82 : vector<16x16x24xf32> to vector<256x24xf32>
    %84 = vector.extract_strided_slice %67 {offsets = [2, 9, 0], sizes = [16, 16, 24], strides = [1, 1, 1]} : vector<18x32x32xf32> to vector<16x16x24xf32>
    %85 = vector.shape_cast %84 : vector<16x16x24xf32> to vector<256x24xf32>
    %86 = tpu.concatenate %69, %71, %73, %75, %77, %79, %81, %83, %85 in 1 : vector<256x24xf32>, vector<256x24xf32>, vector<256x24xf32>, vector<256x24xf32>, vector<256x24xf32>, vector<256x24xf32>, vector<256x24xf32>, vector<256x24xf32>, vector<256x24xf32> -> vector<256x216xf32>
    %c0_33 = arith.constant 0 : index
    %c0_34 = arith.constant 0 : index
    %87 = vector.load %arg6[%c0_33, %c0_34] : memref<216x8xf32, #tpu.memory_space<vmem>>, vector<216x8xf32>
    %cst_35 = arith.constant dense<0.000000e+00> : vector<256x8xf32>
    %88 = tpu.matmul %86, %87, %cst_35 {dimension_numbers = #tpu.dot_dimension_numbers<[1], [0], [0], [1], [0, 0, 1, 1], [], []>} : vector<256x216xf32>, vector<216x8xf32>, vector<256x8xf32> -> vector<256x8xf32>
    %c0_36 = arith.constant 0 : index
    %c0_37 = arith.constant 0 : index
    %89 = vector.load %arg7[%c0_36, %c0_37] : memref<1x8xf32, #tpu.memory_space<vmem>>, vector<1x8xf32>
    %90 = vector.shape_cast %89 : vector<1x8xf32> to vector<8xf32>
    %91 = vector.shape_cast %90 : vector<8xf32> to vector<1x8xf32>
    %92 = vector.broadcast %91 : vector<1x8xf32> to vector<256x8xf32>
    %93 = arith.addf %88, %92 : vector<256x8xf32>
    %cst_38 = arith.constant 0.000000e+00 : f32
    %94 = vector.broadcast %cst_38 : f32 to vector<256x8xf32>
    %95 = arith.maximumf %93, %94 : vector<256x8xf32>
    %96 = vector.shape_cast %95 : vector<256x8xf32> to vector<16x16x8xf32>
    %c1_39 = arith.constant 1 : index
    %c8_40 = arith.constant 8 : index
    %c24 = arith.constant 24 : index
    %97 = vector.load %arg11[%c1_39, %c8_40, %c24] : memref<18x32x32xf32, #tpu.memory_space<vmem>>, vector<16x16x8xf32>
    tpu.vector_store %arg11[%c1_39, %c8_40, %c24], %96 {strides = array<i32>} : memref<18x32x32xf32, #tpu.memory_space<vmem>>, vector<16x16x8xf32>,
    %c0_41 = arith.constant 0 : index
    %c0_42 = arith.constant 0 : index
    %c0_43 = arith.constant 0 : index
    %98 = vector.load %arg11[%c0_41, %c0_42, %c0_43] : memref<18x32x32xf32, #tpu.memory_space<vmem>>, vector<18x32x32xf32>
    %99 = vector.extract_strided_slice %98 {offsets = [1, 8, 0], sizes = [16, 16, 32], strides = [1, 1, 1]} : vector<18x32x32xf32> to vector<16x16x32xf32>
    %100 = vector.shape_cast %99 : vector<16x16x32xf32> to vector<256x32xf32>
    %c0_44 = arith.constant 0 : index
    %c0_45 = arith.constant 0 : index
    %101 = vector.load %arg8[%c0_44, %c0_45] : memref<32x8xf32, #tpu.memory_space<vmem>>, vector<32x8xf32>
    %cst_46 = arith.constant dense<0.000000e+00> : vector<256x8xf32>
    %102 = tpu.matmul %100, %101, %cst_46 {dimension_numbers = #tpu.dot_dimension_numbers<[1], [0], [0], [1], [0, 0, 1, 1], [], []>} : vector<256x32xf32>, vector<32x8xf32>, vector<256x8xf32> -> vector<256x8xf32>
    %c0_47 = arith.constant 0 : index
    %c0_48 = arith.constant 0 : index
    %103 = vector.load %arg9[%c0_47, %c0_48] : memref<1x8xf32, #tpu.memory_space<vmem>>, vector<1x8xf32>
    %104 = vector.shape_cast %103 : vector<1x8xf32> to vector<8xf32>
    %105 = vector.shape_cast %104 : vector<8xf32> to vector<1x8xf32>
    %106 = vector.broadcast %105 : vector<1x8xf32> to vector<256x8xf32>
    %107 = arith.addf %102, %106 : vector<256x8xf32>
    %c0_49 = arith.constant 0 : index
    %c0_50 = arith.constant 0 : index
    %c0_51 = arith.constant 0 : index
    %c0_52 = arith.constant 0 : index
    %108 = vector.load %arg1[%c0_49, %c0_50, %c0_51, %c0_52] : memref<1x16x16x8xf32, #tpu.memory_space<vmem>>, vector<1x16x16x8xf32>
    %109 = vector.shape_cast %108 : vector<1x16x16x8xf32> to vector<16x16x8xf32>
    %110 = vector.shape_cast %109 : vector<16x16x8xf32> to vector<256x8xf32>
    %111 = arith.addf %107, %110 : vector<256x8xf32>
    %112 = vector.shape_cast %111 : vector<256x8xf32> to vector<16x16x8xf32>
    %c0_53 = arith.constant 0 : index
    %c0_54 = arith.constant 0 : index
    %c0_55 = arith.constant 0 : index
    %c0_56 = arith.constant 0 : index
    %113 = vector.load %arg10[%c0_53, %c0_54, %c0_55, %c0_56] : memref<1x16x16x8xf32, #tpu.memory_space<vmem>>, vector<1x16x16x8xf32>
    %114 = vector.shape_cast %113 : vector<1x16x16x8xf32> to vector<16x16x8xf32>
    %115 = vector.shape_cast %112 : vector<16x16x8xf32> to vector<1x16x16x8xf32>
    tpu.vector_store %arg10[%c0_53, %c0_54, %c0_55, %c0_56], %115 {strides = array<i32>} : memref<1x16x16x8xf32, #tpu.memory_space<vmem>>, vector<1x16x16x8xf32>,
    return
  }
  func.func @transform_0(%arg0: i32) -> (i32, i32, i32, i32) {
    %c0_i32 = arith.constant 0 : i32
    %c0_i32_0 = arith.constant 0 : i32
    %c0_i32_1 = arith.constant 0 : i32
    %c0_i32_2 = arith.constant 0 : i32
    return %arg0, %c0_i32, %c0_i32_0, %c0_i32_1 : i32, i32, i32, i32
  }
  func.func @transform_1(%arg0: i32) -> (i32, i32) {
    %c0_i32 = arith.constant 0 : i32
    %c0_i32_0 = arith.constant 0 : i32
    %c0_i32_1 = arith.constant 0 : i32
    return %c0_i32, %c0_i32_0 : i32, i32
  }
  func.func @transform_2(%arg0: i32) -> (i32, i32) {
    %c0_i32 = arith.constant 0 : i32
    %c0_i32_0 = arith.constant 0 : i32
    %c0_i32_1 = arith.constant 0 : i32
    return %c0_i32, %c0_i32_0 : i32, i32
  }
  func.func @transform_3(%arg0: i32) -> (i32, i32) {
    %c0_i32 = arith.constant 0 : i32
    %c0_i32_0 = arith.constant 0 : i32
    %c0_i32_1 = arith.constant 0 : i32
    return %c0_i32, %c0_i32_0 : i32, i32
  }
  func.func @transform_4(%arg0: i32) -> (i32, i32) {
    %c0_i32 = arith.constant 0 : i32
    %c0_i32_0 = arith.constant 0 : i32
    %c0_i32_1 = arith.constant 0 : i32
    return %c0_i32, %c0_i32_0 : i32, i32
  }
  func.func @transform_5(%arg0: i32) -> (i32, i32) {
    %c0_i32 = arith.constant 0 : i32
    %c0_i32_0 = arith.constant 0 : i32
    %c0_i32_1 = arith.constant 0 : i32
    return %c0_i32, %c0_i32_0 : i32, i32
  }
  func.func @transform_6(%arg0: i32) -> (i32, i32) {
    %c0_i32 = arith.constant 0 : i32
    %c0_i32_0 = arith.constant 0 : i32
    %c0_i32_1 = arith.constant 0 : i32
    return %c0_i32, %c0_i32_0 : i32, i32
  }
  func.func @transform_7(%arg0: i32) -> (i32, i32) {
    %c0_i32 = arith.constant 0 : i32
    %c0_i32_0 = arith.constant 0 : i32
    %c0_i32_1 = arith.constant 0 : i32
    return %c0_i32, %c0_i32_0 : i32, i32
  }
  func.func @transform_8(%arg0: i32) -> (i32, i32) {
    %c0_i32 = arith.constant 0 : i32
    %c0_i32_0 = arith.constant 0 : i32
    %c0_i32_1 = arith.constant 0 : i32
    return %c0_i32, %c0_i32_0 : i32, i32
  }
  func.func @transform_9(%arg0: i32) -> (i32, i32, i32, i32) {
    %c0_i32 = arith.constant 0 : i32
    %c0_i32_0 = arith.constant 0 : i32
    %c0_i32_1 = arith.constant 0 : i32
    %c0_i32_2 = arith.constant 0 : i32
    return %arg0, %c0_i32, %c0_i32_0, %c0_i32_1 : i32, i32, i32, i32
  }
}

</mosaic_0001>

<llo_original>
// kernel: rdb_forward.1
$region0: #{rdb_forward.1}
  #allocation0 [shape = 'u32[]', space=smem, size = 0x4, offset = 0x4, fixed_abs, tag = 'smem constant byte address 0x4 - core index']
  #allocation1 [shape = 'u32[144,128]{1,0:T(1,128)}', space=vmem, size = 0x12000, scoped, tag = 'internal scratch']
  #allocation2 [shape = 'f32[18,32,32]{2,1,0:T(8,128)}', space=vmem, size = 0x48000, scoped, tag = 'scratch operand']
  %s0 = inlined_call_operand.vmem [shape: f32[2,16,16,8], index: 0, kind: input, shape index: {}]
  %s1 = inlined_call_operand.vmem [shape: f32[72,8], index: 1, kind: input, shape index: {}]
  %s2 = inlined_call_operand.vmem [shape: f32[1,8], index: 2, kind: input, shape index: {}]
  %s3 = inlined_call_operand.vmem [shape: f32[144,8], index: 3, kind: input, shape index: {}]
  %s4 = inlined_call_operand.vmem [shape: f32[1,8], index: 4, kind: input, shape index: {}]
  %s5 = inlined_call_operand.vmem [shape: f32[216,8], index: 5, kind: input, shape index: {}]
  %s6 = inlined_call_operand.vmem [shape: f32[1,8], index: 6, kind: input, shape index: {}]
  %s7 = inlined_call_operand.vmem [shape: f32[32,8], index: 7, kind: input, shape index: {}]
  %s8 = inlined_call_operand.vmem [shape: f32[1,8], index: 8, kind: input, shape index: {}]
  %s9 = inlined_call_operand.vmem [shape: f32[2,16,16,8], index: 9, kind: output, shape index: {}]
  %s10 = sld [smem:[#allocation0]]
  $region69: #{rdb_forward.1} parent=0
    _
  %s12 = ssub.s32 1, %s10
  %s13 = scalar_select 0, %s12, %s10
  loop: start=0, step=1, limit=4
  $region2: #{rdb_forward.1} parent=0 // loop_pre_header
    _
  $region3: #{rdb_forward.1} parent=0 // loop_header
    %s15 = sphi 0, %s19
    %p16 = scmp.ge.s32.totalorder %s15, 4
    %s25 = sphi 0, %s27
    %s28 = sphi 0, %s25
    %s29 = sphi 0, %s28
    %s45 = sphi 0, %s29
    %s49 = sphi 0, %s49
    %s51 = sphi 0, %s49
    %s52 = sphi 0, %s51
    %s66 = sphi 0, %s52
    %s70 = sphi 0, %s70
    %s72 = sphi 0, %s70
    %s73 = sphi 0, %s72
    %s87 = sphi 0, %s73
    %s91 = sphi 0, %s91
    %s93 = sphi 0, %s91
    %s94 = sphi 0, %s93
    %s108 = sphi 0, %s94
    %s112 = sphi 0, %s112
    %s114 = sphi 0, %s112
    %s115 = sphi 0, %s114
    %s129 = sphi 0, %s115
    %s133 = sphi 0, %s133
    %s135 = sphi 0, %s133
    %s136 = sphi 0, %s135
    %s150 = sphi 0, %s136
    %s154 = sphi 0, %s154
    %s156 = sphi 0, %s154
    %s157 = sphi 0, %s156
    %s171 = sphi 0, %s157
    %s175 = sphi 0, %s175
    %s177 = sphi 0, %s175
    %s178 = sphi 0, %s177
    %s192 = sphi 0, %s178
    %s196 = sphi 0, %s196
    %s198 = sphi 0, %s196
    %s199 = sphi 0, %s198
    %s213 = sphi 0, %s199
    %s219 = sphi 0, %s221
    %s222 = sphi 0, %s219
    %s223 = sphi 0, %s222
    %s239 = sphi 0, %s223
  $region4: #{rdb_forward.1} parent=0 // loop_header_branch
    %18 = sbr.rel (%p16) target = $region8
  $region5: #{rdb_forward.1} parent=0 // loop_body
    %s20 = ssub.s32 %s15, 1
    %s21 = ssub.s32 %s15, 2
    %s22 = sadd.s32 %s15, 1
    %s23 = ssub.s32 %s15, %s22
    %p24 = scmp.eq.s32.totalorder %s23, 0
    %s26 = sadd.s32 %s25, 1
    %s27 = scalar_select %p24, %s25, %s26
    %p30 = pneg %p24
    %p31 = scmp.eq.s32.totalorder %s15, 1
    %p32 = por %p30, %p31
    %p33 = scmp.ne.s32.totalorder %s25, %s28
    %p34 = scmp.eq.s32.totalorder %s15, 0
    %p35 = por %p33, %p34
    %p36 = scmp.ne.s32.totalorder %s25, %s28
    %p37 = scmp.eq.s32.totalorder %s20, 1
    %p38 = por %p36, %p37
    %p39 = scmp.ne.s32.totalorder %s28, %s29
    %p40 = scmp.eq.s32.totalorder %s20, 0
    %p41 = por %p39, %p40
    %p42 = scmp.ne.s32.totalorder %s28, %s29
    %p43 = scmp.eq.s32.totalorder %s21, 1
    %p44 = por %p42, %p43
    %p46 = scmp.ne.s32.totalorder %s29, %s45
    %p47 = scmp.eq.s32.totalorder %s21, 0
    %p48 = por %p46, %p47
    %s50 = sadd.s32 %s49, 1
    %p53 = scmp.eq.s32.totalorder %s15, 1
    %p54 = scmp.ne.s32.totalorder %s49, %s51
    %p55 = scmp.eq.s32.totalorder %s15, 0
    %p56 = por %p54, %p55
    %p57 = scmp.ne.s32.totalorder %s49, %s51
    %p58 = scmp.eq.s32.totalorder %s20, 1
    %p59 = por %p57, %p58
    %p60 = scmp.ne.s32.totalorder %s51, %s52
    %p61 = scmp.eq.s32.totalorder %s20, 0
    %p62 = por %p60, %p61
    %p63 = scmp.ne.s32.totalorder %s51, %s52
    %p64 = scmp.eq.s32.totalorder %s21, 1
    %p65 = por %p63, %p64
    %p67 = scmp.ne.s32.totalorder %s52, %s66
    %p68 = scmp.eq.s32.totalorder %s21, 0
    %p69 = por %p67, %p68
    %s71 = sadd.s32 %s70, 1
    %p74 = scmp.eq.s32.totalorder %s15, 1
    %p75 = scmp.ne.s32.totalorder %s70, %s72
    %p76 = scmp.eq.s32.totalorder %s15, 0
    %p77 = por %p75, %p76
    %p78 = scmp.ne.s32.totalorder %s70, %s72
    %p79 = scmp.eq.s32.totalorder %s20, 1
    %p80 = por %p78, %p79
    %p81 = scmp.ne.s32.totalorder %s72, %s73
    %p82 = scmp.eq.s32.totalorder %s20, 0
    %p83 = por %p81, %p82
    %p84 = scmp.ne.s32.totalorder %s72, %s73
    %p85 = scmp.eq.s32.totalorder %s21, 1
    %p86 = por %p84, %p85
    %p88 = scmp.ne.s32.totalorder %s73, %s87
    %p89 = scmp.eq.s32.totalorder %s21, 0
    %p90 = por %p88, %p89
    %s92 = sadd.s32 %s91, 1
    %p95 = scmp.eq.s32.totalorder %s15, 1
    %p96 = scmp.ne.s32.totalorder %s91, %s93
    %p97 = scmp.eq.s32.totalorder %s15, 0
    %p98 = por %p96, %p97
    %p99 = scmp.ne.s32.totalorder %s91, %s93
    %p100 = scmp.eq.s32.totalorder %s20, 1
    %p101 = por %p99, %p100
    %p102 = scmp.ne.s32.totalorder %s93, %s94
    %p103 = scmp.eq.s32.totalorder %s20, 0
    %p104 = por %p102, %p103
    %p105 = scmp.ne.s32.totalorder %s93, %s94
    %p106 = scmp.eq.s32.totalorder %s21, 1
    %p107 = por %p105, %p106
    %p109 = scmp.ne.s32.totalorder %s94, %s108
    %p110 = scmp.eq.s32.totalorder %s21, 0
    %p111 = por %p109, %p110
    %s113 = sadd.s32 %s112, 1
    %p116 = scmp.eq.s32.totalorder %s15, 1
    %p117 = scmp.ne.s32.totalorder %s112, %s114
    %p118 = scmp.eq.s32.totalorder %s15, 0
    %p119 = por %p117, %p118
    %p120 = scmp.ne.s32.totalorder %s112, %s114
    %p121 = scmp.eq.s32.totalorder %s20, 1
    %p122 = por %p120, %p121
    %p123 = scmp.ne.s32.totalorder %s114, %s115
    %p124 = scmp.eq.s32.totalorder %s20, 0
    %p125 = por %p123, %p124
    %p126 = scmp.ne.s32.totalorder %s114, %s115
    %p127 = scmp.eq.s32.totalorder %s21, 1
    %p128 = por %p126, %p127
    %p130 = scmp.ne.s32.totalorder %s115, %s129
    %p131 = scmp.eq.s32.totalorder %s21, 0
    %p132 = por %p130, %p131
    %s134 = sadd.s32 %s133, 1
    %p137 = scmp.eq.s32.totalorder %s15, 1
    %p138 = scmp.ne.s32.totalorder %s133, %s135
    %p139 = scmp.eq.s32.totalorder %s15, 0
    %p140 = por %p138, %p139
    %p141 = scmp.ne.s32.totalorder %s133, %s135
    %p142 = scmp.eq.s32.totalorder %s20, 1
    %p143 = por %p141, %p142
    %p144 = scmp.ne.s32.totalorder %s135, %s136
    %p145 = scmp.eq.s32.totalorder %s20, 0
    %p146 = por %p144, %p145
    %p147 = scmp.ne.s32.totalorder %s135, %s136
    %p148 = scmp.eq.s32.totalorder %s21, 1
    %p149 = por %p147, %p148
    %p151 = scmp.ne.s32.totalorder %s136, %s150
    %p152 = scmp.eq.s32.totalorder %s21, 0
    %p153 = por %p151, %p152
    %s155 = sadd.s32 %s154, 1
    %p158 = scmp.eq.s32.totalorder %s15, 1
    %p159 = scmp.ne.s32.totalorder %s154, %s156
    %p160 = scmp.eq.s32.totalorder %s15, 0
    %p161 = por %p159, %p160
    %p162 = scmp.ne.s32.totalorder %s154, %s156
    %p163 = scmp.eq.s32.totalorder %s20, 1
    %p164 = por %p162, %p163
    %p165 = scmp.ne.s32.totalorder %s156, %s157
    %p166 = scmp.eq.s32.totalorder %s20, 0
    %p167 = por %p165, %p166
    %p168 = scmp.ne.s32.totalorder %s156, %s157
    %p169 = scmp.eq.s32.totalorder %s21, 1
    %p170 = por %p168, %p169
    %p172 = scmp.ne.s32.totalorder %s157, %s171
    %p173 = scmp.eq.s32.totalorder %s21, 0
    %p174 = por %p172, %p173
    %s176 = sadd.s32 %s175, 1
    %p179 = scmp.eq.s32.totalorder %s15, 1
    %p180 = scmp.ne.s32.totalorder %s175, %s177
    %p181 = scmp.eq.s32.totalorder %s15, 0
    %p182 = por %p180, %p181
    %p183 = scmp.ne.s32.totalorder %s175, %s177
    %p184 = scmp.eq.s32.totalorder %s20, 1
    %p185 = por %p183, %p184
    %p186 = scmp.ne.s32.totalorder %s177, %s178
    %p187 = scmp.eq.s32.totalorder %s20, 0
    %p188 = por %p186, %p187
    %p189 = scmp.ne.s32.totalorder %s177, %s178
    %p190 = scmp.eq.s32.totalorder %s21, 1
    %p191 = por %p189, %p190
    %p193 = scmp.ne.s32.totalorder %s178, %s192
    %p194 = scmp.eq.s32.totalorder %s21, 0
    %p195 = por %p193, %p194
    %s197 = sadd.s32 %s196, 1
    %p200 = scmp.eq.s32.totalorder %s15, 1
    %p201 = scmp.ne.s32.totalorder %s196, %s198
    %p202 = scmp.eq.s32.totalorder %s15, 0
    %p203 = por %p201, %p202
    %p204 = scmp.ne.s32.totalorder %s196, %s198
    %p205 = scmp.eq.s32.totalorder %s20, 1
    %p206 = por %p204, %p205
    %p207 = scmp.ne.s32.totalorder %s198, %s199
    %p208 = scmp.eq.s32.totalorder %s20, 0
    %p209 = por %p207, %p208
    %p210 = scmp.ne.s32.totalorder %s198, %s199
    %p211 = scmp.eq.s32.totalorder %s21, 1
    %p212 = por %p210, %p211
    %p214 = scmp.ne.s32.totalorder %s199, %s213
    %p215 = scmp.eq.s32.totalorder %s21, 0
    %p216 = por %p214, %p215
    %s217 = ssub.s32 %s15, %s22
    %p218 = scmp.eq.s32.totalorder %s217, 0
    %s220 = sadd.s32 %s219, 1
    %s221 = scalar_select %p218, %s219, %s220
    %p224 = pneg %p218
    %p225 = scmp.eq.s32.totalorder %s15, 1
    %p226 = por %p224, %p225
    %p227 = scmp.ne.s32.totalorder %s219, %s222
    %p228 = scmp.eq.s32.totalorder %s15, 0
    %p229 = por %p227, %p228
    %p230 = scmp.ne.s32.totalorder %s219, %s222
    %p231 = scmp.eq.s32.totalorder %s20, 1
    %p232 = por %p230, %p231
    %p233 = scmp.ne.s32.totalorder %s222, %s223
    %p234 = scmp.eq.s32.totalorder %s20, 0
    %p235 = por %p233, %p234
    %p236 = scmp.ne.s32.totalorder %s222, %s223
    %p237 = scmp.eq.s32.totalorder %s21, 1
    %p238 = por %p236, %p237
    %p240 = scmp.ne.s32.totalorder %s223, %s239
    %p241 = scmp.eq.s32.totalorder %s21, 0
    %p242 = por %p240, %p241
    %p243 = scmp.le.s32.totalorder 1, %s15
    %p244 = scmp.lt.s32.totalorder %s15, 3
    %p245 = pnand %p243, %p244
    %p246 = pneg %p245
    // Predicated region
    $region9: #{rdb_forward.1} parent=5 // pred_check
      _
    $region10: #{rdb_forward.1} parent=5 // pred_check_branch
      %248 = sbr.rel (%p245) target = $region12
    $region11: #{rdb_forward.1} parent=5 // pred_region
      %s249 = ssub.s32 %s15, 1
      // Predicated region
      $region13: #{rdb_forward.1} parent=11 // pred_check
        %p250 = pneg %p62
      $region14: #{rdb_forward.1} parent=11 // pred_check_branch
        %252 = sbr.rel (%p250) target = $region16
      $region15: #{rdb_forward.1} parent=11 // pred_region
        _
      $region16: #{rdb_forward.1} parent=11 // pred_fallthru
        _
      // Predicated region
      $region17: #{rdb_forward.1} parent=11 // pred_check
        %p253 = pneg %p83
      $region18: #{rdb_forward.1} parent=11 // pred_check_branch
        %255 = sbr.rel (%p253) target = $region20
      $region19: #{rdb_forward.1} parent=11 // pred_region
        _
      $region20: #{rdb_forward.1} parent=11 // pred_fallthru
        _
      // Predicated region
      $region21: #{rdb_forward.1} parent=11 // pred_check
        %p256 = pneg %p104
      $region22: #{rdb_forward.1} parent=11 // pred_check_branch
        %258 = sbr.rel (%p256) target = $region24
      $region23: #{rdb_forward.1} parent=11 // pred_region
        _
      $region24: #{rdb_forward.1} parent=11 // pred_fallthru
        _
      // Predicated region
      $region25: #{rdb_forward.1} parent=11 // pred_check
        %p259 = pneg %p125
      $region26: #{rdb_forward.1} parent=11 // pred_check_branch
        %261 = sbr.rel (%p259) target = $region28
      $region27: #{rdb_forward.1} parent=11 // pred_region
        _
      $region28: #{rdb_forward.1} parent=11 // pred_fallthru
        _
      // Predicated region
      $region29: #{rdb_forward.1} parent=11 // pred_check
        %p262 = pneg %p146
      $region30: #{rdb_forward.1} parent=11 // pred_check_branch
        %264 = sbr.rel (%p262) target = $region32
      $region31: #{rdb_forward.1} parent=11 // pred_region
        _
      $region32: #{rdb_forward.1} parent=11 // pred_fallthru
        _
      // Predicated region
      $region33: #{rdb_forward.1} parent=11 // pred_check
        %p265 = pneg %p167
      $region34: #{rdb_forward.1} parent=11 // pred_check_branch
        %267 = sbr.rel (%p265) target = $region36
      $region35: #{rdb_forward.1} parent=11 // pred_region
        _
      $region36: #{rdb_forward.1} parent=11 // pred_fallthru
        _
      // Predicated region
      $region37: #{rdb_forward.1} parent=11 // pred_check
        %p268 = pneg %p188
      $region38: #{rdb_forward.1} parent=11 // pred_check_branch
        %270 = sbr.rel (%p268) target = $region40
      $region39: #{rdb_forward.1} parent=11 // pred_region
        _
      $region40: #{rdb_forward.1} parent=11 // pred_fallthru
        _
      // Predicated region
      $region41: #{rdb_forward.1} parent=11 // pred_check
        %p271 = pneg %p209
      $region42: #{rdb_forward.1} parent=11 // pred_check_branch
        %273 = sbr.rel (%p271) target = $region44
      $region43: #{rdb_forward.1} parent=11 // pred_region
        _
      $region44: #{rdb_forward.1} parent=11 // pred_fallthru
        _
    $region12: #{rdb_forward.1} parent=5 // pred_fallthru
      _
    %p274 = scmp.lt.s32.totalorder %s15, 2
    // Predicated region
    $region45: #{rdb_forward.1} parent=5 // pred_check
      %p275 = pneg %p274
    $region46: #{rdb_forward.1} parent=5 // pred_check_branch
      %277 = sbr.rel (%p275) target = $region48
    $region47: #{rdb_forward.1} parent=5 // pred_region
      // Predicated region
      $region49: #{rdb_forward.1} parent=47 // pred_check
        %p278 = pneg %p35
      $region50: #{rdb_forward.1} parent=47 // pred_check_branch
        %280 = sbr.rel (%p278) target = $region52
      $region51: #{rdb_forward.1} parent=47 // pred_region
        %p281 = scmp.lt.s32.totalorder %s15, 1
        %s282 = scalar_select %p281, %s15, 1
        %s283 = smul.addr %s282, 32
        %s284 = smul.addr %s283, 8
        %s285 = scalar_lea.vmem %s0, %s284
      $region52: #{rdb_forward.1} parent=47 // pred_fallthru
        _
    $region48: #{rdb_forward.1} parent=5 // pred_fallthru
      _
    %p286 = scmp.le.s32.totalorder 1, %s15
    %p287 = scmp.lt.s32.totalorder %s15, 3
    %p288 = pnand %p286, %p287
    %p289 = pneg %p288
    // Predicated region
    $region53: #{rdb_forward.1} parent=5 // pred_check
      _
    $region54: #{rdb_forward.1} parent=5 // pred_check_branch
      %291 = sbr.rel (%p288) target = $region56
    $region55: #{rdb_forward.1} parent=5 // pred_region
      %s292 = ssub.s32 %s15, 1
      %p293 = scmp.lt.s32.totalorder %s20, 1
      %s294 = scalar_select %p293, %s20, 1
      %s295 = smul.addr %s294, 32
      %s296 = smul.addr %s295, 8
      %s297 = scalar_lea.vmem %s0, %s296
      %p298 = pneg %p41
      %p299 = pneg %p38
      %p300 = pneg %p62
      %p301 = pneg %p59
      %p302 = pneg %p83
      %p303 = pneg %p80
      %p304 = pneg %p104
      %p305 = pneg %p101
      %p306 = pneg %p125
      %p307 = pneg %p122
      %p308 = pneg %p146
      %p309 = pneg %p143
      %p310 = pneg %p167
      %p311 = pneg %p164
      %p312 = pneg %p188
      %p313 = pneg %p185
      %p314 = pneg %p209
      %p315 = pneg %p206
      %p316 = pneg %p235
      %p317 = pneg %p232
      %p318 = scmp.lt.s32.totalorder %s20, 1
      %s319 = scalar_select %p318, %s20, 1
      %s320 = smul.addr %s319, 32
      %s321 = smul.addr %s320, 8
      %s322 = scalar_lea.vmem %s9, %s321
      %p323 = scmp.lt.s32.totalorder %s20, 1
      %s324 = scalar_select %p323, %s20, 1
      %s325 = smul.addr %s324, 32
      %s326 = smul.addr %s325, 8
      %s327 = scalar_lea.vmem %s0, %s326
      %p328 = scmp.lt.s32.totalorder %s20, 1
      %s329 = scalar_select %p328, %s20, 1
      %s330 = smul.addr %s329, 32
      %s331 = smul.addr %s330, 8
      %s332 = scalar_lea.vmem %s9, %s331
      %vm333 = vcmask 261120
      %334 = vst.msk [vmem:[#allocation2] sm:$0xff] %vm333, 0.0
      %335 = vst.msk [vmem:[#allocation2 + $0x8] sm:$0xff] %vm333, 0.0
      %336 = vst.msk [vmem:[#allocation2 + $0x10] sm:$0xff] %vm333, 0.0
      %337 = vst.msk [vmem:[#allocation2 + $0x18] sm:$0xff] %vm333, 0.0
      %338 = vst.msk [vmem:[#allocation2 + $0x20] sm:$0xff] %vm333, 0.0
      %339 = vst.msk [vmem:[#allocation2 + $0x28] sm:$0xff] %vm333, 0.0
      %340 = vst.msk [vmem:[#allocation2 + $0x30] sm:$0xff] %vm333, 0.0
      %341 = vst.msk [vmem:[#allocation2 + $0x38] sm:$0xff] %vm333, 0.0
      %342 = vst.msk [vmem:[#allocation2 + $0x40] sm:$0xff] %vm333, 0.0
      %343 = vst.msk [vmem:[#allocation2 + $0x48] sm:$0xff] %vm333, 0.0
      %344 = vst.msk [vmem:[#allocation2 + $0x50] sm:$0xff] %vm333, 0.0
      %345 = vst.msk [vmem:[#allocation2 + $0x58] sm:$0xff] %vm333, 0.0
      %346 = vst.msk [vmem:[#allocation2 + $0x60] sm:$0xff] %vm333, 0.0
      %347 = vst.msk [vmem:[#allocation2 + $0x68] sm:$0xff] %vm333, 0.0
      %348 = vst.msk [vmem:[#allocation2 + $0x70] sm:$0xff] %vm333, 0.0
      %349 = vst.msk [vmem:[#allocation2 + $0x78] sm:$0xff] %vm333, 0.0
      %350 = vst.msk [vmem:[#allocation2 + $0x80] sm:$0xff] %vm333, 0.0
      %351 = vst.msk [vmem:[#allocation2 + $0x88] sm:$0xff] %vm333, 0.0
      %352 = vst.msk [vmem:[#allocation2 + $0x90] sm:$0xff] %vm333, 0.0
      %353 = vst.msk [vmem:[#allocation2 + $0x98] sm:$0xff] %vm333, 0.0
      %354 = vst.msk [vmem:[#allocation2 + $0xa0] sm:$0xff] %vm333, 0.0
      %355 = vst.msk [vmem:[#allocation2 + $0xa8] sm:$0xff] %vm333, 0.0
      %356 = vst.msk [vmem:[#allocation2 + $0xb0] sm:$0xff] %vm333, 0.0
      %357 = vst.msk [vmem:[#allocation2 + $0xb8] sm:$0xff] %vm333, 0.0
      %358 = vst.msk [vmem:[#allocation2 + $0xc0] sm:$0xff] %vm333, 0.0
      %359 = vst.msk [vmem:[#allocation2 + $0xc8] sm:$0xff] %vm333, 0.0
      %360 = vst.msk [vmem:[#allocation2 + $0xd0] sm:$0xff] %vm333, 0.0
      %361 = vst.msk [vmem:[#allocation2 + $0xd8] sm:$0xff] %vm333, 0.0
      %362 = vst.msk [vmem:[#allocation2 + $0xe0] sm:$0xff] %vm333, 0.0
      %363 = vst.msk [vmem:[#allocation2 + $0xe8] sm:$0xff] %vm333, 0.0
      %364 = vst.msk [vmem:[#allocation2 + $0xf0] sm:$0xff] %vm333, 0.0
      %365 = vst.msk [vmem:[#allocation2 + $0xf8] sm:$0xff] %vm333, 0.0
      %366 = vst.msk [vmem:[#allocation2 + $0x100] sm:$0xff] %vm333, 0.0
      %367 = vst.msk [vmem:[#allocation2 + $0x108] sm:$0xff] %vm333, 0.0
      %368 = vst.msk [vmem:[#allocation2 + $0x110] sm:$0xff] %vm333, 0.0
      %369 = vst.msk [vmem:[#allocation2 + $0x118] sm:$0xff] %vm333, 0.0
      %370 = vst.msk [vmem:[#allocation2 + $0x120] sm:$0xff] %vm333, 0.0
      %371 = vst.msk [vmem:[#allocation2 + $0x128] sm:$0xff] %vm333, 0.0
      %372 = vst.msk [vmem:[#allocation2 + $0x130] sm:$0xff] %vm333, 0.0
      %373 = vst.msk [vmem:[#allocation2 + $0x138] sm:$0xff] %vm333, 0.0
      %374 = vst.msk [vmem:[#allocation2 + $0x140] sm:$0xff] %vm333, 0.0
      %375 = vst.msk [vmem:[#allocation2 + $0x148] sm:$0xff] %vm333, 0.0
      %376 = vst.msk [vmem:[#allocation2 + $0x150] sm:$0xff] %vm333, 0.0
      %377 = vst.msk [vmem:[#allocation2 + $0x158] sm:$0xff] %vm333, 0.0
      %378 = vst.msk [vmem:[#allocation2 + $0x160] sm:$0xff] %vm333, 0.0
      %379 = vst.msk [vmem:[#allocation2 + $0x168] sm:$0xff] %vm333, 0.0
      %380 = vst.msk [vmem:[#allocation2 + $0x170] sm:$0xff] %vm333, 0.0
      %381 = vst.msk [vmem:[#allocation2 + $0x178] sm:$0xff] %vm333, 0.0
      %382 = vst.msk [vmem:[#allocation2 + $0x180] sm:$0xff] %vm333, 0.0
      %383 = vst.msk [vmem:[#allocation2 + $0x188] sm:$0xff] %vm333, 0.0
      %384 = vst.msk [vmem:[#allocation2 + $0x190] sm:$0xff] %vm333, 0.0
      %385 = vst.msk [vmem:[#allocation2 + $0x198] sm:$0xff] %vm333, 0.0
      %386 = vst.msk [vmem:[#allocation2 + $0x1a0] sm:$0xff] %vm333, 0.0
      %387 = vst.msk [vmem:[#allocation2 + $0x1a8] sm:$0xff] %vm333, 0.0
      %388 = vst.msk [vmem:[#allocation2 + $0x1b0] sm:$0xff] %vm333, 0.0
      %389 = vst.msk [vmem:[#allocation2 + $0x1b8] sm:$0xff] %vm333, 0.0
      %390 = vst.msk [vmem:[#allocation2 + $0x1c0] sm:$0xff] %vm333, 0.0
      %391 = vst.msk [vmem:[#allocation2 + $0x1c8] sm:$0xff] %vm333, 0.0
      %392 = vst.msk [vmem:[#allocation2 + $0x1d0] sm:$0xff] %vm333, 0.0
      %393 = vst.msk [vmem:[#allocation2 + $0x1d8] sm:$0xff] %vm333, 0.0
      %394 = vst.msk [vmem:[#allocation2 + $0x1e0] sm:$0xff] %vm333, 0.0
      %395 = vst.msk [vmem:[#allocation2 + $0x1e8] sm:$0xff] %vm333, 0.0
      %396 = vst.msk [vmem:[#allocation2 + $0x1f0] sm:$0xff] %vm333, 0.0
      %397 = vst.msk [vmem:[#allocation2 + $0x1f8] sm:$0xff] %vm333, 0.0
      %398 = vst.msk [vmem:[#allocation2 + $0x200] sm:$0xff] %vm333, 0.0
      %399 = vst.msk [vmem:[#allocation2 + $0x208] sm:$0xff] %vm333, 0.0
      %400 = vst.msk [vmem:[#allocation2 + $0x210] sm:$0xff] %vm333, 0.0
      %401 = vst.msk [vmem:[#allocation2 + $0x218] sm:$0xff] %vm333, 0.0
      %402 = vst.msk [vmem:[#allocation2 + $0x220] sm:$0xff] %vm333, 0.0
      %403 = vst.msk [vmem:[#allocation2 + $0x228] sm:$0xff] %vm333, 0.0
      %404 = vst.msk [vmem:[#allocation2 + $0x230] sm:$0xff] %vm333, 0.0
      %405 = vst.msk [vmem:[#allocation2 + $0x238] sm:$0xff] %vm333, 0.0
      %v406 = vld [vmem:[%s327] sm:$0xff]
      %v407 = vld [vmem:[%s327 + $0x8] sm:$0xff]
      %v408 = vld [vmem:[%s327 + $0x10] sm:$0xff]
      %v409 = vld [vmem:[%s327 + $0x18] sm:$0xff]
      %v410 = vld [vmem:[%s327 + $0x20] sm:$0xff]
      %v411 = vld [vmem:[%s327 + $0x28] sm:$0xff]
      %v412 = vld [vmem:[%s327 + $0x30] sm:$0xff]
      %v413 = vld [vmem:[%s327 + $0x38] sm:$0xff]
      %v414 = vld [vmem:[%s327 + $0x40] sm:$0xff]
      %v415 = vld [vmem:[%s327 + $0x48] sm:$0xff]
      %v416 = vld [vmem:[%s327 + $0x50] sm:$0xff]
      %v417 = vld [vmem:[%s327 + $0x58] sm:$0xff]
      %v418 = vld [vmem:[%s327 + $0x60] sm:$0xff]
      %v419 = vld [vmem:[%s327 + $0x68] sm:$0xff]
      %v420 = vld [vmem:[%s327 + $0x70] sm:$0xff]
      %v421 = vld [vmem:[%s327 + $0x78] sm:$0xff]
      %v422 = vld [vmem:[%s327 + $0x80] sm:$0xff]
      %v423 = vld [vmem:[%s327 + $0x88] sm:$0xff]
      %v424 = vld [vmem:[%s327 + $0x90] sm:$0xff]
      %v425 = vld [vmem:[%s327 + $0x98] sm:$0xff]
      %v426 = vld [vmem:[%s327 + $0xa0] sm:$0xff]
      %v427 = vld [vmem:[%s327 + $0xa8] sm:$0xff]
      %v428 = vld [vmem:[%s327 + $0xb0] sm:$0xff]
      %v429 = vld [vmem:[%s327 + $0xb8] sm:$0xff]
      %v430 = vld [vmem:[%s327 + $0xc0] sm:$0xff]
      %v431 = vld [vmem:[%s327 + $0xc8] sm:$0xff]
      %v432 = vld [vmem:[%s327 + $0xd0] sm:$0xff]
      %v433 = vld [vmem:[%s327 + $0xd8] sm:$0xff]
      %v434 = vld [vmem:[%s327 + $0xe0] sm:$0xff]
      %v435 = vld [vmem:[%s327 + $0xe8] sm:$0xff]
      %v436 = vld [vmem:[%s327 + $0xf0] sm:$0xff]
      %v437 = vld [vmem:[%s327 + $0xf8] sm:$0xff]
      %s438 = scalar_lea.vmem [#allocation2], 32
      %vm439 = vcmask 64512
      %440 = vst.msk [vmem:[%s438 + $0x8] sm:$0xff] %vm439, %v406
      %441 = vst.msk [vmem:[%s438 + $0x10] sm:$0xff] %vm439, %v407
      %442 = vst.msk [vmem:[%s438 + $0x28] sm:$0xff] %vm439, %v408
      %443 = vst.msk [vmem:[%s438 + $0x30] sm:$0xff] %vm439, %v409
      %444 = vst.msk [vmem:[%s438 + $0x48] sm:$0xff] %vm439, %v410
      %445 = vst.msk [vmem:[%s438 + $0x50] sm:$0xff] %vm439, %v411
      %446 = vst.msk [vmem:[%s438 + $0x68] sm:$0xff] %vm439, %v412
      %447 = vst.msk [vmem:[%s438 + $0x70] sm:$0xff] %vm439, %v413
      %448 = vst.msk [vmem:[%s438 + $0x88] sm:$0xff] %vm439, %v414
      %449 = vst.msk [vmem:[%s438 + $0x90] sm:$0xff] %vm439, %v415
      %450 = vst.msk [vmem:[%s438 + $0xa8] sm:$0xff] %vm439, %v416
      %451 = vst.msk [vmem:[%s438 + $0xb0] sm:$0xff] %vm439, %v417
      %452 = vst.msk [vmem:[%s438 + $0xc8] sm:$0xff] %vm439, %v418
      %453 = vst.msk [vmem:[%s438 + $0xd0] sm:$0xff] %vm439, %v419
      %454 = vst.msk [vmem:[%s438 + $0xe8] sm:$0xff] %vm439, %v420
      %455 = vst.msk [vmem:[%s438 + $0xf0] sm:$0xff] %vm439, %v421
      %456 = vst.msk [vmem:[%s438 + $0x108] sm:$0xff] %vm439, %v422
      %457 = vst.msk [vmem:[%s438 + $0x110] sm:$0xff] %vm439, %v423
      %458 = vst.msk [vmem:[%s438 + $0x128] sm:$0xff] %vm439, %v424
      %459 = vst.msk [vmem:[%s438 + $0x130] sm:$0xff] %vm439, %v425
      %460 = vst.msk [vmem:[%s438 + $0x148] sm:$0xff] %vm439, %v426
      %461 = vst.msk [vmem:[%s438 + $0x150] sm:$0xff] %vm439, %v427
      %462 = vst.msk [vmem:[%s438 + $0x168] sm:$0xff] %vm439, %v428
      %463 = vst.msk [vmem:[%s438 + $0x170] sm:$0xff] %vm439, %v429
      %464 = vst.msk [vmem:[%s438 + $0x188] sm:$0xff] %vm439, %v430
      %465 = vst.msk [vmem:[%s438 + $0x190] sm:$0xff] %vm439, %v431
      %466 = vst.msk [vmem:[%s438 + $0x1a8] sm:$0xff] %vm439, %v432
      %467 = vst.msk [vmem:[%s438 + $0x1b0] sm:$0xff] %vm439, %v433
      %468 = vst.msk [vmem:[%s438 + $0x1c8] sm:$0xff] %vm439, %v434
      %469 = vst.msk [vmem:[%s438 + $0x1d0] sm:$0xff] %vm439, %v435
      %470 = vst.msk [vmem:[%s438 + $0x1e8] sm:$0xff] %vm439, %v436
      %471 = vst.msk [vmem:[%s438 + $0x1f0] sm:$0xff] %vm439, %v437
      %v472 = vld [vmem:[#allocation2] sm:$0xff]
      %v473 = vld [vmem:[#allocation2 + $0x8] sm:$0xff]
      %v474 = vld [vmem:[#allocation2 + $0x10] sm:$0xff]
      %v475 = vld [vmem:[#allocation2 + $0x18] sm:$0xff]
      %v476 = vld [vmem:[#allocation2 + $0x20] sm:$0xff]
      %v477 = vld [vmem:[#allocation2 + $0x28] sm:$0xff]
      %v478 = vld [vmem:[#allocation2 + $0x30] sm:$0xff]
      %v479 = vld [vmem:[#allocation2 + $0x38] sm:$0xff]
      %v480 = vld [vmem:[#allocation2 + $0x40] sm:$0xff]
      %v481 = vld [vmem:[#allocation2 + $0x48] sm:$0xff]
      %v482 = vld [vmem:[#allocation2 + $0x50] sm:$0xff]
      %v483 = vld [vmem:[#allocation2 + $0x58] sm:$0xff]
      %v484 = vld [vmem:[#allocation2 + $0x60] sm:$0xff]
      %v485 = vld [vmem:[#allocation2 + $0x68] sm:$0xff]
      %v486 = vld [vmem:[#allocation2 + $0x70] sm:$0xff]
      %v487 = vld [vmem:[#allocation2 + $0x78] sm:$0xff]
      %v488 = vld [vmem:[#allocation2 + $0x80] sm:$0xff]
      %v489 = vld [vmem:[#allocation2 + $0x88] sm:$0xff]
      %v490 = vld [vmem:[#allocation2 + $0x90] sm:$0xff]
      %v491 = vld [vmem:[#allocation2 + $0x98] sm:$0xff]
      %v492 = vld [vmem:[#allocation2 + $0xa0] sm:$0xff]
      %v493 = vld [vmem:[#allocation2 + $0xa8] sm:$0xff]
      %v494 = vld [vmem:[#allocation2 + $0xb0] sm:$0xff]
      %v495 = vld [vmem:[#allocation2 + $0xb8] sm:$0xff]
      %v496 = vld [vmem:[#allocation2 + $0xc0] sm:$0xff]
      %v497 = vld [vmem:[#allocation2 + $0xc8] sm:$0xff]
      %v498 = vld [vmem:[#allocation2 + $0xd0] sm:$0xff]
      %v499 = vld [vmem:[#allocation2 + $0xd8] sm:$0xff]
      %v500 = vld [vmem:[#allocation2 + $0xe0] sm:$0xff]
      %v501 = vld [vmem:[#allocation2 + $0xe8] sm:$0xff]
      %v502 = vld [vmem:[#allocation2 + $0xf0] sm:$0xff]
      %v503 = vld [vmem:[#allocation2 + $0xf8] sm:$0xff]
      %v504 = vld [vmem:[#allocation2 + $0x100] sm:$0xff]
      %v505 = vld [vmem:[#allocation2 + $0x108] sm:$0xff]
      %v506 = vld [vmem:[#allocation2 + $0x110] sm:$0xff]
      %v507 = vld [vmem:[#allocation2 + $0x118] sm:$0xff]
      %v508 = vld [vmem:[#allocation2 + $0x120] sm:$0xff]
      %v509 = vld [vmem:[#allocation2 + $0x128] sm:$0xff]
      %v510 = vld [vmem:[#allocation2 + $0x130] sm:$0xff]
      %v511 = vld [vmem:[#allocation2 + $0x138] sm:$0xff]
      %v512 = vld [vmem:[#allocation2 + $0x140] sm:$0xff]
      %v513 = vld [vmem:[#allocation2 + $0x148] sm:$0xff]
      %v514 = vld [vmem:[#allocation2 + $0x150] sm:$0xff]
      %v515 = vld [vmem:[#allocation2 + $0x158] sm:$0xff]
      %v516 = vld [vmem:[#allocation2 + $0x160] sm:$0xff]
      %v517 = vld [vmem:[#allocation2 + $0x168] sm:$0xff]
      %v518 = vld [vmem:[#allocation2 + $0x170] sm:$0xff]
      %v519 = vld [vmem:[#allocation2 + $0x178] sm:$0xff]
      %v520 = vld [vmem:[#allocation2 + $0x180] sm:$0xff]
      %v521 = vld [vmem:[#allocation2 + $0x188] sm:$0xff]
      %v522 = vld [vmem:[#allocation2 + $0x190] sm:$0xff]
      %v523 = vld [vmem:[#allocation2 + $0x198] sm:$0xff]
      %v524 = vld [vmem:[#allocation2 + $0x1a0] sm:$0xff]
      %v525 = vld [vmem:[#allocation2 + $0x1a8] sm:$0xff]
      %v526 = vld [vmem:[#allocation2 + $0x1b0] sm:$0xff]
      %v527 = vld [vmem:[#allocation2 + $0x1b8] sm:$0xff]
      %v528 = vld [vmem:[#allocation2 + $0x1c0] sm:$0xff]
      %v529 = vld [vmem:[#allocation2 + $0x1c8] sm:$0xff]
      %v530 = vld [vmem:[#allocation2 + $0x1d0] sm:$0xff]
      %v531 = vld [vmem:[#allocation2 + $0x1d8] sm:$0xff]
      %v532 = vld [vmem:[#allocation2 + $0x1e0] sm:$0xff]
      %v533 = vld [vmem:[#allocation2 + $0x1e8] sm:$0xff]
      %v534 = vld [vmem:[#allocation2 + $0x1f0] sm:$0xff]
      %v535 = vld [vmem:[#allocation2 + $0x1f8] sm:$0xff]
      %v536 = vld [vmem:[#allocation2 + $0x200] sm:$0xff]
      %v537 = vld [vmem:[#allocation2 + $0x208] sm:$0xff]
      %v538 = vld [vmem:[#allocation2 + $0x210] sm:$0xff]
      %v539 = vld [vmem:[#allocation2 + $0x218] sm:$0xff]
      %v540 = vld [vmem:[#allocation2 + $0x220] sm:$0xff]
      %v541 = vld [vmem:[#allocation2 + $0x228] sm:$0xff]
      %v542 = vld [vmem:[#allocation2 + $0x230] sm:$0xff]
      %v543 = vld [vmem:[#allocation2 + $0x238] sm:$0xff]
      %vm592 = vcmask 1040384
      %v593 = vrot.slane %v472, 7
      %v594 = vrot.slane %v473, 7
      %v595 = vsel %vm592, %v593, %v594
      %v596 = vrot.slane %v474, 7
      %v597 = vsel %vm592, %v594, %v596
      %v598 = vrot.slane %v476, 7
      %v599 = vrot.slane %v477, 7
      %v600 = vsel %vm592, %v598, %v599
      %v601 = vrot.slane %v478, 7
      %v602 = vsel %vm592, %v599, %v601
      %v603 = vrot.slane %v480, 7
      %v604 = vrot.slane %v481, 7
      %v605 = vsel %vm592, %v603, %v604
      %v606 = vrot.slane %v482, 7
      %v607 = vsel %vm592, %v604, %v606
      %v608 = vrot.slane %v484, 7
      %v609 = vrot.slane %v485, 7
      %v610 = vsel %vm592, %v608, %v609
      %v611 = vrot.slane %v486, 7
      %v612 = vsel %vm592, %v609, %v611
      %v613 = vrot.slane %v488, 7
      %v614 = vrot.slane %v489, 7
      %v615 = vsel %vm592, %v613, %v614
      %v616 = vrot.slane %v490, 7
      %v617 = vsel %vm592, %v614, %v616
      %v618 = vrot.slane %v492, 7
      %v619 = vrot.slane %v493, 7
      %v620 = vsel %vm592, %v618, %v619
      %v621 = vrot.slane %v494, 7
      %v622 = vsel %vm592, %v619, %v621
      %v623 = vrot.slane %v496, 7
      %v624 = vrot.slane %v497, 7
      %v625 = vsel %vm592, %v623, %v624
      %v626 = vrot.slane %v498, 7
      %v627 = vsel %vm592, %v624, %v626
      %v628 = vrot.slane %v500, 7
      %v629 = vrot.slane %v501, 7
      %v630 = vsel %vm592, %v628, %v629
      %v631 = vrot.slane %v502, 7
      %v632 = vsel %vm592, %v629, %v631
      %v633 = vrot.slane %v504, 7
      %v634 = vrot.slane %v505, 7
      %v635 = vsel %vm592, %v633, %v634
      %v636 = vrot.slane %v506, 7
      %v637 = vsel %vm592, %v634, %v636
      %v638 = vrot.slane %v508, 7
      %v639 = vrot.slane %v509, 7
      %v640 = vsel %vm592, %v638, %v639
      %v641 = vrot.slane %v510, 7
      %v642 = vsel %vm592, %v639, %v641
      %v643 = vrot.slane %v512, 7
      %v644 = vrot.slane %v513, 7
      %v645 = vsel %vm592, %v643, %v644
      %v646 = vrot.slane %v514, 7
      %v647 = vsel %vm592, %v644, %v646
      %v648 = vrot.slane %v516, 7
      %v649 = vrot.slane %v517, 7
      %v650 = vsel %vm592, %v648, %v649
      %v651 = vrot.slane %v518, 7
      %v652 = vsel %vm592, %v649, %v651
      %v653 = vrot.slane %v520, 7
      %v654 = vrot.slane %v521, 7
      %v655 = vsel %vm592, %v653, %v654
      %v656 = vrot.slane %v522, 7
      %v657 = vsel %vm592, %v654, %v656
      %v658 = vrot.slane %v524, 7
      %v659 = vrot.slane %v525, 7
      %v660 = vsel %vm592, %v658, %v659
      %v661 = vrot.slane %v526, 7
      %v662 = vsel %vm592, %v659, %v661
      %v663 = vrot.slane %v528, 7
      %v664 = vrot.slane %v529, 7
      %v665 = vsel %vm592, %v663, %v664
      %v666 = vrot.slane %v530, 7
      %v667 = vsel %vm592, %v664, %v666
      %v668 = vrot.slane %v532, 7
      %v669 = vrot.slane %v533, 7
      %v670 = vsel %vm592, %v668, %v669
      %v671 = vrot.slane %v534, 7
      %v672 = vsel %vm592, %v669, %v671
      %vm721 = vcmask 1046528
      %v722 = vrot.slane %v473, 1
      %v723 = vrot.slane %v474, 1
      %v724 = vsel %vm721, %v722, %v723
      %v725 = vrot.slane %v475, 1
      %v726 = vsel %vm721, %v723, %v725
      %v727 = vrot.slane %v477, 1
      %v728 = vrot.slane %v478, 1
      %v729 = vsel %vm721, %v727, %v728
      %v730 = vrot.slane %v479, 1
      %v731 = vsel %vm721, %v728, %v730
      %v732 = vrot.slane %v481, 1
      %v733 = vrot.slane %v482, 1
      %v734 = vsel %vm721, %v732, %v733
      %v735 = vrot.slane %v483, 1
      %v736 = vsel %vm721, %v733, %v735
      %v737 = vrot.slane %v485, 1
      %v738 = vrot.slane %v486, 1
      %v739 = vsel %vm721, %v737, %v738
      %v740 = vrot.slane %v487, 1
      %v741 = vsel %vm721, %v738, %v740
      %v742 = vrot.slane %v489, 1
      %v743 = vrot.slane %v490, 1
      %v744 = vsel %vm721, %v742, %v743
      %v745 = vrot.slane %v491, 1
      %v746 = vsel %vm721, %v743, %v745
      %v747 = vrot.slane %v493, 1
      %v748 = vrot.slane %v494, 1
      %v749 = vsel %vm721, %v747, %v748
      %v750 = vrot.slane %v495, 1
      %v751 = vsel %vm721, %v748, %v750
      %v752 = vrot.slane %v497, 1
      %v753 = vrot.slane %v498, 1
      %v754 = vsel %vm721, %v752, %v753
      %v755 = vrot.slane %v499, 1
      %v756 = vsel %vm721, %v753, %v755
      %v757 = vrot.slane %v501, 1
      %v758 = vrot.slane %v502, 1
      %v759 = vsel %vm721, %v757, %v758
      %v760 = vrot.slane %v503, 1
      %v761 = vsel %vm721, %v758, %v760
      %v762 = vrot.slane %v505, 1
      %v763 = vrot.slane %v506, 1
      %v764 = vsel %vm721, %v762, %v763
      %v765 = vrot.slane %v507, 1
      %v766 = vsel %vm721, %v763, %v765
      %v767 = vrot.slane %v509, 1
      %v768 = vrot.slane %v510, 1
      %v769 = vsel %vm721, %v767, %v768
      %v770 = vrot.slane %v511, 1
      %v771 = vsel %vm721, %v768, %v770
      %v772 = vrot.slane %v513, 1
      %v773 = vrot.slane %v514, 1
      %v774 = vsel %vm721, %v772, %v773
      %v775 = vrot.slane %v515, 1
      %v776 = vsel %vm721, %v773, %v775
      %v777 = vrot.slane %v517, 1
      %v778 = vrot.slane %v518, 1
      %v779 = vsel %vm721, %v777, %v778
      %v780 = vrot.slane %v519, 1
      %v781 = vsel %vm721, %v778, %v780
      %v782 = vrot.slane %v521, 1
      %v783 = vrot.slane %v522, 1
      %v784 = vsel %vm721, %v782, %v783
      %v785 = vrot.slane %v523, 1
      %v786 = vsel %vm721, %v783, %v785
      %v787 = vrot.slane %v525, 1
      %v788 = vrot.slane %v526, 1
      %v789 = vsel %vm721, %v787, %v788
      %v790 = vrot.slane %v527, 1
      %v791 = vsel %vm721, %v788, %v790
      %v792 = vrot.slane %v529, 1
      %v793 = vrot.slane %v530, 1
      %v794 = vsel %vm721, %v792, %v793
      %v795 = vrot.slane %v531, 1
      %v796 = vsel %vm721, %v793, %v795
      %v797 = vrot.slane %v533, 1
      %v798 = vrot.slane %v534, 1
      %v799 = vsel %vm721, %v797, %v798
      %v800 = vrot.slane %v535, 1
      %v801 = vsel %vm721, %v798, %v800
      %v805 = vrot.slane %v536, 7
      %v806 = vrot.slane %v537, 7
      %v807 = vsel %vm592, %v805, %v806
      %v808 = vrot.slane %v538, 7
      %v809 = vsel %vm592, %v806, %v808
      %v811 = vrot.slane %v537, 1
      %v812 = vrot.slane %v538, 1
      %v813 = vsel %vm721, %v811, %v812
      %v814 = vrot.slane %v539, 1
      %v815 = vsel %vm721, %v812, %v814
      %v819 = vrot.slane %v540, 7
      %v820 = vrot.slane %v541, 7
      %v821 = vsel %vm592, %v819, %v820
      %v822 = vrot.slane %v542, 7
      %v823 = vsel %vm592, %v820, %v822
      %v825 = vrot.slane %v541, 1
      %v826 = vrot.slane %v542, 1
      %v827 = vsel %vm721, %v825, %v826
      %v828 = vrot.slane %v543, 1
      %v829 = vsel %vm721, %v826, %v828
      %830 = vrot.lane.b32.xlu0 %v473, 8
      %v831 = vpop.permute.xlu0 %830
      %832 = vrot.lane.b32.xlu0 %v474, 8
      %v833 = vpop.permute.xlu0 %832
      %834 = vrot.lane.b32.xlu0 %v477, 8
      %v835 = vpop.permute.xlu0 %834
      %836 = vrot.lane.b32.xlu0 %v478, 8
      %v837 = vpop.permute.xlu0 %836
      %838 = vrot.lane.b32.xlu0 %v481, 8
      %v839 = vpop.permute.xlu0 %838
      %840 = vrot.lane.b32.xlu0 %v482, 8
      %v841 = vpop.permute.xlu0 %840
      %842 = vrot.lane.b32.xlu0 %v485, 8
      %v843 = vpop.permute.xlu0 %842
      %844 = vrot.lane.b32.xlu0 %v486, 8
      %v845 = vpop.permute.xlu0 %844
      %846 = vrot.lane.b32.xlu0 %v489, 8
      %v847 = vpop.permute.xlu0 %846
      %848 = vrot.lane.b32.xlu0 %v490, 8
      %v849 = vpop.permute.xlu0 %848
      %850 = vrot.lane.b32.xlu0 %v493, 8
      %v851 = vpop.permute.xlu0 %850
      %852 = vrot.lane.b32.xlu0 %v494, 8
      %v853 = vpop.permute.xlu0 %852
      %854 = vrot.lane.b32.xlu0 %v497, 8
      %v855 = vpop.permute.xlu0 %854
      %856 = vrot.lane.b32.xlu0 %v498, 8
      %v857 = vpop.permute.xlu0 %856
      %858 = vrot.lane.b32.xlu0 %v501, 8
      %v859 = vpop.permute.xlu0 %858
      %860 = vrot.lane.b32.xlu0 %v502, 8
      %v861 = vpop.permute.xlu0 %860
      %862 = vrot.lane.b32.xlu0 %v505, 8
      %v863 = vpop.permute.xlu0 %862
      %864 = vrot.lane.b32.xlu0 %v506, 8
      %v865 = vpop.permute.xlu0 %864
      %866 = vrot.lane.b32.xlu0 %v509, 8
      %v867 = vpop.permute.xlu0 %866
      %868 = vrot.lane.b32.xlu0 %v510, 8
      %v869 = vpop.permute.xlu0 %868
      %870 = vrot.lane.b32.xlu0 %v513, 8
      %v871 = vpop.permute.xlu0 %870
      %872 = vrot.lane.b32.xlu0 %v514, 8
      %v873 = vpop.permute.xlu0 %872
      %874 = vrot.lane.b32.xlu0 %v517, 8
      %v875 = vpop.permute.xlu0 %874
      %876 = vrot.lane.b32.xlu0 %v518, 8
      %v877 = vpop.permute.xlu0 %876
      %878 = vrot.lane.b32.xlu0 %v521, 8
      %v879 = vpop.permute.xlu0 %878
      %880 = vrot.lane.b32.xlu0 %v522, 8
      %v881 = vpop.permute.xlu0 %880
      %882 = vrot.lane.b32.xlu0 %v525, 8
      %v883 = vpop.permute.xlu0 %882
      %884 = vrot.lane.b32.xlu0 %v526, 8
      %v885 = vpop.permute.xlu0 %884
      %886 = vrot.lane.b32.xlu0 %v529, 8
      %v887 = vpop.permute.xlu0 %886
      %888 = vrot.lane.b32.xlu0 %v530, 8
      %v889 = vpop.permute.xlu0 %888
      %890 = vrot.lane.b32.xlu0 %v533, 8
      %v891 = vpop.permute.xlu0 %890
      %892 = vrot.lane.b32.xlu0 %v534, 8
      %v893 = vpop.permute.xlu0 %892
      %926 = vrot.lane.b32.xlu0 %v724, 16
      %v927 = vpop.permute.xlu0 %926
      %928 = vrot.lane.b32.xlu0 %v726, 16
      %v929 = vpop.permute.xlu0 %928
      %930 = vrot.lane.b32.xlu0 %v729, 16
      %v931 = vpop.permute.xlu0 %930
      %932 = vrot.lane.b32.xlu0 %v731, 16
      %v933 = vpop.permute.xlu0 %932
      %934 = vrot.lane.b32.xlu0 %v734, 16
      %v935 = vpop.permute.xlu0 %934
      %936 = vrot.lane.b32.xlu0 %v736, 16
      %v937 = vpop.permute.xlu0 %936
      %938 = vrot.lane.b32.xlu0 %v739, 16
      %v939 = vpop.permute.xlu0 %938
      %940 = vrot.lane.b32.xlu0 %v741, 16
      %v941 = vpop.permute.xlu0 %940
      %942 = vrot.lane.b32.xlu0 %v744, 16
      %v943 = vpop.permute.xlu0 %942
      %944 = vrot.lane.b32.xlu0 %v746, 16
      %v945 = vpop.permute.xlu0 %944
      %946 = vrot.lane.b32.xlu0 %v749, 16
      %v947 = vpop.permute.xlu0 %946
      %948 = vrot.lane.b32.xlu0 %v751, 16
      %v949 = vpop.permute.xlu0 %948
      %950 = vrot.lane.b32.xlu0 %v754, 16
      %v951 = vpop.permute.xlu0 %950
      %952 = vrot.lane.b32.xlu0 %v756, 16
      %v953 = vpop.permute.xlu0 %952
      %954 = vrot.lane.b32.xlu0 %v759, 16
      %v955 = vpop.permute.xlu0 %954
      %956 = vrot.lane.b32.xlu0 %v761, 16
      %v957 = vpop.permute.xlu0 %956
      %958 = vrot.lane.b32.xlu0 %v764, 16
      %v959 = vpop.permute.xlu0 %958
      %960 = vrot.lane.b32.xlu0 %v766, 16
      %v961 = vpop.permute.xlu0 %960
      %962 = vrot.lane.b32.xlu0 %v769, 16
      %v963 = vpop.permute.xlu0 %962
      %964 = vrot.lane.b32.xlu0 %v771, 16
      %v965 = vpop.permute.xlu0 %964
      %966 = vrot.lane.b32.xlu0 %v774, 16
      %v967 = vpop.permute.xlu0 %966
      %968 = vrot.lane.b32.xlu0 %v776, 16
      %v969 = vpop.permute.xlu0 %968
      %970 = vrot.lane.b32.xlu0 %v779, 16
      %v971 = vpop.permute.xlu0 %970
      %972 = vrot.lane.b32.xlu0 %v781, 16
      %v973 = vpop.permute.xlu0 %972
      %974 = vrot.lane.b32.xlu0 %v784, 16
      %v975 = vpop.permute.xlu0 %974
      %976 = vrot.lane.b32.xlu0 %v786, 16
      %v977 = vpop.permute.xlu0 %976
      %978 = vrot.lane.b32.xlu0 %v789, 16
      %v979 = vpop.permute.xlu0 %978
      %980 = vrot.lane.b32.xlu0 %v791, 16
      %v981 = vpop.permute.xlu0 %980
      %982 = vrot.lane.b32.xlu0 %v794, 16
      %v983 = vpop.permute.xlu0 %982
      %984 = vrot.lane.b32.xlu0 %v796, 16
      %v985 = vpop.permute.xlu0 %984
      %986 = vrot.lane.b32.xlu0 %v799, 16
      %v987 = vpop.permute.xlu0 %986
      %988 = vrot.lane.b32.xlu0 %v801, 16
      %v989 = vpop.permute.xlu0 %988
      %1022 = vrot.lane.b32.xlu0 %v600, 24
      %v1023 = vpop.permute.xlu0 %1022
      %1024 = vrot.lane.b32.xlu0 %v602, 24
      %v1025 = vpop.permute.xlu0 %1024
      %1026 = vrot.lane.b32.xlu0 %v605, 24
      %v1027 = vpop.permute.xlu0 %1026
      %1028 = vrot.lane.b32.xlu0 %v607, 24
      %v1029 = vpop.permute.xlu0 %1028
      %1030 = vrot.lane.b32.xlu0 %v610, 24
      %v1031 = vpop.permute.xlu0 %1030
      %1032 = vrot.lane.b32.xlu0 %v612, 24
      %v1033 = vpop.permute.xlu0 %1032
      %1034 = vrot.lane.b32.xlu0 %v615, 24
      %v1035 = vpop.permute.xlu0 %1034
      %1036 = vrot.lane.b32.xlu0 %v617, 24
      %v1037 = vpop.permute.xlu0 %1036
      %1038 = vrot.lane.b32.xlu0 %v620, 24
      %v1039 = vpop.permute.xlu0 %1038
      %1040 = vrot.lane.b32.xlu0 %v622, 24
      %v1041 = vpop.permute.xlu0 %1040
      %1042 = vrot.lane.b32.xlu0 %v625, 24
      %v1043 = vpop.permute.xlu0 %1042
      %1044 = vrot.lane.b32.xlu0 %v627, 24
      %v1045 = vpop.permute.xlu0 %1044
      %1046 = vrot.lane.b32.xlu0 %v630, 24
      %v1047 = vpop.permute.xlu0 %1046
      %1048 = vrot.lane.b32.xlu0 %v632, 24
      %v1049 = vpop.permute.xlu0 %1048
      %1050 = vrot.lane.b32.xlu0 %v635, 24
      %v1051 = vpop.permute.xlu0 %1050
      %1052 = vrot.lane.b32.xlu0 %v637, 24
      %v1053 = vpop.permute.xlu0 %1052
      %1054 = vrot.lane.b32.xlu0 %v640, 24
      %v1055 = vpop.permute.xlu0 %1054
      %1056 = vrot.lane.b32.xlu0 %v642, 24
      %v1057 = vpop.permute.xlu0 %1056
      %1058 = vrot.lane.b32.xlu0 %v645, 24
      %v1059 = vpop.permute.xlu0 %1058
      %1060 = vrot.lane.b32.xlu0 %v647, 24
      %v1061 = vpop.permute.xlu0 %1060
      %1062 = vrot.lane.b32.xlu0 %v650, 24
      %v1063 = vpop.permute.xlu0 %1062
      %1064 = vrot.lane.b32.xlu0 %v652, 24
      %v1065 = vpop.permute.xlu0 %1064
      %1066 = vrot.lane.b32.xlu0 %v655, 24
      %v1067 = vpop.permute.xlu0 %1066
      %1068 = vrot.lane.b32.xlu0 %v657, 24
      %v1069 = vpop.permute.xlu0 %1068
      %1070 = vrot.lane.b32.xlu0 %v660, 24
      %v1071 = vpop.permute.xlu0 %1070
      %1072 = vrot.lane.b32.xlu0 %v662, 24
      %v1073 = vpop.permute.xlu0 %1072
      %1074 = vrot.lane.b32.xlu0 %v665, 24
      %v1075 = vpop.permute.xlu0 %1074
      %1076 = vrot.lane.b32.xlu0 %v667, 24
      %v1077 = vpop.permute.xlu0 %1076
      %1078 = vrot.lane.b32.xlu0 %v670, 24
      %v1079 = vpop.permute.xlu0 %1078
      %1080 = vrot.lane.b32.xlu0 %v672, 24
      %v1081 = vpop.permute.xlu0 %1080
      %1082 = vrot.lane.b32.xlu0 %v807, 24
      %v1083 = vpop.permute.xlu0 %1082
      %1084 = vrot.lane.b32.xlu0 %v809, 24
      %v1085 = vpop.permute.xlu0 %1084
      %1118 = vrot.lane.b32.xlu0 %v477, 32
      %v1119 = vpop.permute.xlu0 %1118
      %1120 = vrot.lane.b32.xlu0 %v478, 32
      %v1121 = vpop.permute.xlu0 %1120
      %1122 = vrot.lane.b32.xlu0 %v481, 32
      %v1123 = vpop.permute.xlu0 %1122
      %1124 = vrot.lane.b32.xlu0 %v482, 32
      %v1125 = vpop.permute.xlu0 %1124
      %1126 = vrot.lane.b32.xlu0 %v485, 32
      %v1127 = vpop.permute.xlu0 %1126
      %1128 = vrot.lane.b32.xlu0 %v486, 32
      %v1129 = vpop.permute.xlu0 %1128
      %1130 = vrot.lane.b32.xlu0 %v489, 32
      %v1131 = vpop.permute.xlu0 %1130
      %1132 = vrot.lane.b32.xlu0 %v490, 32
      %v1133 = vpop.permute.xlu0 %1132
      %1134 = vrot.lane.b32.xlu0 %v493, 32
      %v1135 = vpop.permute.xlu0 %1134
      %1136 = vrot.lane.b32.xlu0 %v494, 32
      %v1137 = vpop.permute.xlu0 %1136
      %1138 = vrot.lane.b32.xlu0 %v497, 32
      %v1139 = vpop.permute.xlu0 %1138
      %1140 = vrot.lane.b32.xlu0 %v498, 32
      %v1141 = vpop.permute.xlu0 %1140
      %1142 = vrot.lane.b32.xlu0 %v501, 32
      %v1143 = vpop.permute.xlu0 %1142
      %1144 = vrot.lane.b32.xlu0 %v502, 32
      %v1145 = vpop.permute.xlu0 %1144
      %1146 = vrot.lane.b32.xlu0 %v505, 32
      %v1147 = vpop.permute.xlu0 %1146
      %1148 = vrot.lane.b32.xlu0 %v506, 32
      %v1149 = vpop.permute.xlu0 %1148
      %1150 = vrot.lane.b32.xlu0 %v509, 32
      %v1151 = vpop.permute.xlu0 %1150
      %1152 = vrot.lane.b32.xlu0 %v510, 32
      %v1153 = vpop.permute.xlu0 %1152
      %1154 = vrot.lane.b32.xlu0 %v513, 32
      %v1155 = vpop.permute.xlu0 %1154
      %1156 = vrot.lane.b32.xlu0 %v514, 32
      %v1157 = vpop.permute.xlu0 %1156
      %1158 = vrot.lane.b32.xlu0 %v517, 32
      %v1159 = vpop.permute.xlu0 %1158
      %1160 = vrot.lane.b32.xlu0 %v518, 32
      %v1161 = vpop.permute.xlu0 %1160
      %1162 = vrot.lane.b32.xlu0 %v521, 32
      %v1163 = vpop.permute.xlu0 %1162
      %1164 = vrot.lane.b32.xlu0 %v522, 32
      %v1165 = vpop.permute.xlu0 %1164
      %1166 = vrot.lane.b32.xlu0 %v525, 32
      %v1167 = vpop.permute.xlu0 %1166
      %1168 = vrot.lane.b32.xlu0 %v526, 32
      %v1169 = vpop.permute.xlu0 %1168
      %1170 = vrot.lane.b32.xlu0 %v529, 32
      %v1171 = vpop.permute.xlu0 %1170
      %1172 = vrot.lane.b32.xlu0 %v530, 32
      %v1173 = vpop.permute.xlu0 %1172
      %1174 = vrot.lane.b32.xlu0 %v533, 32
      %v1175 = vpop.permute.xlu0 %1174
      %1176 = vrot.lane.b32.xlu0 %v534, 32
      %v1177 = vpop.permute.xlu0 %1176
      %1178 = vrot.lane.b32.xlu0 %v537, 32
      %v1179 = vpop.permute.xlu0 %1178
      %1180 = vrot.lane.b32.xlu0 %v538, 32
      %v1181 = vpop.permute.xlu0 %1180
      %1214 = vrot.lane.b32.xlu0 %v729, 40
      %v1215 = vpop.permute.xlu0 %1214
      %1216 = vrot.lane.b32.xlu0 %v731, 40
      %v1217 = vpop.permute.xlu0 %1216
      %1218 = vrot.lane.b32.xlu0 %v734, 40
      %v1219 = vpop.permute.xlu0 %1218
      %1220 = vrot.lane.b32.xlu0 %v736, 40
      %v1221 = vpop.permute.xlu0 %1220
      %1222 = vrot.lane.b32.xlu0 %v739, 40
      %v1223 = vpop.permute.xlu0 %1222
      %1224 = vrot.lane.b32.xlu0 %v741, 40
      %v1225 = vpop.permute.xlu0 %1224
      %1226 = vrot.lane.b32.xlu0 %v744, 40
      %v1227 = vpop.permute.xlu0 %1226
      %1228 = vrot.lane.b32.xlu0 %v746, 40
      %v1229 = vpop.permute.xlu0 %1228
      %1230 = vrot.lane.b32.xlu0 %v749, 40
      %v1231 = vpop.permute.xlu0 %1230
      %1232 = vrot.lane.b32.xlu0 %v751, 40
      %v1233 = vpop.permute.xlu0 %1232
      %1234 = vrot.lane.b32.xlu0 %v754, 40
      %v1235 = vpop.permute.xlu0 %1234
      %1236 = vrot.lane.b32.xlu0 %v756, 40
      %v1237 = vpop.permute.xlu0 %1236
      %1238 = vrot.lane.b32.xlu0 %v759, 40
      %v1239 = vpop.permute.xlu0 %1238
      %1240 = vrot.lane.b32.xlu0 %v761, 40
      %v1241 = vpop.permute.xlu0 %1240
      %1242 = vrot.lane.b32.xlu0 %v764, 40
      %v1243 = vpop.permute.xlu0 %1242
      %1244 = vrot.lane.b32.xlu0 %v766, 40
      %v1245 = vpop.permute.xlu0 %1244
      %1246 = vrot.lane.b32.xlu0 %v769, 40
      %v1247 = vpop.permute.xlu0 %1246
      %1248 = vrot.lane.b32.xlu0 %v771, 40
      %v1249 = vpop.permute.xlu0 %1248
      %1250 = vrot.lane.b32.xlu0 %v774, 40
      %v1251 = vpop.permute.xlu0 %1250
      %1252 = vrot.lane.b32.xlu0 %v776, 40
      %v1253 = vpop.permute.xlu0 %1252
      %1254 = vrot.lane.b32.xlu0 %v779, 40
      %v1255 = vpop.permute.xlu0 %1254
      %1256 = vrot.lane.b32.xlu0 %v781, 40
      %v1257 = vpop.permute.xlu0 %1256
      %1258 = vrot.lane.b32.xlu0 %v784, 40
      %v1259 = vpop.permute.xlu0 %1258
      %1260 = vrot.lane.b32.xlu0 %v786, 40
      %v1261 = vpop.permute.xlu0 %1260
      %1262 = vrot.lane.b32.xlu0 %v789, 40
      %v1263 = vpop.permute.xlu0 %1262
      %1264 = vrot.lane.b32.xlu0 %v791, 40
      %v1265 = vpop.permute.xlu0 %1264
      %1266 = vrot.lane.b32.xlu0 %v794, 40
      %v1267 = vpop.permute.xlu0 %1266
      %1268 = vrot.lane.b32.xlu0 %v796, 40
      %v1269 = vpop.permute.xlu0 %1268
      %1270 = vrot.lane.b32.xlu0 %v799, 40
      %v1271 = vpop.permute.xlu0 %1270
      %1272 = vrot.lane.b32.xlu0 %v801, 40
      %v1273 = vpop.permute.xlu0 %1272
      %1274 = vrot.lane.b32.xlu0 %v813, 40
      %v1275 = vpop.permute.xlu0 %1274
      %1276 = vrot.lane.b32.xlu0 %v815, 40
      %v1277 = vpop.permute.xlu0 %1276
      %1310 = vrot.lane.b32.xlu0 %v605, 48
      %v1311 = vpop.permute.xlu0 %1310
      %1312 = vrot.lane.b32.xlu0 %v607, 48
      %v1313 = vpop.permute.xlu0 %1312
      %1314 = vrot.lane.b32.xlu0 %v610, 48
      %v1315 = vpop.permute.xlu0 %1314
      %1316 = vrot.lane.b32.xlu0 %v612, 48
      %v1317 = vpop.permute.xlu0 %1316
      %1318 = vrot.lane.b32.xlu0 %v615, 48
      %v1319 = vpop.permute.xlu0 %1318
      %1320 = vrot.lane.b32.xlu0 %v617, 48
      %v1321 = vpop.permute.xlu0 %1320
      %1322 = vrot.lane.b32.xlu0 %v620, 48
      %v1323 = vpop.permute.xlu0 %1322
      %1324 = vrot.lane.b32.xlu0 %v622, 48
      %v1325 = vpop.permute.xlu0 %1324
      %1326 = vrot.lane.b32.xlu0 %v625, 48
      %v1327 = vpop.permute.xlu0 %1326
      %1328 = vrot.lane.b32.xlu0 %v627, 48
      %v1329 = vpop.permute.xlu0 %1328
      %1330 = vrot.lane.b32.xlu0 %v630, 48
      %v1331 = vpop.permute.xlu0 %1330
      %1332 = vrot.lane.b32.xlu0 %v632, 48
      %v1333 = vpop.permute.xlu0 %1332
      %1334 = vrot.lane.b32.xlu0 %v635, 48
      %v1335 = vpop.permute.xlu0 %1334
      %1336 = vrot.lane.b32.xlu0 %v637, 48
      %v1337 = vpop.permute.xlu0 %1336
      %1338 = vrot.lane.b32.xlu0 %v640, 48
      %v1339 = vpop.permute.xlu0 %1338
      %1340 = vrot.lane.b32.xlu0 %v642, 48
      %v1341 = vpop.permute.xlu0 %1340
      %1342 = vrot.lane.b32.xlu0 %v645, 48
      %v1343 = vpop.permute.xlu0 %1342
      %1344 = vrot.lane.b32.xlu0 %v647, 48
      %v1345 = vpop.permute.xlu0 %1344
      %1346 = vrot.lane.b32.xlu0 %v650, 48
      %v1347 = vpop.permute.xlu0 %1346
      %1348 = vrot.lane.b32.xlu0 %v652, 48
      %v1349 = vpop.permute.xlu0 %1348
      %1350 = vrot.lane.b32.xlu0 %v655, 48
      %v1351 = vpop.permute.xlu0 %1350
      %1352 = vrot.lane.b32.xlu0 %v657, 48
      %v1353 = vpop.permute.xlu0 %1352
      %1354 = vrot.lane.b32.xlu0 %v660, 48
      %v1355 = vpop.permute.xlu0 %1354
      %1356 = vrot.lane.b32.xlu0 %v662, 48
      %v1357 = vpop.permute.xlu0 %1356
      %1358 = vrot.lane.b32.xlu0 %v665, 48
      %v1359 = vpop.permute.xlu0 %1358
      %1360 = vrot.lane.b32.xlu0 %v667, 48
      %v1361 = vpop.permute.xlu0 %1360
      %1362 = vrot.lane.b32.xlu0 %v670, 48
      %v1363 = vpop.permute.xlu0 %1362
      %1364 = vrot.lane.b32.xlu0 %v672, 48
      %v1365 = vpop.permute.xlu0 %1364
      %1366 = vrot.lane.b32.xlu0 %v807, 48
      %v1367 = vpop.permute.xlu0 %1366
      %1368 = vrot.lane.b32.xlu0 %v809, 48
      %v1369 = vpop.permute.xlu0 %1368
      %1370 = vrot.lane.b32.xlu0 %v821, 48
      %v1371 = vpop.permute.xlu0 %1370
      %1372 = vrot.lane.b32.xlu0 %v823, 48
      %v1373 = vpop.permute.xlu0 %1372
      %1406 = vrot.lane.b32.xlu0 %v481, 56
      %v1407 = vpop.permute.xlu0 %1406
      %1408 = vrot.lane.b32.xlu0 %v482, 56
      %v1409 = vpop.permute.xlu0 %1408
      %1410 = vrot.lane.b32.xlu0 %v485, 56
      %v1411 = vpop.permute.xlu0 %1410
      %1412 = vrot.lane.b32.xlu0 %v486, 56
      %v1413 = vpop.permute.xlu0 %1412
      %1414 = vrot.lane.b32.xlu0 %v489, 56
      %v1415 = vpop.permute.xlu0 %1414
      %1416 = vrot.lane.b32.xlu0 %v490, 56
      %v1417 = vpop.permute.xlu0 %1416
      %1418 = vrot.lane.b32.xlu0 %v493, 56
      %v1419 = vpop.permute.xlu0 %1418
      %1420 = vrot.lane.b32.xlu0 %v494, 56
      %v1421 = vpop.permute.xlu0 %1420
      %1422 = vrot.lane.b32.xlu0 %v497, 56
      %v1423 = vpop.permute.xlu0 %1422
      %1424 = vrot.lane.b32.xlu0 %v498, 56
      %v1425 = vpop.permute.xlu0 %1424
      %1426 = vrot.lane.b32.xlu0 %v501, 56
      %v1427 = vpop.permute.xlu0 %1426
      %1428 = vrot.lane.b32.xlu0 %v502, 56
      %v1429 = vpop.permute.xlu0 %1428
      %1430 = vrot.lane.b32.xlu0 %v505, 56
      %v1431 = vpop.permute.xlu0 %1430
      %1432 = vrot.lane.b32.xlu0 %v506, 56
      %v1433 = vpop.permute.xlu0 %1432
      %1434 = vrot.lane.b32.xlu0 %v509, 56
      %v1435 = vpop.permute.xlu0 %1434
      %1436 = vrot.lane.b32.xlu0 %v510, 56
      %v1437 = vpop.permute.xlu0 %1436
      %1438 = vrot.lane.b32.xlu0 %v513, 56
      %v1439 = vpop.permute.xlu0 %1438
      %1440 = vrot.lane.b32.xlu0 %v514, 56
      %v1441 = vpop.permute.xlu0 %1440
      %1442 = vrot.lane.b32.xlu0 %v517, 56
      %v1443 = vpop.permute.xlu0 %1442
      %1444 = vrot.lane.b32.xlu0 %v518, 56
      %v1445 = vpop.permute.xlu0 %1444
      %1446 = vrot.lane.b32.xlu0 %v521, 56
      %v1447 = vpop.permute.xlu0 %1446
      %1448 = vrot.lane.b32.xlu0 %v522, 56
      %v1449 = vpop.permute.xlu0 %1448
      %1450 = vrot.lane.b32.xlu0 %v525, 56
      %v1451 = vpop.permute.xlu0 %1450
      %1452 = vrot.lane.b32.xlu0 %v526, 56
      %v1453 = vpop.permute.xlu0 %1452
      %1454 = vrot.lane.b32.xlu0 %v529, 56
      %v1455 = vpop.permute.xlu0 %1454
      %1456 = vrot.lane.b32.xlu0 %v530, 56
      %v1457 = vpop.permute.xlu0 %1456
      %1458 = vrot.lane.b32.xlu0 %v533, 56
      %v1459 = vpop.permute.xlu0 %1458
      %1460 = vrot.lane.b32.xlu0 %v534, 56
      %v1461 = vpop.permute.xlu0 %1460
      %1462 = vrot.lane.b32.xlu0 %v537, 56
      %v1463 = vpop.permute.xlu0 %1462
      %1464 = vrot.lane.b32.xlu0 %v538, 56
      %v1465 = vpop.permute.xlu0 %1464
      %1466 = vrot.lane.b32.xlu0 %v541, 56
      %v1467 = vpop.permute.xlu0 %1466
      %1468 = vrot.lane.b32.xlu0 %v542, 56
      %v1469 = vpop.permute.xlu0 %1468
      %1502 = vrot.lane.b32.xlu0 %v734, 64
      %v1503 = vpop.permute.xlu0 %1502
      %1504 = vrot.lane.b32.xlu0 %v736, 64
      %v1505 = vpop.permute.xlu0 %1504
      %1506 = vrot.lane.b32.xlu0 %v739, 64
      %v1507 = vpop.permute.xlu0 %1506
      %1508 = vrot.lane.b32.xlu0 %v741, 64
      %v1509 = vpop.permute.xlu0 %1508
      %1510 = vrot.lane.b32.xlu0 %v744, 64
      %v1511 = vpop.permute.xlu0 %1510
      %1512 = vrot.lane.b32.xlu0 %v746, 64
      %v1513 = vpop.permute.xlu0 %1512
      %1514 = vrot.lane.b32.xlu0 %v749, 64
      %v1515 = vpop.permute.xlu0 %1514
      %1516 = vrot.lane.b32.xlu0 %v751, 64
      %v1517 = vpop.permute.xlu0 %1516
      %1518 = vrot.lane.b32.xlu0 %v754, 64
      %v1519 = vpop.permute.xlu0 %1518
      %1520 = vrot.lane.b32.xlu0 %v756, 64
      %v1521 = vpop.permute.xlu0 %1520
      %1522 = vrot.lane.b32.xlu0 %v759, 64
      %v1523 = vpop.permute.xlu0 %1522
      %1524 = vrot.lane.b32.xlu0 %v761, 64
      %v1525 = vpop.permute.xlu0 %1524
      %1526 = vrot.lane.b32.xlu0 %v764, 64
      %v1527 = vpop.permute.xlu0 %1526
      %1528 = vrot.lane.b32.xlu0 %v766, 64
      %v1529 = vpop.permute.xlu0 %1528
      %1530 = vrot.lane.b32.xlu0 %v769, 64
      %v1531 = vpop.permute.xlu0 %1530
      %1532 = vrot.lane.b32.xlu0 %v771, 64
      %v1533 = vpop.permute.xlu0 %1532
      %1534 = vrot.lane.b32.xlu0 %v774, 64
      %v1535 = vpop.permute.xlu0 %1534
      %1536 = vrot.lane.b32.xlu0 %v776, 64
      %v1537 = vpop.permute.xlu0 %1536
      %1538 = vrot.lane.b32.xlu0 %v779, 64
      %v1539 = vpop.permute.xlu0 %1538
      %1540 = vrot.lane.b32.xlu0 %v781, 64
      %v1541 = vpop.permute.xlu0 %1540
      %1542 = vrot.lane.b32.xlu0 %v784, 64
      %v1543 = vpop.permute.xlu0 %1542
      %1544 = vrot.lane.b32.xlu0 %v786, 64
      %v1545 = vpop.permute.xlu0 %1544
      %1546 = vrot.lane.b32.xlu0 %v789, 64
      %v1547 = vpop.permute.xlu0 %1546
      %1548 = vrot.lane.b32.xlu0 %v791, 64
      %v1549 = vpop.permute.xlu0 %1548
      %1550 = vrot.lane.b32.xlu0 %v794, 64
      %v1551 = vpop.permute.xlu0 %1550
      %1552 = vrot.lane.b32.xlu0 %v796, 64
      %v1553 = vpop.permute.xlu0 %1552
      %1554 = vrot.lane.b32.xlu0 %v799, 64
      %v1555 = vpop.permute.xlu0 %1554
      %1556 = vrot.lane.b32.xlu0 %v801, 64
      %v1557 = vpop.permute.xlu0 %1556
      %1558 = vrot.lane.b32.xlu0 %v813, 64
      %v1559 = vpop.permute.xlu0 %1558
      %1560 = vrot.lane.b32.xlu0 %v815, 64
      %v1561 = vpop.permute.xlu0 %1560
      %1562 = vrot.lane.b32.xlu0 %v827, 64
      %v1563 = vpop.permute.xlu0 %1562
      %1564 = vrot.lane.b32.xlu0 %v829, 64
      %v1565 = vpop.permute.xlu0 %1564
      %v1598 = vsel %vm439, %v595, %v831
      %v1599 = vsel %vm439, %v597, %v833
      %v1600 = vsel %vm439, %v600, %v835
      %v1601 = vsel %vm439, %v602, %v837
      %v1602 = vsel %vm439, %v605, %v839
      %v1603 = vsel %vm439, %v607, %v841
      %v1604 = vsel %vm439, %v610, %v843
      %v1605 = vsel %vm439, %v612, %v845
      %v1606 = vsel %vm439, %v615, %v847
      %v1607 = vsel %vm439, %v617, %v849
      %v1608 = vsel %vm439, %v620, %v851
      %v1609 = vsel %vm439, %v622, %v853
      %v1610 = vsel %vm439, %v625, %v855
      %v1611 = vsel %vm439, %v627, %v857
      %v1612 = vsel %vm439, %v630, %v859
      %v1613 = vsel %vm439, %v632, %v861
      %v1614 = vsel %vm439, %v635, %v863
      %v1615 = vsel %vm439, %v637, %v865
      %v1616 = vsel %vm439, %v640, %v867
      %v1617 = vsel %vm439, %v642, %v869
      %v1618 = vsel %vm439, %v645, %v871
      %v1619 = vsel %vm439, %v647, %v873
      %v1620 = vsel %vm439, %v650, %v875
      %v1621 = vsel %vm439, %v652, %v877
      %v1622 = vsel %vm439, %v655, %v879
      %v1623 = vsel %vm439, %v657, %v881
      %v1624 = vsel %vm439, %v660, %v883
      %v1625 = vsel %vm439, %v662, %v885
      %v1626 = vsel %vm439, %v665, %v887
      %v1627 = vsel %vm439, %v667, %v889
      %v1628 = vsel %vm439, %v670, %v891
      %v1629 = vsel %vm439, %v672, %v893
      %vm1630 = vcmask 130048
      %v1631 = vsel %vm1630, %v1598, %v927
      %v1632 = vsel %vm1630, %v1599, %v929
      %v1633 = vsel %vm1630, %v1600, %v931
      %v1634 = vsel %vm1630, %v1601, %v933
      %v1635 = vsel %vm1630, %v1602, %v935
      %v1636 = vsel %vm1630, %v1603, %v937
      %v1637 = vsel %vm1630, %v1604, %v939
      %v1638 = vsel %vm1630, %v1605, %v941
      %v1639 = vsel %vm1630, %v1606, %v943
      %v1640 = vsel %vm1630, %v1607, %v945
      %v1641 = vsel %vm1630, %v1608, %v947
      %v1642 = vsel %vm1630, %v1609, %v949
      %v1643 = vsel %vm1630, %v1610, %v951
      %v1644 = vsel %vm1630, %v1611, %v953
      %v1645 = vsel %vm1630, %v1612, %v955
      %v1646 = vsel %vm1630, %v1613, %v957
      %v1647 = vsel %vm1630, %v1614, %v959
      %v1648 = vsel %vm1630, %v1615, %v961
      %v1649 = vsel %vm1630, %v1616, %v963
      %v1650 = vsel %vm1630, %v1617, %v965
      %v1651 = vsel %vm1630, %v1618, %v967
      %v1652 = vsel %vm1630, %v1619, %v969
      %v1653 = vsel %vm1630, %v1620, %v971
      %v1654 = vsel %vm1630, %v1621, %v973
      %v1655 = vsel %vm1630, %v1622, %v975
      %v1656 = vsel %vm1630, %v1623, %v977
      %v1657 = vsel %vm1630, %v1624, %v979
      %v1658 = vsel %vm1630, %v1625, %v981
      %v1659 = vsel %vm1630, %v1626, %v983
      %v1660 = vsel %vm1630, %v1627, %v985
      %v1661 = vsel %vm1630, %v1628, %v987
      %v1662 = vsel %vm1630, %v1629, %v989
      %vm1663 = vcmask 195584
      %v1664 = vsel %vm1663, %v1631, %v1023
      %v1665 = vsel %vm1663, %v1632, %v1025
      %v1666 = vsel %vm1663, %v1633, %v1027
      %v1667 = vsel %vm1663, %v1634, %v1029
      %v1668 = vsel %vm1663, %v1635, %v1031
      %v1669 = vsel %vm1663, %v1636, %v1033
      %v1670 = vsel %vm1663, %v1637, %v1035
      %v1671 = vsel %vm1663, %v1638, %v1037
      %v1672 = vsel %vm1663, %v1639, %v1039
      %v1673 = vsel %vm1663, %v1640, %v1041
      %v1674 = vsel %vm1663, %v1641, %v1043
      %v1675 = vsel %vm1663, %v1642, %v1045
      %v1676 = vsel %vm1663, %v1643, %v1047
      %v1677 = vsel %vm1663, %v1644, %v1049
      %v1678 = vsel %vm1663, %v1645, %v1051
      %v1679 = vsel %vm1663, %v1646, %v1053
      %v1680 = vsel %vm1663, %v1647, %v1055
      %v1681 = vsel %vm1663, %v1648, %v1057
      %v1682 = vsel %vm1663, %v1649, %v1059
      %v1683 = vsel %vm1663, %v1650, %v1061
      %v1684 = vsel %vm1663, %v1651, %v1063
      %v1685 = vsel %vm1663, %v1652, %v1065
      %v1686 = vsel %vm1663, %v1653, %v1067
      %v1687 = vsel %vm1663, %v1654, %v1069
      %v1688 = vsel %vm1663, %v1655, %v1071
      %v1689 = vsel %vm1663, %v1656, %v1073
      %v1690 = vsel %vm1663, %v1657, %v1075
      %v1691 = vsel %vm1663, %v1658, %v1077
      %v1692 = vsel %vm1663, %v1659, %v1079
      %v1693 = vsel %vm1663, %v1660, %v1081
      %v1694 = vsel %vm1663, %v1661, %v1083
      %v1695 = vsel %vm1663, %v1662, %v1085
      %v1696 = vsel %vm333, %v1664, %v1119
      %v1697 = vsel %vm333, %v1665, %v1121
      %v1698 = vsel %vm333, %v1666, %v1123
      %v1699 = vsel %vm333, %v1667, %v1125
      %v1700 = vsel %vm333, %v1668, %v1127
      %v1701 = vsel %vm333, %v1669, %v1129
      %v1702 = vsel %vm333, %v1670, %v1131
      %v1703 = vsel %vm333, %v1671, %v1133
      %v1704 = vsel %vm333, %v1672, %v1135
      %v1705 = vsel %vm333, %v1673, %v1137
      %v1706 = vsel %vm333, %v1674, %v1139
      %v1707 = vsel %vm333, %v1675, %v1141
      %v1708 = vsel %vm333, %v1676, %v1143
      %v1709 = vsel %vm333, %v1677, %v1145
      %v1710 = vsel %vm333, %v1678, %v1147
      %v1711 = vsel %vm333, %v1679, %v1149
      %v1712 = vsel %vm333, %v1680, %v1151
      %v1713 = vsel %vm333, %v1681, %v1153
      %v1714 = vsel %vm333, %v1682, %v1155
      %v1715 = vsel %vm333, %v1683, %v1157
      %v1716 = vsel %vm333, %v1684, %v1159
      %v1717 = vsel %vm333, %v1685, %v1161
      %v1718 = vsel %vm333, %v1686, %v1163
      %v1719 = vsel %vm333, %v1687, %v1165
      %v1720 = vsel %vm333, %v1688, %v1167
      %v1721 = vsel %vm333, %v1689, %v1169
      %v1722 = vsel %vm333, %v1690, %v1171
      %v1723 = vsel %vm333, %v1691, %v1173
      %v1724 = vsel %vm333, %v1692, %v1175
      %v1725 = vsel %vm333, %v1693, %v1177
      %v1726 = vsel %vm333, %v1694, %v1179
      %v1727 = vsel %vm333, %v1695, %v1181
      %vm1728 = vcmask 326656
      %v1729 = vsel %vm1728, %v1696, %v1215
      %v1730 = vsel %vm1728, %v1697, %v1217
      %v1731 = vsel %vm1728, %v1698, %v1219
      %v1732 = vsel %vm1728, %v1699, %v1221
      %v1733 = vsel %vm1728, %v1700, %v1223
      %v1734 = vsel %vm1728, %v1701, %v1225
      %v1735 = vsel %vm1728, %v1702, %v1227
      %v1736 = vsel %vm1728, %v1703, %v1229
      %v1737 = vsel %vm1728, %v1704, %v1231
      %v1738 = vsel %vm1728, %v1705, %v1233
      %v1739 = vsel %vm1728, %v1706, %v1235
      %v1740 = vsel %vm1728, %v1707, %v1237
      %v1741 = vsel %vm1728, %v1708, %v1239
      %v1742 = vsel %vm1728, %v1709, %v1241
      %v1743 = vsel %vm1728, %v1710, %v1243
      %v1744 = vsel %vm1728, %v1711, %v1245
      %v1745 = vsel %vm1728, %v1712, %v1247
      %v1746 = vsel %vm1728, %v1713, %v1249
      %v1747 = vsel %vm1728, %v1714, %v1251
      %v1748 = vsel %vm1728, %v1715, %v1253
      %v1749 = vsel %vm1728, %v1716, %v1255
      %v1750 = vsel %vm1728, %v1717, %v1257
      %v1751 = vsel %vm1728, %v1718, %v1259
      %v1752 = vsel %vm1728, %v1719, %v1261
      %v1753 = vsel %vm1728, %v1720, %v1263
      %v1754 = vsel %vm1728, %v1721, %v1265
      %v1755 = vsel %vm1728, %v1722, %v1267
      %v1756 = vsel %vm1728, %v1723, %v1269
      %v1757 = vsel %vm1728, %v1724, %v1271
      %v1758 = vsel %vm1728, %v1725, %v1273
      %v1759 = vsel %vm1728, %v1726, %v1275
      %v1760 = vsel %vm1728, %v1727, %v1277
      %vm1761 = vcmask 392192
      %v1762 = vsel %vm1761, %v1729, %v1311
      %v1763 = vsel %vm1761, %v1730, %v1313
      %v1764 = vsel %vm1761, %v1731, %v1315
      %v1765 = vsel %vm1761, %v1732, %v1317
      %v1766 = vsel %vm1761, %v1733, %v1319
      %v1767 = vsel %vm1761, %v1734, %v1321
      %v1768 = vsel %vm1761, %v1735, %v1323
      %v1769 = vsel %vm1761, %v1736, %v1325
      %v1770 = vsel %vm1761, %v1737, %v1327
      %v1771 = vsel %vm1761, %v1738, %v1329
      %v1772 = vsel %vm1761, %v1739, %v1331
      %v1773 = vsel %vm1761, %v1740, %v1333
      %v1774 = vsel %vm1761, %v1741, %v1335
      %v1775 = vsel %vm1761, %v1742, %v1337
      %v1776 = vsel %vm1761, %v1743, %v1339
      %v1777 = vsel %vm1761, %v1744, %v1341
      %v1778 = vsel %vm1761, %v1745, %v1343
      %v1779 = vsel %vm1761, %v1746, %v1345
      %v1780 = vsel %vm1761, %v1747, %v1347
      %v1781 = vsel %vm1761, %v1748, %v1349
      %v1782 = vsel %vm1761, %v1749, %v1351
      %v1783 = vsel %vm1761, %v1750, %v1353
      %v1784 = vsel %vm1761, %v1751, %v1355
      %v1785 = vsel %vm1761, %v1752, %v1357
      %v1786 = vsel %vm1761, %v1753, %v1359
      %v1787 = vsel %vm1761, %v1754, %v1361
      %v1788 = vsel %vm1761, %v1755, %v1363
      %v1789 = vsel %vm1761, %v1756, %v1365
      %v1790 = vsel %vm1761, %v1757, %v1367
      %v1791 = vsel %vm1761, %v1758, %v1369
      %v1792 = vsel %vm1761, %v1759, %v1371
      %v1793 = vsel %vm1761, %v1760, %v1373
      %vm1794 = vcmask 457728
      %v1795 = vsel %vm1794, %v1762, %v1407
      %v1796 = vsel %vm1794, %v1763, %v1409
      %v1797 = vsel %vm1794, %v1764, %v1411
      %v1798 = vsel %vm1794, %v1765, %v1413
      %v1799 = vsel %vm1794, %v1766, %v1415
      %v1800 = vsel %vm1794, %v1767, %v1417
      %v1801 = vsel %vm1794, %v1768, %v1419
      %v1802 = vsel %vm1794, %v1769, %v1421
      %v1803 = vsel %vm1794, %v1770, %v1423
      %v1804 = vsel %vm1794, %v1771, %v1425
      %v1805 = vsel %vm1794, %v1772, %v1427
      %v1806 = vsel %vm1794, %v1773, %v1429
      %v1807 = vsel %vm1794, %v1774, %v1431
      %v1808 = vsel %vm1794, %v1775, %v1433
      %v1809 = vsel %vm1794, %v1776, %v1435
      %v1810 = vsel %vm1794, %v1777, %v1437
      %v1811 = vsel %vm1794, %v1778, %v1439
      %v1812 = vsel %vm1794, %v1779, %v1441
      %v1813 = vsel %vm1794, %v1780, %v1443
      %v1814 = vsel %vm1794, %v1781, %v1445
      %v1815 = vsel %vm1794, %v1782, %v1447
      %v1816 = vsel %vm1794, %v1783, %v1449
      %v1817 = vsel %vm1794, %v1784, %v1451
      %v1818 = vsel %vm1794, %v1785, %v1453
      %v1819 = vsel %vm1794, %v1786, %v1455
      %v1820 = vsel %vm1794, %v1787, %v1457
      %v1821 = vsel %vm1794, %v1788, %v1459
      %v1822 = vsel %vm1794, %v1789, %v1461
      %v1823 = vsel %vm1794, %v1790, %v1463
      %v1824 = vsel %vm1794, %v1791, %v1465
      %v1825 = vsel %vm1794, %v1792, %v1467
      %v1826 = vsel %vm1794, %v1793, %v1469
      %vm1827 = vcmask 523264
      %v1828 = vsel %vm1827, %v1795, %v1503
      %v1829 = vsel %vm1827, %v1796, %v1505
      %v1830 = vsel %vm1827, %v1797, %v1507
      %v1831 = vsel %vm1827, %v1798, %v1509
      %v1832 = vsel %vm1827, %v1799, %v1511
      %v1833 = vsel %vm1827, %v1800, %v1513
      %v1834 = vsel %vm1827, %v1801, %v1515
      %v1835 = vsel %vm1827, %v1802, %v1517
      %v1836 = vsel %vm1827, %v1803, %v1519
      %v1837 = vsel %vm1827, %v1804, %v1521
      %v1838 = vsel %vm1827, %v1805, %v1523
      %v1839 = vsel %vm1827, %v1806, %v1525
      %v1840 = vsel %vm1827, %v1807, %v1527
      %v1841 = vsel %vm1827, %v1808, %v1529
      %v1842 = vsel %vm1827, %v1809, %v1531
      %v1843 = vsel %vm1827, %v1810, %v1533
      %v1844 = vsel %vm1827, %v1811, %v1535
      %v1845 = vsel %vm1827, %v1812, %v1537
      %v1846 = vsel %vm1827, %v1813, %v1539
      %v1847 = vsel %vm1827, %v1814, %v1541
      %v1848 = vsel %vm1827, %v1815, %v1543
      %v1849 = vsel %vm1827, %v1816, %v1545
      %v1850 = vsel %vm1827, %v1817, %v1547
      %v1851 = vsel %vm1827, %v1818, %v1549
      %v1852 = vsel %vm1827, %v1819, %v1551
      %v1853 = vsel %vm1827, %v1820, %v1553
      %v1854 = vsel %vm1827, %v1821, %v1555
      %v1855 = vsel %vm1827, %v1822, %v1557
      %v1856 = vsel %vm1827, %v1823, %v1559
      %v1857 = vsel %vm1827, %v1824, %v1561
      %v1858 = vsel %vm1827, %v1825, %v1563
      %v1859 = vsel %vm1827, %v1826, %v1565
      %v1860 = vld [vmem:[%s1] sm:$0xff]
      %v1861 = vld [vmem:[%s1 + $0x8] sm:$0xff]
      %v1862 = vld [vmem:[%s1 + $0x10] sm:$0xff]
      %v1863 = vld [vmem:[%s1 + $0x18] sm:$0xff]
      %v1864 = vld [vmem:[%s1 + $0x20] sm:$0xff]
      %v1865 = vld [vmem:[%s1 + $0x28] sm:$0xff]
      %v1866 = vld [vmem:[%s1 + $0x30] sm:$0xff]
      %v1867 = vld [vmem:[%s1 + $0x38] sm:$0xff]
      %v1868 = vld [vmem:[%s1 + $0x40] sm:$0xff]
      %v1869 = vld [vmem:[%s2] sm:$0x1]
      %v1871 = vlaneseq
      %v1872 = vshrl.u32 %v1871, 7
      %v1873 = vsub.s32 0, %v1872
      %v1874 = vrot.slane %v1869, %v1873
      %vm1876 = vcmask 588800
      %v1878 = vsel %vm1876, %v1828, 0
      %v1881 = vsel %vm1876, %v1829, 0
      %v1884 = vsel %vm1876, %v1830, 0
      %v1887 = vsel %vm1876, %v1831, 0
      %v1890 = vsel %vm1876, %v1832, 0
      %v1893 = vsel %vm1876, %v1833, 0
      %v1896 = vsel %vm1876, %v1834, 0
      %v1899 = vsel %vm1876, %v1835, 0
      %v1902 = vsel %vm1876, %v1836, 0
      %v1905 = vsel %vm1876, %v1837, 0
      %v1908 = vsel %vm1876, %v1838, 0
      %v1911 = vsel %vm1876, %v1839, 0
      %v1914 = vsel %vm1876, %v1840, 0
      %v1917 = vsel %vm1876, %v1841, 0
      %v1920 = vsel %vm1876, %v1842, 0
      %v1923 = vsel %vm1876, %v1843, 0
      %v1926 = vsel %vm1876, %v1844, 0
      %v1929 = vsel %vm1876, %v1845, 0
      %v1932 = vsel %vm1876, %v1846, 0
      %v1935 = vsel %vm1876, %v1847, 0
      %v1938 = vsel %vm1876, %v1848, 0
      %v1941 = vsel %vm1876, %v1849, 0
      %v1944 = vsel %vm1876, %v1850, 0
      %v1947 = vsel %vm1876, %v1851, 0
      %v1950 = vsel %vm1876, %v1852, 0
      %v1953 = vsel %vm1876, %v1853, 0
      %v1956 = vsel %vm1876, %v1854, 0
      %v1959 = vsel %vm1876, %v1855, 0
      %v1962 = vsel %vm1876, %v1856, 0
      %v1965 = vsel %vm1876, %v1857, 0
      %v1968 = vsel %vm1876, %v1858, 0
      %v1971 = vsel %vm1876, %v1859, 0
      %1973 = vmatprep.subr.mxu0 0.0
      %1974 = vmatpush1.msra.mxu0 0.0
      %1975 = vmatprep.subr.mxu0 0.0
      %1976 = vmatpush1.msra.mxu0 0.0
      %1977 = vmatprep.subr.mxu0 0.0
      %1978 = vmatpush1.msra.mxu0 0.0
      %1979 = vmatprep.subr.mxu0 0.0
      %1980 = vmatpush1.msra.mxu0 0.0
      %1981 = vmatprep.subr.mxu0 0.0
      %1982 = vmatpush1.msra.mxu0 0.0
      %1983 = vmatprep.subr.mxu0 0.0
      %1984 = vmatpush1.msra.mxu0 0.0
      %1985 = vmatprep.subr.mxu0 0.0
      %1986 = vmatpush1.msra.mxu0 0.0
      %1987 = vmatprep.subr.mxu0 0.0
      %1988 = vmatpush1.msra.mxu0 %v1868
      %1989 = vmatprep.subr.mxu0 0.0
      %1990 = vmatpush1.msra.mxu0 %v1867
      %1991 = vmatprep.subr.mxu0 0.0
      %1992 = vmatpush1.msra.mxu0 %v1866
      %1993 = vmatprep.subr.mxu0 0.0
      %1994 = vmatpush1.msra.mxu0 %v1865
      %1995 = vmatprep.subr.mxu0 0.0
      %1996 = vmatpush1.msra.mxu0 %v1864
      %1997 = vmatprep.subr.mxu0 0.0
      %1998 = vmatpush1.msra.mxu0 %v1863
      %1999 = vmatprep.subr.mxu0 0.0
      %2000 = vmatpush1.msra.mxu0 %v1862
      %2001 = vmatprep.subr.mxu0 0.0
      %2002 = vmatpush1.msra.mxu0 %v1861
      %2003 = vmatprep.subr.mxu0 0.0
      %2004 = vmatpush1.msra.mxu0 %v1860
      %2005 = vmatprep.subr.mxu0 0.0
      %2006 = vmatpush2.msra.mxu0 0.0
      %2007 = vmatprep.subr.mxu0 0.0
      %2008 = vmatpush2.msra.mxu0 0.0
      %2009 = vmatprep.subr.mxu0 0.0
      %2010 = vmatpush2.msra.mxu0 0.0
      %2011 = vmatprep.subr.mxu0 0.0
      %2012 = vmatpush2.msra.mxu0 0.0
      %2013 = vmatprep.subr.mxu0 0.0
      %2014 = vmatpush2.msra.mxu0 0.0
      %2015 = vmatprep.subr.mxu0 0.0
      %2016 = vmatpush2.msra.mxu0 0.0
      %2017 = vmatprep.subr.mxu0 0.0
      %2018 = vmatpush2.msra.mxu0 0.0
      %2019 = vmatprep.subr.mxu0 0.0
      %2020 = vmatpush2.msra.mxu0 0.0
      %2021 = vmatprep.subr.mxu0 0.0
      %2022 = vmatpush2.msra.mxu0 0.0
      %2023 = vmatprep.subr.mxu0 0.0
      %2024 = vmatpush2.msra.mxu0 0.0
      %2025 = vmatprep.subr.mxu0 0.0
      %2026 = vmatpush2.msra.mxu0 0.0
      %2027 = vmatprep.subr.mxu0 0.0
      %2028 = vmatpush2.msra.mxu0 0.0
      %2029 = vmatprep.subr.mxu0 0.0
      %2030 = vmatpush2.msra.mxu0 0.0
      %2031 = vmatprep.subr.mxu0 0.0
      %2032 = vmatpush2.msra.mxu0 0.0
      %2033 = vmatprep.subr.mxu0 0.0
      %2034 = vmatpush2.msra.mxu0 0.0
      %2035 = vmatprep.subr.mxu0 0.0
      %2036 = vmatpush2.msra.mxu0 0.0
      %2037 = vmatprep.mubr.f32.mxu0 0.0
      %2038 = vmatmul.mubr.f32.gmra.mxu0 %v1878
      %v2039 = vpop.f32.mrf.mxu0
      %v2040 = vadd.f32 %v1874, %v2039
      %v2041 = vpop.f32.mrf.mxu0
      %2042 = vmatprep.mubr.f32.mxu0 0.0
      %2043 = vmatmul.mubr.f32.gmra.mxu0 %v1881
      %v2044 = vpop.f32.mrf.mxu0
      %v2045 = vadd.f32 %v1874, %v2044
      %v2046 = vpop.f32.mrf.mxu0
      %2047 = vmatprep.mubr.f32.mxu0 0.0
      %2048 = vmatmul.mubr.f32.gmra.mxu0 %v1884
      %v2049 = vpop.f32.mrf.mxu0
      %v2050 = vadd.f32 %v1874, %v2049
      %v2051 = vpop.f32.mrf.mxu0
      %2052 = vmatprep.mubr.f32.mxu0 0.0
      %2053 = vmatmul.mubr.f32.gmra.mxu0 %v1887
      %v2054 = vpop.f32.mrf.mxu0
      %v2055 = vadd.f32 %v1874, %v2054
      %v2056 = vpop.f32.mrf.mxu0
      %2057 = vmatprep.mubr.f32.mxu0 0.0
      %2058 = vmatmul.mubr.f32.gmra.mxu0 %v1890
      %v2059 = vpop.f32.mrf.mxu0
      %v2060 = vadd.f32 %v1874, %v2059
      %v2061 = vpop.f32.mrf.mxu0
      %2062 = vmatprep.mubr.f32.mxu0 0.0
      %2063 = vmatmul.mubr.f32.gmra.mxu0 %v1893
      %v2064 = vpop.f32.mrf.mxu0
      %v2065 = vadd.f32 %v1874, %v2064
      %v2066 = vpop.f32.mrf.mxu0
      %2067 = vmatprep.mubr.f32.mxu0 0.0
      %2068 = vmatmul.mubr.f32.gmra.mxu0 %v1896
      %v2069 = vpop.f32.mrf.mxu0
      %v2070 = vadd.f32 %v1874, %v2069
      %v2071 = vpop.f32.mrf.mxu0
      %2072 = vmatprep.mubr.f32.mxu0 0.0
      %2073 = vmatmul.mubr.f32.gmra.mxu0 %v1899
      %v2074 = vpop.f32.mrf.mxu0
      %v2075 = vadd.f32 %v1874, %v2074
      %v2076 = vpop.f32.mrf.mxu0
      %2077 = vmatprep.mubr.f32.mxu0 0.0
      %2078 = vmatmul.mubr.f32.gmra.mxu0 %v1902
      %v2079 = vpop.f32.mrf.mxu0
      %v2080 = vadd.f32 %v1874, %v2079
      %v2081 = vpop.f32.mrf.mxu0
      %2082 = vmatprep.mubr.f32.mxu0 0.0
      %2083 = vmatmul.mubr.f32.gmra.mxu0 %v1905
      %v2084 = vpop.f32.mrf.mxu0
      %v2085 = vadd.f32 %v1874, %v2084
      %v2086 = vpop.f32.mrf.mxu0
      %2087 = vmatprep.mubr.f32.mxu0 0.0
      %2088 = vmatmul.mubr.f32.gmra.mxu0 %v1908
      %v2089 = vpop.f32.mrf.mxu0
      %v2090 = vadd.f32 %v1874, %v2089
      %v2091 = vpop.f32.mrf.mxu0
      %2092 = vmatprep.mubr.f32.mxu0 0.0
      %2093 = vmatmul.mubr.f32.gmra.mxu0 %v1911
      %v2094 = vpop.f32.mrf.mxu0
      %v2095 = vadd.f32 %v1874, %v2094
      %v2096 = vpop.f32.mrf.mxu0
      %2097 = vmatprep.mubr.f32.mxu0 0.0
      %2098 = vmatmul.mubr.f32.gmra.mxu0 %v1914
      %v2099 = vpop.f32.mrf.mxu0
      %v2100 = vadd.f32 %v1874, %v2099
      %v2101 = vpop.f32.mrf.mxu0
      %2102 = vmatprep.mubr.f32.mxu0 0.0
      %2103 = vmatmul.mubr.f32.gmra.mxu0 %v1917
      %v2104 = vpop.f32.mrf.mxu0
      %v2105 = vadd.f32 %v1874, %v2104
      %v2106 = vpop.f32.mrf.mxu0
      %2107 = vmatprep.mubr.f32.mxu0 0.0
      %2108 = vmatmul.mubr.f32.gmra.mxu0 %v1920
      %v2109 = vpop.f32.mrf.mxu0
      %v2110 = vadd.f32 %v1874, %v2109
      %v2111 = vpop.f32.mrf.mxu0
      %2112 = vmatprep.mubr.f32.mxu0 0.0
      %2113 = vmatmul.mubr.f32.gmra.mxu0 %v1923
      %v2114 = vpop.f32.mrf.mxu0
      %v2115 = vadd.f32 %v1874, %v2114
      %v2116 = vpop.f32.mrf.mxu0
      %2117 = vmatprep.mubr.f32.mxu0 0.0
      %2118 = vmatmul.mubr.f32.gmra.mxu0 %v1926
      %v2119 = vpop.f32.mrf.mxu0
      %v2120 = vadd.f32 %v1874, %v2119
      %v2121 = vpop.f32.mrf.mxu0
      %2122 = vmatprep.mubr.f32.mxu0 0.0
      %2123 = vmatmul.mubr.f32.gmra.mxu0 %v1929
      %v2124 = vpop.f32.mrf.mxu0
      %v2125 = vadd.f32 %v1874, %v2124
      %v2126 = vpop.f32.mrf.mxu0
      %2127 = vmatprep.mubr.f32.mxu0 0.0
      %2128 = vmatmul.mubr.f32.gmra.mxu0 %v1932
      %v2129 = vpop.f32.mrf.mxu0
      %v2130 = vadd.f32 %v1874, %v2129
      %v2131 = vpop.f32.mrf.mxu0
      %2132 = vmatprep.mubr.f32.mxu0 0.0
      %2133 = vmatmul.mubr.f32.gmra.mxu0 %v1935
      %v2134 = vpop.f32.mrf.mxu0
      %v2135 = vadd.f32 %v1874, %v2134
      %v2136 = vpop.f32.mrf.mxu0
      %2137 = vmatprep.mubr.f32.mxu0 0.0
      %2138 = vmatmul.mubr.f32.gmra.mxu0 %v1938
      %v2139 = vpop.f32.mrf.mxu0
      %v2140 = vadd.f32 %v1874, %v2139
      %v2141 = vpop.f32.mrf.mxu0
      %2142 = vmatprep.mubr.f32.mxu0 0.0
      %2143 = vmatmul.mubr.f32.gmra.mxu0 %v1941
      %v2144 = vpop.f32.mrf.mxu0
      %v2145 = vadd.f32 %v1874, %v2144
      %v2146 = vpop.f32.mrf.mxu0
      %2147 = vmatprep.mubr.f32.mxu0 0.0
      %2148 = vmatmul.mubr.f32.gmra.mxu0 %v1944
      %v2149 = vpop.f32.mrf.mxu0
      %v2150 = vadd.f32 %v1874, %v2149
      %v2151 = vpop.f32.mrf.mxu0
      %2152 = vmatprep.mubr.f32.mxu0 0.0
      %2153 = vmatmul.mubr.f32.gmra.mxu0 %v1947
      %v2154 = vpop.f32.mrf.mxu0
      %v2155 = vadd.f32 %v1874, %v2154
      %v2156 = vpop.f32.mrf.mxu0
      %2157 = vmatprep.mubr.f32.mxu0 0.0
      %2158 = vmatmul.mubr.f32.gmra.mxu0 %v1950
      %v2159 = vpop.f32.mrf.mxu0
      %v2160 = vadd.f32 %v1874, %v2159
      %v2161 = vpop.f32.mrf.mxu0
      %2162 = vmatprep.mubr.f32.mxu0 0.0
      %2163 = vmatmul.mubr.f32.gmra.mxu0 %v1953
      %v2164 = vpop.f32.mrf.mxu0
      %v2165 = vadd.f32 %v1874, %v2164
      %v2166 = vpop.f32.mrf.mxu0
      %2167 = vmatprep.mubr.f32.mxu0 0.0
      %2168 = vmatmul.mubr.f32.gmra.mxu0 %v1956
      %v2169 = vpop.f32.mrf.mxu0
      %v2170 = vadd.f32 %v1874, %v2169
      %v2171 = vpop.f32.mrf.mxu0
      %2172 = vmatprep.mubr.f32.mxu0 0.0
      %2173 = vmatmul.mubr.f32.gmra.mxu0 %v1959
      %v2174 = vpop.f32.mrf.mxu0
      %v2175 = vadd.f32 %v1874, %v2174
      %v2176 = vpop.f32.mrf.mxu0
      %2177 = vmatprep.mubr.f32.mxu0 0.0
      %2178 = vmatmul.mubr.f32.gmra.mxu0 %v1962
      %v2179 = vpop.f32.mrf.mxu0
      %v2180 = vadd.f32 %v1874, %v2179
      %v2181 = vpop.f32.mrf.mxu0
      %2182 = vmatprep.mubr.f32.mxu0 0.0
      %2183 = vmatmul.mubr.f32.gmra.mxu0 %v1965
      %v2184 = vpop.f32.mrf.mxu0
      %v2185 = vadd.f32 %v1874, %v2184
      %v2186 = vpop.f32.mrf.mxu0
      %2187 = vmatprep.mubr.f32.mxu0 0.0
      %2188 = vmatmul.mubr.f32.gmra.mxu0 %v1968
      %v2189 = vpop.f32.mrf.mxu0
      %v2190 = vadd.f32 %v1874, %v2189
      %v2191 = vpop.f32.mrf.mxu0
      %2192 = vmatprep.mubr.f32.mxu0 0.0
      %2193 = vmatmul.mubr.f32.gmra.mxu0 %v1971
      %v2194 = vpop.f32.mrf.mxu0
      %v2195 = vadd.f32 %v1874, %v2194
      %v2196 = vpop.f32.mrf.mxu0
      %2197 = vdwg.mxu0
      %v2198 = vmax.f32 %v2040, 0.0
      %v2199 = vmax.f32 %v2045, 0.0
      %v2200 = vmax.f32 %v2050, 0.0
      %v2201 = vmax.f32 %v2055, 0.0
      %v2202 = vmax.f32 %v2060, 0.0
      %v2203 = vmax.f32 %v2065, 0.0
      %v2204 = vmax.f32 %v2070, 0.0
      %v2205 = vmax.f32 %v2075, 0.0
      %v2206 = vmax.f32 %v2080, 0.0
      %v2207 = vmax.f32 %v2085, 0.0
      %v2208 = vmax.f32 %v2090, 0.0
      %v2209 = vmax.f32 %v2095, 0.0
      %v2210 = vmax.f32 %v2100, 0.0
      %v2211 = vmax.f32 %v2105, 0.0
      %v2212 = vmax.f32 %v2110, 0.0
      %v2213 = vmax.f32 %v2115, 0.0
      %v2214 = vmax.f32 %v2120, 0.0
      %v2215 = vmax.f32 %v2125, 0.0
      %v2216 = vmax.f32 %v2130, 0.0
      %v2217 = vmax.f32 %v2135, 0.0
      %v2218 = vmax.f32 %v2140, 0.0
      %v2219 = vmax.f32 %v2145, 0.0
      %v2220 = vmax.f32 %v2150, 0.0
      %v2221 = vmax.f32 %v2155, 0.0
      %v2222 = vmax.f32 %v2160, 0.0
      %v2223 = vmax.f32 %v2165, 0.0
      %v2224 = vmax.f32 %v2170, 0.0
      %v2225 = vmax.f32 %v2175, 0.0
      %v2226 = vmax.f32 %v2180, 0.0
      %v2227 = vmax.f32 %v2185, 0.0
      %v2228 = vmax.f32 %v2190, 0.0
      %v2229 = vmax.f32 %v2195, 0.0
      %2262 = vrot.lane.b32.xlu0 %v2198, 8
      %v2263 = vpop.permute.xlu0 %2262
      %2264 = vrot.lane.b32.xlu0 %v2199, 8
      %v2265 = vpop.permute.xlu0 %2264
      %2266 = vrot.lane.b32.xlu0 %v2200, 8
      %v2267 = vpop.permute.xlu0 %2266
      %2268 = vrot.lane.b32.xlu0 %v2201, 8
      %v2269 = vpop.permute.xlu0 %2268
      %2270 = vrot.lane.b32.xlu0 %v2202, 8
      %v2271 = vpop.permute.xlu0 %2270
      %2272 = vrot.lane.b32.xlu0 %v2203, 8
      %v2273 = vpop.permute.xlu0 %2272
      %2274 = vrot.lane.b32.xlu0 %v2204, 8
      %v2275 = vpop.permute.xlu0 %2274
      %2276 = vrot.lane.b32.xlu0 %v2205, 8
      %v2277 = vpop.permute.xlu0 %2276
      %2278 = vrot.lane.b32.xlu0 %v2206, 8
      %v2279 = vpop.permute.xlu0 %2278
      %2280 = vrot.lane.b32.xlu0 %v2207, 8
      %v2281 = vpop.permute.xlu0 %2280
      %2282 = vrot.lane.b32.xlu0 %v2208, 8
      %v2283 = vpop.permute.xlu0 %2282
      %2284 = vrot.lane.b32.xlu0 %v2209, 8
      %v2285 = vpop.permute.xlu0 %2284
      %2286 = vrot.lane.b32.xlu0 %v2210, 8
      %v2287 = vpop.permute.xlu0 %2286
      %2288 = vrot.lane.b32.xlu0 %v2211, 8
      %v2289 = vpop.permute.xlu0 %2288
      %2290 = vrot.lane.b32.xlu0 %v2212, 8
      %v2291 = vpop.permute.xlu0 %2290
      %2292 = vrot.lane.b32.xlu0 %v2213, 8
      %v2293 = vpop.permute.xlu0 %2292
      %2294 = vrot.lane.b32.xlu0 %v2214, 8
      %v2295 = vpop.permute.xlu0 %2294
      %2296 = vrot.lane.b32.xlu0 %v2215, 8
      %v2297 = vpop.permute.xlu0 %2296
      %2298 = vrot.lane.b32.xlu0 %v2216, 8
      %v2299 = vpop.permute.xlu0 %2298
      %2300 = vrot.lane.b32.xlu0 %v2217, 8
      %v2301 = vpop.permute.xlu0 %2300
      %2302 = vrot.lane.b32.xlu0 %v2218, 8
      %v2303 = vpop.permute.xlu0 %2302
      %2304 = vrot.lane.b32.xlu0 %v2219, 8
      %v2305 = vpop.permute.xlu0 %2304
      %2306 = vrot.lane.b32.xlu0 %v2220, 8
      %v2307 = vpop.permute.xlu0 %2306
      %2308 = vrot.lane.b32.xlu0 %v2221, 8
      %v2309 = vpop.permute.xlu0 %2308
      %2310 = vrot.lane.b32.xlu0 %v2222, 8
      %v2311 = vpop.permute.xlu0 %2310
      %2312 = vrot.lane.b32.xlu0 %v2223, 8
      %v2313 = vpop.permute.xlu0 %2312
      %2314 = vrot.lane.b32.xlu0 %v2224, 8
      %v2315 = vpop.permute.xlu0 %2314
      %2316 = vrot.lane.b32.xlu0 %v2225, 8
      %v2317 = vpop.permute.xlu0 %2316
      %2318 = vrot.lane.b32.xlu0 %v2226, 8
      %v2319 = vpop.permute.xlu0 %2318
      %2320 = vrot.lane.b32.xlu0 %v2227, 8
      %v2321 = vpop.permute.xlu0 %2320
      %2322 = vrot.lane.b32.xlu0 %v2228, 8
      %v2323 = vpop.permute.xlu0 %2322
      %2324 = vrot.lane.b32.xlu0 %v2229, 8
      %v2325 = vpop.permute.xlu0 %2324
      %vm2358 = vcmask 130112
      %2359 = vst.msk [vmem:[%s438 + $0x8] sm:$0xff] %vm2358, %v2263
      %2360 = vst.msk [vmem:[%s438 + $0x10] sm:$0xff] %vm2358, %v2265
      %2361 = vst.msk [vmem:[%s438 + $0x28] sm:$0xff] %vm2358, %v2267
      %2362 = vst.msk [vmem:[%s438 + $0x30] sm:$0xff] %vm2358, %v2269
      %2363 = vst.msk [vmem:[%s438 + $0x48] sm:$0xff] %vm2358, %v2271
      %2364 = vst.msk [vmem:[%s438 + $0x50] sm:$0xff] %vm2358, %v2273
      %2365 = vst.msk [vmem:[%s438 + $0x68] sm:$0xff] %vm2358, %v2275
      %2366 = vst.msk [vmem:[%s438 + $0x70] sm:$0xff] %vm2358, %v2277
      %2367 = vst.msk [vmem:[%s438 + $0x88] sm:$0xff] %vm2358, %v2279
      %2368 = vst.msk [vmem:[%s438 + $0x90] sm:$0xff] %vm2358, %v2281
      %2369 = vst.msk [vmem:[%s438 + $0xa8] sm:$0xff] %vm2358, %v2283
      %2370 = vst.msk [vmem:[%s438 + $0xb0] sm:$0xff] %vm2358, %v2285
      %2371 = vst.msk [vmem:[%s438 + $0xc8] sm:$0xff] %vm2358, %v2287
      %2372 = vst.msk [vmem:[%s438 + $0xd0] sm:$0xff] %vm2358, %v2289
      %2373 = vst.msk [vmem:[%s438 + $0xe8] sm:$0xff] %vm2358, %v2291
      %2374 = vst.msk [vmem:[%s438 + $0xf0] sm:$0xff] %vm2358, %v2293
      %2375 = vst.msk [vmem:[%s438 + $0x108] sm:$0xff] %vm2358, %v2295
      %2376 = vst.msk [vmem:[%s438 + $0x110] sm:$0xff] %vm2358, %v2297
      %2377 = vst.msk [vmem:[%s438 + $0x128] sm:$0xff] %vm2358, %v2299
      %2378 = vst.msk [vmem:[%s438 + $0x130] sm:$0xff] %vm2358, %v2301
      %2379 = vst.msk [vmem:[%s438 + $0x148] sm:$0xff] %vm2358, %v2303
      %2380 = vst.msk [vmem:[%s438 + $0x150] sm:$0xff] %vm2358, %v2305
      %2381 = vst.msk [vmem:[%s438 + $0x168] sm:$0xff] %vm2358, %v2307
      %2382 = vst.msk [vmem:[%s438 + $0x170] sm:$0xff] %vm2358, %v2309
      %2383 = vst.msk [vmem:[%s438 + $0x188] sm:$0xff] %vm2358, %v2311
      %2384 = vst.msk [vmem:[%s438 + $0x190] sm:$0xff] %vm2358, %v2313
      %2385 = vst.msk [vmem:[%s438 + $0x1a8] sm:$0xff] %vm2358, %v2315
      %2386 = vst.msk [vmem:[%s438 + $0x1b0] sm:$0xff] %vm2358, %v2317
      %2387 = vst.msk [vmem:[%s438 + $0x1c8] sm:$0xff] %vm2358, %v2319
      %2388 = vst.msk [vmem:[%s438 + $0x1d0] sm:$0xff] %vm2358, %v2321
      %2389 = vst.msk [vmem:[%s438 + $0x1e8] sm:$0xff] %vm2358, %v2323
      %2390 = vst.msk [vmem:[%s438 + $0x1f0] sm:$0xff] %vm2358, %v2325
      %v2391 = vld [vmem:[#allocation2] sm:$0xff]
      %v2392 = vld [vmem:[#allocation2 + $0x8] sm:$0xff]
      %v2393 = vld [vmem:[#allocation2 + $0x10] sm:$0xff]
      %v2394 = vld [vmem:[#allocation2 + $0x18] sm:$0xff]
      %v2395 = vld [vmem:[#allocation2 + $0x20] sm:$0xff]
      %v2396 = vld [vmem:[#allocation2 + $0x28] sm:$0xff]
      %v2397 = vld [vmem:[#allocation2 + $0x30] sm:$0xff]
      %v2398 = vld [vmem:[#allocation2 + $0x38] sm:$0xff]
      %v2399 = vld [vmem:[#allocation2 + $0x40] sm:$0xff]
      %v2400 = vld [vmem:[#allocation2 + $0x48] sm:$0xff]
      %v2401 = vld [vmem:[#allocation2 + $0x50] sm:$0xff]
      %v2402 = vld [vmem:[#allocation2 + $0x58] sm:$0xff]
      %v2403 = vld [vmem:[#allocation2 + $0x60] sm:$0xff]
      %v2404 = vld [vmem:[#allocation2 + $0x68] sm:$0xff]
      %v2405 = vld [vmem:[#allocation2 + $0x70] sm:$0xff]
      %v2406 = vld [vmem:[#allocation2 + $0x78] sm:$0xff]
      %v2407 = vld [vmem:[#allocation2 + $0x80] sm:$0xff]
      %v2408 = vld [vmem:[#allocation2 + $0x88] sm:$0xff]
      %v2409 = vld [vmem:[#allocation2 + $0x90] sm:$0xff]
      %v2410 = vld [vmem:[#allocation2 + $0x98] sm:$0xff]
      %v2411 = vld [vmem:[#allocation2 + $0xa0] sm:$0xff]
      %v2412 = vld [vmem:[#allocation2 + $0xa8] sm:$0xff]
      %v2413 = vld [vmem:[#allocation2 + $0xb0] sm:$0xff]
      %v2414 = vld [vmem:[#allocation2 + $0xb8] sm:$0xff]
      %v2415 = vld [vmem:[#allocation2 + $0xc0] sm:$0xff]
      %v2416 = vld [vmem:[#allocation2 + $0xc8] sm:$0xff]
      %v2417 = vld [vmem:[#allocation2 + $0xd0] sm:$0xff]
      %v2418 = vld [vmem:[#allocation2 + $0xd8] sm:$0xff]
      %v2419 = vld [vmem:[#allocation2 + $0xe0] sm:$0xff]
      %v2420 = vld [vmem:[#allocation2 + $0xe8] sm:$0xff]
      %v2421 = vld [vmem:[#allocation2 + $0xf0] sm:$0xff]
      %v2422 = vld [vmem:[#allocation2 + $0xf8] sm:$0xff]
      %v2423 = vld [vmem:[#allocation2 + $0x100] sm:$0xff]
      %v2424 = vld [vmem:[#allocation2 + $0x108] sm:$0xff]
      %v2425 = vld [vmem:[#allocation2 + $0x110] sm:$0xff]
      %v2426 = vld [vmem:[#allocation2 + $0x118] sm:$0xff]
      %v2427 = vld [vmem:[#allocation2 + $0x120] sm:$0xff]
      %v2428 = vld [vmem:[#allocation2 + $0x128] sm:$0xff]
      %v2429 = vld [vmem:[#allocation2 + $0x130] sm:$0xff]
      %v2430 = vld [vmem:[#allocation2 + $0x138] sm:$0xff]
      %v2431 = vld [vmem:[#allocation2 + $0x140] sm:$0xff]
      %v2432 = vld [vmem:[#allocation2 + $0x148] sm:$0xff]
      %v2433 = vld [vmem:[#allocation2 + $0x150] sm:$0xff]
      %v2434 = vld [vmem:[#allocation2 + $0x158] sm:$0xff]
      %v2435 = vld [vmem:[#allocation2 + $0x160] sm:$0xff]
      %v2436 = vld [vmem:[#allocation2 + $0x168] sm:$0xff]
      %v2437 = vld [vmem:[#allocation2 + $0x170] sm:$0xff]
      %v2438 = vld [vmem:[#allocation2 + $0x178] sm:$0xff]
      %v2439 = vld [vmem:[#allocation2 + $0x180] sm:$0xff]
      %v2440 = vld [vmem:[#allocation2 + $0x188] sm:$0xff]
      %v2441 = vld [vmem:[#allocation2 + $0x190] sm:$0xff]
      %v2442 = vld [vmem:[#allocation2 + $0x198] sm:$0xff]
      %v2443 = vld [vmem:[#allocation2 + $0x1a0] sm:$0xff]
      %v2444 = vld [vmem:[#allocation2 + $0x1a8] sm:$0xff]
      %v2445 = vld [vmem:[#allocation2 + $0x1b0] sm:$0xff]
      %v2446 = vld [vmem:[#allocation2 + $0x1b8] sm:$0xff]
      %v2447 = vld [vmem:[#allocation2 + $0x1c0] sm:$0xff]
      %v2448 = vld [vmem:[#allocation2 + $0x1c8] sm:$0xff]
      %v2449 = vld [vmem:[#allocation2 + $0x1d0] sm:$0xff]
      %v2450 = vld [vmem:[#allocation2 + $0x1d8] sm:$0xff]
      %v2451 = vld [vmem:[#allocation2 + $0x1e0] sm:$0xff]
      %v2452 = vld [vmem:[#allocation2 + $0x1e8] sm:$0xff]
      %v2453 = vld [vmem:[#allocation2 + $0x1f0] sm:$0xff]
      %v2454 = vld [vmem:[#allocation2 + $0x1f8] sm:$0xff]
      %v2455 = vld [vmem:[#allocation2 + $0x200] sm:$0xff]
      %v2456 = vld [vmem:[#allocation2 + $0x208] sm:$0xff]
      %v2457 = vld [vmem:[#allocation2 + $0x210] sm:$0xff]
      %v2458 = vld [vmem:[#allocation2 + $0x218] sm:$0xff]
      %v2459 = vld [vmem:[#allocation2 + $0x220] sm:$0xff]
      %v2460 = vld [vmem:[#allocation2 + $0x228] sm:$0xff]
      %v2461 = vld [vmem:[#allocation2 + $0x230] sm:$0xff]
      %v2462 = vld [vmem:[#allocation2 + $0x238] sm:$0xff]
      %v2511 = vrot.slane %v2391, 7
      %v2512 = vrot.slane %v2392, 7
      %v2513 = vsel %vm592, %v2511, %v2512
      %v2514 = vrot.slane %v2393, 7
      %v2515 = vsel %vm592, %v2512, %v2514
      %v2516 = vrot.slane %v2395, 7
      %v2517 = vrot.slane %v2396, 7
      %v2518 = vsel %vm592, %v2516, %v2517
      %v2519 = vrot.slane %v2397, 7
      %v2520 = vsel %vm592, %v2517, %v2519
      %v2521 = vrot.slane %v2399, 7
      %v2522 = vrot.slane %v2400, 7
      %v2523 = vsel %vm592, %v2521, %v2522
      %v2524 = vrot.slane %v2401, 7
      %v2525 = vsel %vm592, %v2522, %v2524
      %v2526 = vrot.slane %v2403, 7
      %v2527 = vrot.slane %v2404, 7
      %v2528 = vsel %vm592, %v2526, %v2527
      %v2529 = vrot.slane %v2405, 7
      %v2530 = vsel %vm592, %v2527, %v2529
      %v2531 = vrot.slane %v2407, 7
      %v2532 = vrot.slane %v2408, 7
      %v2533 = vsel %vm592, %v2531, %v2532
      %v2534 = vrot.slane %v2409, 7
      %v2535 = vsel %vm592, %v2532, %v2534
      %v2536 = vrot.slane %v2411, 7
      %v2537 = vrot.slane %v2412, 7
      %v2538 = vsel %vm592, %v2536, %v2537
      %v2539 = vrot.slane %v2413, 7
      %v2540 = vsel %vm592, %v2537, %v2539
      %v2541 = vrot.slane %v2415, 7
      %v2542 = vrot.slane %v2416, 7
      %v2543 = vsel %vm592, %v2541, %v2542
      %v2544 = vrot.slane %v2417, 7
      %v2545 = vsel %vm592, %v2542, %v2544
      %v2546 = vrot.slane %v2419, 7
      %v2547 = vrot.slane %v2420, 7
      %v2548 = vsel %vm592, %v2546, %v2547
      %v2549 = vrot.slane %v2421, 7
      %v2550 = vsel %vm592, %v2547, %v2549
      %v2551 = vrot.slane %v2423, 7
      %v2552 = vrot.slane %v2424, 7
      %v2553 = vsel %vm592, %v2551, %v2552
      %v2554 = vrot.slane %v2425, 7
      %v2555 = vsel %vm592, %v2552, %v2554
      %v2556 = vrot.slane %v2427, 7
      %v2557 = vrot.slane %v2428, 7
      %v2558 = vsel %vm592, %v2556, %v2557
      %v2559 = vrot.slane %v2429, 7
      %v2560 = vsel %vm592, %v2557, %v2559
      %v2561 = vrot.slane %v2431, 7
      %v2562 = vrot.slane %v2432, 7
      %v2563 = vsel %vm592, %v2561, %v2562
      %v2564 = vrot.slane %v2433, 7
      %v2565 = vsel %vm592, %v2562, %v2564
      %v2566 = vrot.slane %v2435, 7
      %v2567 = vrot.slane %v2436, 7
      %v2568 = vsel %vm592, %v2566, %v2567
      %v2569 = vrot.slane %v2437, 7
      %v2570 = vsel %vm592, %v2567, %v2569
      %v2571 = vrot.slane %v2439, 7
      %v2572 = vrot.slane %v2440, 7
      %v2573 = vsel %vm592, %v2571, %v2572
      %v2574 = vrot.slane %v2441, 7
      %v2575 = vsel %vm592, %v2572, %v2574
      %v2576 = vrot.slane %v2443, 7
      %v2577 = vrot.slane %v2444, 7
      %v2578 = vsel %vm592, %v2576, %v2577
      %v2579 = vrot.slane %v2445, 7
      %v2580 = vsel %vm592, %v2577, %v2579
      %v2581 = vrot.slane %v2447, 7
      %v2582 = vrot.slane %v2448, 7
      %v2583 = vsel %vm592, %v2581, %v2582
      %v2584 = vrot.slane %v2449, 7
      %v2585 = vsel %vm592, %v2582, %v2584
      %v2586 = vrot.slane %v2451, 7
      %v2587 = vrot.slane %v2452, 7
      %v2588 = vsel %vm592, %v2586, %v2587
      %v2589 = vrot.slane %v2453, 7
      %v2590 = vsel %vm592, %v2587, %v2589
      %v2639 = vrot.slane %v2392, 1
      %v2640 = vrot.slane %v2393, 1
      %v2641 = vsel %vm721, %v2639, %v2640
      %v2642 = vrot.slane %v2394, 1
      %v2643 = vsel %vm721, %v2640, %v2642
      %v2644 = vrot.slane %v2396, 1
      %v2645 = vrot.slane %v2397, 1
      %v2646 = vsel %vm721, %v2644, %v2645
      %v2647 = vrot.slane %v2398, 1
      %v2648 = vsel %vm721, %v2645, %v2647
      %v2649 = vrot.slane %v2400, 1
      %v2650 = vrot.slane %v2401, 1
      %v2651 = vsel %vm721, %v2649, %v2650
      %v2652 = vrot.slane %v2402, 1
      %v2653 = vsel %vm721, %v2650, %v2652
      %v2654 = vrot.slane %v2404, 1
      %v2655 = vrot.slane %v2405, 1
      %v2656 = vsel %vm721, %v2654, %v2655
      %v2657 = vrot.slane %v2406, 1
      %v2658 = vsel %vm721, %v2655, %v2657
      %v2659 = vrot.slane %v2408, 1
      %v2660 = vrot.slane %v2409, 1
      %v2661 = vsel %vm721, %v2659, %v2660
      %v2662 = vrot.slane %v2410, 1
      %v2663 = vsel %vm721, %v2660, %v2662
      %v2664 = vrot.slane %v2412, 1
      %v2665 = vrot.slane %v2413, 1
      %v2666 = vsel %vm721, %v2664, %v2665
      %v2667 = vrot.slane %v2414, 1
      %v2668 = vsel %vm721, %v2665, %v2667
      %v2669 = vrot.slane %v2416, 1
      %v2670 = vrot.slane %v2417, 1
      %v2671 = vsel %vm721, %v2669, %v2670
      %v2672 = vrot.slane %v2418, 1
      %v2673 = vsel %vm721, %v2670, %v2672
      %v2674 = vrot.slane %v2420, 1
      %v2675 = vrot.slane %v2421, 1
      %v2676 = vsel %vm721, %v2674, %v2675
      %v2677 = vrot.slane %v2422, 1
      %v2678 = vsel %vm721, %v2675, %v2677
      %v2679 = vrot.slane %v2424, 1
      %v2680 = vrot.slane %v2425, 1
      %v2681 = vsel %vm721, %v2679, %v2680
      %v2682 = vrot.slane %v2426, 1
      %v2683 = vsel %vm721, %v2680, %v2682
      %v2684 = vrot.slane %v2428, 1
      %v2685 = vrot.slane %v2429, 1
      %v2686 = vsel %vm721, %v2684, %v2685
      %v2687 = vrot.slane %v2430, 1
      %v2688 = vsel %vm721, %v2685, %v2687
      %v2689 = vrot.slane %v2432, 1
      %v2690 = vrot.slane %v2433, 1
      %v2691 = vsel %vm721, %v2689, %v2690
      %v2692 = vrot.slane %v2434, 1
      %v2693 = vsel %vm721, %v2690, %v2692
      %v2694 = vrot.slane %v2436, 1
      %v2695 = vrot.slane %v2437, 1
      %v2696 = vsel %vm721, %v2694, %v2695
      %v2697 = vrot.slane %v2438, 1
      %v2698 = vsel %vm721, %v2695, %v2697
      %v2699 = vrot.slane %v2440, 1
      %v2700 = vrot.slane %v2441, 1
      %v2701 = vsel %vm721, %v2699, %v2700
      %v2702 = vrot.slane %v2442, 1
      %v2703 = vsel %vm721, %v2700, %v2702
      %v2704 = vrot.slane %v2444, 1
      %v2705 = vrot.slane %v2445, 1
      %v2706 = vsel %vm721, %v2704, %v2705
      %v2707 = vrot.slane %v2446, 1
      %v2708 = vsel %vm721, %v2705, %v2707
      %v2709 = vrot.slane %v2448, 1
      %v2710 = vrot.slane %v2449, 1
      %v2711 = vsel %vm721, %v2709, %v2710
      %v2712 = vrot.slane %v2450, 1
      %v2713 = vsel %vm721, %v2710, %v2712
      %v2714 = vrot.slane %v2452, 1
      %v2715 = vrot.slane %v2453, 1
      %v2716 = vsel %vm721, %v2714, %v2715
      %v2717 = vrot.slane %v2454, 1
      %v2718 = vsel %vm721, %v2715, %v2717
      %v2722 = vrot.slane %v2455, 7
      %v2723 = vrot.slane %v2456, 7
      %v2724 = vsel %vm592, %v2722, %v2723
      %v2725 = vrot.slane %v2457, 7
      %v2726 = vsel %vm592, %v2723, %v2725
      %v2728 = vrot.slane %v2456, 1
      %v2729 = vrot.slane %v2457, 1
      %v2730 = vsel %vm721, %v2728, %v2729
      %v2731 = vrot.slane %v2458, 1
      %v2732 = vsel %vm721, %v2729, %v2731
      %v2736 = vrot.slane %v2459, 7
      %v2737 = vrot.slane %v2460, 7
      %v2738 = vsel %vm592, %v2736, %v2737
      %v2739 = vrot.slane %v2461, 7
      %v2740 = vsel %vm592, %v2737, %v2739
      %v2742 = vrot.slane %v2460, 1
      %v2743 = vrot.slane %v2461, 1
      %v2744 = vsel %vm721, %v2742, %v2743
      %v2745 = vrot.slane %v2462, 1
      %v2746 = vsel %vm721, %v2743, %v2745
      %2747 = vrot.lane.b32.xlu0 %v2392, 16
      %v2748 = vpop.permute.xlu0 %2747
      %2749 = vrot.lane.b32.xlu0 %v2393, 16
      %v2750 = vpop.permute.xlu0 %2749
      %2751 = vrot.lane.b32.xlu0 %v2396, 16
      %v2752 = vpop.permute.xlu0 %2751
      %2753 = vrot.lane.b32.xlu0 %v2397, 16
      %v2754 = vpop.permute.xlu0 %2753
      %2755 = vrot.lane.b32.xlu0 %v2400, 16
      %v2756 = vpop.permute.xlu0 %2755
      %2757 = vrot.lane.b32.xlu0 %v2401, 16
      %v2758 = vpop.permute.xlu0 %2757
      %2759 = vrot.lane.b32.xlu0 %v2404, 16
      %v2760 = vpop.permute.xlu0 %2759
      %2761 = vrot.lane.b32.xlu0 %v2405, 16
      %v2762 = vpop.permute.xlu0 %2761
      %2763 = vrot.lane.b32.xlu0 %v2408, 16
      %v2764 = vpop.permute.xlu0 %2763
      %2765 = vrot.lane.b32.xlu0 %v2409, 16
      %v2766 = vpop.permute.xlu0 %2765
      %2767 = vrot.lane.b32.xlu0 %v2412, 16
      %v2768 = vpop.permute.xlu0 %2767
      %2769 = vrot.lane.b32.xlu0 %v2413, 16
      %v2770 = vpop.permute.xlu0 %2769
      %2771 = vrot.lane.b32.xlu0 %v2416, 16
      %v2772 = vpop.permute.xlu0 %2771
      %2773 = vrot.lane.b32.xlu0 %v2417, 16
      %v2774 = vpop.permute.xlu0 %2773
      %2775 = vrot.lane.b32.xlu0 %v2420, 16
      %v2776 = vpop.permute.xlu0 %2775
      %2777 = vrot.lane.b32.xlu0 %v2421, 16
      %v2778 = vpop.permute.xlu0 %2777
      %2779 = vrot.lane.b32.xlu0 %v2424, 16
      %v2780 = vpop.permute.xlu0 %2779
      %2781 = vrot.lane.b32.xlu0 %v2425, 16
      %v2782 = vpop.permute.xlu0 %2781
      %2783 = vrot.lane.b32.xlu0 %v2428, 16
      %v2784 = vpop.permute.xlu0 %2783
      %2785 = vrot.lane.b32.xlu0 %v2429, 16
      %v2786 = vpop.permute.xlu0 %2785
      %2787 = vrot.lane.b32.xlu0 %v2432, 16
      %v2788 = vpop.permute.xlu0 %2787
      %2789 = vrot.lane.b32.xlu0 %v2433, 16
      %v2790 = vpop.permute.xlu0 %2789
      %2791 = vrot.lane.b32.xlu0 %v2436, 16
      %v2792 = vpop.permute.xlu0 %2791
      %2793 = vrot.lane.b32.xlu0 %v2437, 16
      %v2794 = vpop.permute.xlu0 %2793
      %2795 = vrot.lane.b32.xlu0 %v2440, 16
      %v2796 = vpop.permute.xlu0 %2795
      %2797 = vrot.lane.b32.xlu0 %v2441, 16
      %v2798 = vpop.permute.xlu0 %2797
      %2799 = vrot.lane.b32.xlu0 %v2444, 16
      %v2800 = vpop.permute.xlu0 %2799
      %2801 = vrot.lane.b32.xlu0 %v2445, 16
      %v2802 = vpop.permute.xlu0 %2801
      %2803 = vrot.lane.b32.xlu0 %v2448, 16
      %v2804 = vpop.permute.xlu0 %2803
      %2805 = vrot.lane.b32.xlu0 %v2449, 16
      %v2806 = vpop.permute.xlu0 %2805
      %2807 = vrot.lane.b32.xlu0 %v2452, 16
      %v2808 = vpop.permute.xlu0 %2807
      %2809 = vrot.lane.b32.xlu0 %v2453, 16
      %v2810 = vpop.permute.xlu0 %2809
      %2843 = vrot.lane.b32.xlu0 %v2641, 32
      %v2844 = vpop.permute.xlu0 %2843
      %2845 = vrot.lane.b32.xlu0 %v2643, 32
      %v2846 = vpop.permute.xlu0 %2845
      %2847 = vrot.lane.b32.xlu0 %v2646, 32
      %v2848 = vpop.permute.xlu0 %2847
      %2849 = vrot.lane.b32.xlu0 %v2648, 32
      %v2850 = vpop.permute.xlu0 %2849
      %2851 = vrot.lane.b32.xlu0 %v2651, 32
      %v2852 = vpop.permute.xlu0 %2851
      %2853 = vrot.lane.b32.xlu0 %v2653, 32
      %v2854 = vpop.permute.xlu0 %2853
      %2855 = vrot.lane.b32.xlu0 %v2656, 32
      %v2856 = vpop.permute.xlu0 %2855
      %2857 = vrot.lane.b32.xlu0 %v2658, 32
      %v2858 = vpop.permute.xlu0 %2857
      %2859 = vrot.lane.b32.xlu0 %v2661, 32
      %v2860 = vpop.permute.xlu0 %2859
      %2861 = vrot.lane.b32.xlu0 %v2663, 32
      %v2862 = vpop.permute.xlu0 %2861
      %2863 = vrot.lane.b32.xlu0 %v2666, 32
      %v2864 = vpop.permute.xlu0 %2863
      %2865 = vrot.lane.b32.xlu0 %v2668, 32
      %v2866 = vpop.permute.xlu0 %2865
      %2867 = vrot.lane.b32.xlu0 %v2671, 32
      %v2868 = vpop.permute.xlu0 %2867
      %2869 = vrot.lane.b32.xlu0 %v2673, 32
      %v2870 = vpop.permute.xlu0 %2869
      %2871 = vrot.lane.b32.xlu0 %v2676, 32
      %v2872 = vpop.permute.xlu0 %2871
      %2873 = vrot.lane.b32.xlu0 %v2678, 32
      %v2874 = vpop.permute.xlu0 %2873
      %2875 = vrot.lane.b32.xlu0 %v2681, 32
      %v2876 = vpop.permute.xlu0 %2875
      %2877 = vrot.lane.b32.xlu0 %v2683, 32
      %v2878 = vpop.permute.xlu0 %2877
      %2879 = vrot.lane.b32.xlu0 %v2686, 32
      %v2880 = vpop.permute.xlu0 %2879
      %2881 = vrot.lane.b32.xlu0 %v2688, 32
      %v2882 = vpop.permute.xlu0 %2881
      %2883 = vrot.lane.b32.xlu0 %v2691, 32
      %v2884 = vpop.permute.xlu0 %2883
      %2885 = vrot.lane.b32.xlu0 %v2693, 32
      %v2886 = vpop.permute.xlu0 %2885
      %2887 = vrot.lane.b32.xlu0 %v2696, 32
      %v2888 = vpop.permute.xlu0 %2887
      %2889 = vrot.lane.b32.xlu0 %v2698, 32
      %v2890 = vpop.permute.xlu0 %2889
      %2891 = vrot.lane.b32.xlu0 %v2701, 32
      %v2892 = vpop.permute.xlu0 %2891
      %2893 = vrot.lane.b32.xlu0 %v2703, 32
      %v2894 = vpop.permute.xlu0 %2893
      %2895 = vrot.lane.b32.xlu0 %v2706, 32
      %v2896 = vpop.permute.xlu0 %2895
      %2897 = vrot.lane.b32.xlu0 %v2708, 32
      %v2898 = vpop.permute.xlu0 %2897
      %2899 = vrot.lane.b32.xlu0 %v2711, 32
      %v2900 = vpop.permute.xlu0 %2899
      %2901 = vrot.lane.b32.xlu0 %v2713, 32
      %v2902 = vpop.permute.xlu0 %2901
      %2903 = vrot.lane.b32.xlu0 %v2716, 32
      %v2904 = vpop.permute.xlu0 %2903
      %2905 = vrot.lane.b32.xlu0 %v2718, 32
      %v2906 = vpop.permute.xlu0 %2905
      %2939 = vrot.lane.b32.xlu0 %v2518, 48
      %v2940 = vpop.permute.xlu0 %2939
      %2941 = vrot.lane.b32.xlu0 %v2520, 48
      %v2942 = vpop.permute.xlu0 %2941
      %2943 = vrot.lane.b32.xlu0 %v2523, 48
      %v2944 = vpop.permute.xlu0 %2943
      %2945 = vrot.lane.b32.xlu0 %v2525, 48
      %v2946 = vpop.permute.xlu0 %2945
      %2947 = vrot.lane.b32.xlu0 %v2528, 48
      %v2948 = vpop.permute.xlu0 %2947
      %2949 = vrot.lane.b32.xlu0 %v2530, 48
      %v2950 = vpop.permute.xlu0 %2949
      %2951 = vrot.lane.b32.xlu0 %v2533, 48
      %v2952 = vpop.permute.xlu0 %2951
      %2953 = vrot.lane.b32.xlu0 %v2535, 48
      %v2954 = vpop.permute.xlu0 %2953
      %2955 = vrot.lane.b32.xlu0 %v2538, 48
      %v2956 = vpop.permute.xlu0 %2955
      %2957 = vrot.lane.b32.xlu0 %v2540, 48
      %v2958 = vpop.permute.xlu0 %2957
      %2959 = vrot.lane.b32.xlu0 %v2543, 48
      %v2960 = vpop.permute.xlu0 %2959
      %2961 = vrot.lane.b32.xlu0 %v2545, 48
      %v2962 = vpop.permute.xlu0 %2961
      %2963 = vrot.lane.b32.xlu0 %v2548, 48
      %v2964 = vpop.permute.xlu0 %2963
      %2965 = vrot.lane.b32.xlu0 %v2550, 48
      %v2966 = vpop.permute.xlu0 %2965
      %2967 = vrot.lane.b32.xlu0 %v2553, 48
      %v2968 = vpop.permute.xlu0 %2967
      %2969 = vrot.lane.b32.xlu0 %v2555, 48
      %v2970 = vpop.permute.xlu0 %2969
      %2971 = vrot.lane.b32.xlu0 %v2558, 48
      %v2972 = vpop.permute.xlu0 %2971
      %2973 = vrot.lane.b32.xlu0 %v2560, 48
      %v2974 = vpop.permute.xlu0 %2973
      %2975 = vrot.lane.b32.xlu0 %v2563, 48
      %v2976 = vpop.permute.xlu0 %2975
      %2977 = vrot.lane.b32.xlu0 %v2565, 48
      %v2978 = vpop.permute.xlu0 %2977
      %2979 = vrot.lane.b32.xlu0 %v2568, 48
      %v2980 = vpop.permute.xlu0 %2979
      %2981 = vrot.lane.b32.xlu0 %v2570, 48
      %v2982 = vpop.permute.xlu0 %2981
      %2983 = vrot.lane.b32.xlu0 %v2573, 48
      %v2984 = vpop.permute.xlu0 %2983
      %2985 = vrot.lane.b32.xlu0 %v2575, 48
      %v2986 = vpop.permute.xlu0 %2985
      %2987 = vrot.lane.b32.xlu0 %v2578, 48
      %v2988 = vpop.permute.xlu0 %2987
      %2989 = vrot.lane.b32.xlu0 %v2580, 48
      %v2990 = vpop.permute.xlu0 %2989
      %2991 = vrot.lane.b32.xlu0 %v2583, 48
      %v2992 = vpop.permute.xlu0 %2991
      %2993 = vrot.lane.b32.xlu0 %v2585, 48
      %v2994 = vpop.permute.xlu0 %2993
      %2995 = vrot.lane.b32.xlu0 %v2588, 48
      %v2996 = vpop.permute.xlu0 %2995
      %2997 = vrot.lane.b32.xlu0 %v2590, 48
      %v2998 = vpop.permute.xlu0 %2997
      %2999 = vrot.lane.b32.xlu0 %v2724, 48
      %v3000 = vpop.permute.xlu0 %2999
      %3001 = vrot.lane.b32.xlu0 %v2726, 48
      %v3002 = vpop.permute.xlu0 %3001
      %3035 = vrot.lane.b32.xlu0 %v2396, 64
      %v3036 = vpop.permute.xlu0 %3035
      %3037 = vrot.lane.b32.xlu0 %v2397, 64
      %v3038 = vpop.permute.xlu0 %3037
      %3039 = vrot.lane.b32.xlu0 %v2400, 64
      %v3040 = vpop.permute.xlu0 %3039
      %3041 = vrot.lane.b32.xlu0 %v2401, 64
      %v3042 = vpop.permute.xlu0 %3041
      %3043 = vrot.lane.b32.xlu0 %v2404, 64
      %v3044 = vpop.permute.xlu0 %3043
      %3045 = vrot.lane.b32.xlu0 %v2405, 64
      %v3046 = vpop.permute.xlu0 %3045
      %3047 = vrot.lane.b32.xlu0 %v2408, 64
      %v3048 = vpop.permute.xlu0 %3047
      %3049 = vrot.lane.b32.xlu0 %v2409, 64
      %v3050 = vpop.permute.xlu0 %3049
      %3051 = vrot.lane.b32.xlu0 %v2412, 64
      %v3052 = vpop.permute.xlu0 %3051
      %3053 = vrot.lane.b32.xlu0 %v2413, 64
      %v3054 = vpop.permute.xlu0 %3053
      %3055 = vrot.lane.b32.xlu0 %v2416, 64
      %v3056 = vpop.permute.xlu0 %3055
      %3057 = vrot.lane.b32.xlu0 %v2417, 64
      %v3058 = vpop.permute.xlu0 %3057
      %3059 = vrot.lane.b32.xlu0 %v2420, 64
      %v3060 = vpop.permute.xlu0 %3059
      %3061 = vrot.lane.b32.xlu0 %v2421, 64
      %v3062 = vpop.permute.xlu0 %3061
      %3063 = vrot.lane.b32.xlu0 %v2424, 64
      %v3064 = vpop.permute.xlu0 %3063
      %3065 = vrot.lane.b32.xlu0 %v2425, 64
      %v3066 = vpop.permute.xlu0 %3065
      %3067 = vrot.lane.b32.xlu0 %v2428, 64
      %v3068 = vpop.permute.xlu0 %3067
      %3069 = vrot.lane.b32.xlu0 %v2429, 64
      %v3070 = vpop.permute.xlu0 %3069
      %3071 = vrot.lane.b32.xlu0 %v2432, 64
      %v3072 = vpop.permute.xlu0 %3071
      %3073 = vrot.lane.b32.xlu0 %v2433, 64
      %v3074 = vpop.permute.xlu0 %3073
      %3075 = vrot.lane.b32.xlu0 %v2436, 64
      %v3076 = vpop.permute.xlu0 %3075
      %3077 = vrot.lane.b32.xlu0 %v2437, 64
      %v3078 = vpop.permute.xlu0 %3077
      %3079 = vrot.lane.b32.xlu0 %v2440, 64
      %v3080 = vpop.permute.xlu0 %3079
      %3081 = vrot.lane.b32.xlu0 %v2441, 64
      %v3082 = vpop.permute.xlu0 %3081
      %3083 = vrot.lane.b32.xlu0 %v2444, 64
      %v3084 = vpop.permute.xlu0 %3083
      %3085 = vrot.lane.b32.xlu0 %v2445, 64
      %v3086 = vpop.permute.xlu0 %3085
      %3087 = vrot.lane.b32.xlu0 %v2448, 64
      %v3088 = vpop.permute.xlu0 %3087
      %3089 = vrot.lane.b32.xlu0 %v2449, 64
      %v3090 = vpop.permute.xlu0 %3089
      %3091 = vrot.lane.b32.xlu0 %v2452, 64
      %v3092 = vpop.permute.xlu0 %3091
      %3093 = vrot.lane.b32.xlu0 %v2453, 64
      %v3094 = vpop.permute.xlu0 %3093
      %3095 = vrot.lane.b32.xlu0 %v2456, 64
      %v3096 = vpop.permute.xlu0 %3095
      %3097 = vrot.lane.b32.xlu0 %v2457, 64
      %v3098 = vpop.permute.xlu0 %3097
      %3131 = vrot.lane.b32.xlu0 %v2646, 80
      %v3132 = vpop.permute.xlu0 %3131
      %3133 = vrot.lane.b32.xlu0 %v2648, 80
      %v3134 = vpop.permute.xlu0 %3133
      %3135 = vrot.lane.b32.xlu0 %v2651, 80
      %v3136 = vpop.permute.xlu0 %3135
      %3137 = vrot.lane.b32.xlu0 %v2653, 80
      %v3138 = vpop.permute.xlu0 %3137
      %3139 = vrot.lane.b32.xlu0 %v2656, 80
      %v3140 = vpop.permute.xlu0 %3139
      %3141 = vrot.lane.b32.xlu0 %v2658, 80
      %v3142 = vpop.permute.xlu0 %3141
      %3143 = vrot.lane.b32.xlu0 %v2661, 80
      %v3144 = vpop.permute.xlu0 %3143
      %3145 = vrot.lane.b32.xlu0 %v2663, 80
      %v3146 = vpop.permute.xlu0 %3145
      %3147 = vrot.lane.b32.xlu0 %v2666, 80
      %v3148 = vpop.permute.xlu0 %3147
      %3149 = vrot.lane.b32.xlu0 %v2668, 80
      %v3150 = vpop.permute.xlu0 %3149
      %3151 = vrot.lane.b32.xlu0 %v2671, 80
      %v3152 = vpop.permute.xlu0 %3151
      %3153 = vrot.lane.b32.xlu0 %v2673, 80
      %v3154 = vpop.permute.xlu0 %3153
      %3155 = vrot.lane.b32.xlu0 %v2676, 80
      %v3156 = vpop.permute.xlu0 %3155
      %3157 = vrot.lane.b32.xlu0 %v2678, 80
      %v3158 = vpop.permute.xlu0 %3157
      %3159 = vrot.lane.b32.xlu0 %v2681, 80
      %v3160 = vpop.permute.xlu0 %3159
      %3161 = vrot.lane.b32.xlu0 %v2683, 80
      %v3162 = vpop.permute.xlu0 %3161
      %3163 = vrot.lane.b32.xlu0 %v2686, 80
      %v3164 = vpop.permute.xlu0 %3163
      %3165 = vrot.lane.b32.xlu0 %v2688, 80
      %v3166 = vpop.permute.xlu0 %3165
      %3167 = vrot.lane.b32.xlu0 %v2691, 80
      %v3168 = vpop.permute.xlu0 %3167
      %3169 = vrot.lane.b32.xlu0 %v2693, 80
      %v3170 = vpop.permute.xlu0 %3169
      %3171 = vrot.lane.b32.xlu0 %v2696, 80
      %v3172 = vpop.permute.xlu0 %3171
      %3173 = vrot.lane.b32.xlu0 %v2698, 80
      %v3174 = vpop.permute.xlu0 %3173
      %3175 = vrot.lane.b32.xlu0 %v2701, 80
      %v3176 = vpop.permute.xlu0 %3175
      %3177 = vrot.lane.b32.xlu0 %v2703, 80
      %v3178 = vpop.permute.xlu0 %3177
      %3179 = vrot.lane.b32.xlu0 %v2706, 80
      %v3180 = vpop.permute.xlu0 %3179
      %3181 = vrot.lane.b32.xlu0 %v2708, 80
      %v3182 = vpop.permute.xlu0 %3181
      %3183 = vrot.lane.b32.xlu0 %v2711, 80
      %v3184 = vpop.permute.xlu0 %3183
      %3185 = vrot.lane.b32.xlu0 %v2713, 80
      %v3186 = vpop.permute.xlu0 %3185
      %3187 = vrot.lane.b32.xlu0 %v2716, 80
      %v3188 = vpop.permute.xlu0 %3187
      %3189 = vrot.lane.b32.xlu0 %v2718, 80
      %v3190 = vpop.permute.xlu0 %3189
      %3191 = vrot.lane.b32.xlu0 %v2730, 80
      %v3192 = vpop.permute.xlu0 %3191
      %3193 = vrot.lane.b32.xlu0 %v2732, 80
      %v3194 = vpop.permute.xlu0 %3193
      %3227 = vrot.lane.b32.xlu0 %v2523, 96
      %v3228 = vpop.permute.xlu0 %3227
      %3229 = vrot.lane.b32.xlu0 %v2525, 96
      %v3230 = vpop.permute.xlu0 %3229
      %3231 = vrot.lane.b32.xlu0 %v2528, 96
      %v3232 = vpop.permute.xlu0 %3231
      %3233 = vrot.lane.b32.xlu0 %v2530, 96
      %v3234 = vpop.permute.xlu0 %3233
      %3235 = vrot.lane.b32.xlu0 %v2533, 96
      %v3236 = vpop.permute.xlu0 %3235
      %3237 = vrot.lane.b32.xlu0 %v2535, 96
      %v3238 = vpop.permute.xlu0 %3237
      %3239 = vrot.lane.b32.xlu0 %v2538, 96
      %v3240 = vpop.permute.xlu0 %3239
      %3241 = vrot.lane.b32.xlu0 %v2540, 96
      %v3242 = vpop.permute.xlu0 %3241
      %3243 = vrot.lane.b32.xlu0 %v2543, 96
      %v3244 = vpop.permute.xlu0 %3243
      %3245 = vrot.lane.b32.xlu0 %v2545, 96
      %v3246 = vpop.permute.xlu0 %3245
      %3247 = vrot.lane.b32.xlu0 %v2548, 96
      %v3248 = vpop.permute.xlu0 %3247
      %3249 = vrot.lane.b32.xlu0 %v2550, 96
      %v3250 = vpop.permute.xlu0 %3249
      %3251 = vrot.lane.b32.xlu0 %v2553, 96
      %v3252 = vpop.permute.xlu0 %3251
      %3253 = vrot.lane.b32.xlu0 %v2555, 96
      %v3254 = vpop.permute.xlu0 %3253
      %3255 = vrot.lane.b32.xlu0 %v2558, 96
      %v3256 = vpop.permute.xlu0 %3255
      %3257 = vrot.lane.b32.xlu0 %v2560, 96
      %v3258 = vpop.permute.xlu0 %3257
      %3259 = vrot.lane.b32.xlu0 %v2563, 96
      %v3260 = vpop.permute.xlu0 %3259
      %3261 = vrot.lane.b32.xlu0 %v2565, 96
      %v3262 = vpop.permute.xlu0 %3261
      %3263 = vrot.lane.b32.xlu0 %v2568, 96
      %v3264 = vpop.permute.xlu0 %3263
      %3265 = vrot.lane.b32.xlu0 %v2570, 96
      %v3266 = vpop.permute.xlu0 %3265
      %3267 = vrot.lane.b32.xlu0 %v2573, 96
      %v3268 = vpop.permute.xlu0 %3267
      %3269 = vrot.lane.b32.xlu0 %v2575, 96
      %v3270 = vpop.permute.xlu0 %3269
      %3271 = vrot.lane.b32.xlu0 %v2578, 96
      %v3272 = vpop.permute.xlu0 %3271
      %3273 = vrot.lane.b32.xlu0 %v2580, 96
      %v3274 = vpop.permute.xlu0 %3273
      %3275 = vrot.lane.b32.xlu0 %v2583, 96
      %v3276 = vpop.permute.xlu0 %3275
      %3277 = vrot.lane.b32.xlu0 %v2585, 96
      %v3278 = vpop.permute.xlu0 %3277
      %3279 = vrot.lane.b32.xlu0 %v2588, 96
      %v3280 = vpop.permute.xlu0 %3279
      %3281 = vrot.lane.b32.xlu0 %v2590, 96
      %v3282 = vpop.permute.xlu0 %3281
      %3283 = vrot.lane.b32.xlu0 %v2724, 96
      %v3284 = vpop.permute.xlu0 %3283
      %3285 = vrot.lane.b32.xlu0 %v2726, 96
      %v3286 = vpop.permute.xlu0 %3285
      %3287 = vrot.lane.b32.xlu0 %v2738, 96
      %v3288 = vpop.permute.xlu0 %3287
      %3289 = vrot.lane.b32.xlu0 %v2740, 96
      %v3290 = vpop.permute.xlu0 %3289
      %3323 = vrot.lane.b32.xlu0 %v2400, 112
      %v3324 = vpop.permute.xlu0 %3323
      %3325 = vrot.lane.b32.xlu0 %v2401, 112
      %v3326 = vpop.permute.xlu0 %3325
      %3327 = vrot.lane.b32.xlu0 %v2404, 112
      %v3328 = vpop.permute.xlu0 %3327
      %3329 = vrot.lane.b32.xlu0 %v2405, 112
      %v3330 = vpop.permute.xlu0 %3329
      %3331 = vrot.lane.b32.xlu0 %v2408, 112
      %v3332 = vpop.permute.xlu0 %3331
      %3333 = vrot.lane.b32.xlu0 %v2409, 112
      %v3334 = vpop.permute.xlu0 %3333
      %3335 = vrot.lane.b32.xlu0 %v2412, 112
      %v3336 = vpop.permute.xlu0 %3335
      %3337 = vrot.lane.b32.xlu0 %v2413, 112
      %v3338 = vpop.permute.xlu0 %3337
      %3339 = vrot.lane.b32.xlu0 %v2416, 112
      %v3340 = vpop.permute.xlu0 %3339
      %3341 = vrot.lane.b32.xlu0 %v2417, 112
      %v3342 = vpop.permute.xlu0 %3341
      %3343 = vrot.lane.b32.xlu0 %v2420, 112
      %v3344 = vpop.permute.xlu0 %3343
      %3345 = vrot.lane.b32.xlu0 %v2421, 112
      %v3346 = vpop.permute.xlu0 %3345
      %3347 = vrot.lane.b32.xlu0 %v2424, 112
      %v3348 = vpop.permute.xlu0 %3347
      %3349 = vrot.lane.b32.xlu0 %v2425, 112
      %v3350 = vpop.permute.xlu0 %3349
      %3351 = vrot.lane.b32.xlu0 %v2428, 112
      %v3352 = vpop.permute.xlu0 %3351
      %3353 = vrot.lane.b32.xlu0 %v2429, 112
      %v3354 = vpop.permute.xlu0 %3353
      %3355 = vrot.lane.b32.xlu0 %v2432, 112
      %v3356 = vpop.permute.xlu0 %3355
      %3357 = vrot.lane.b32.xlu0 %v2433, 112
      %v3358 = vpop.permute.xlu0 %3357
      %3359 = vrot.lane.b32.xlu0 %v2436, 112
      %v3360 = vpop.permute.xlu0 %3359
      %3361 = vrot.lane.b32.xlu0 %v2437, 112
      %v3362 = vpop.permute.xlu0 %3361
      %3363 = vrot.lane.b32.xlu0 %v2440, 112
      %v3364 = vpop.permute.xlu0 %3363
      %3365 = vrot.lane.b32.xlu0 %v2441, 112
      %v3366 = vpop.permute.xlu0 %3365
      %3367 = vrot.lane.b32.xlu0 %v2444, 112
      %v3368 = vpop.permute.xlu0 %3367
      %3369 = vrot.lane.b32.xlu0 %v2445, 112
      %v3370 = vpop.permute.xlu0 %3369
      %3371 = vrot.lane.b32.xlu0 %v2448, 112
      %v3372 = vpop.permute.xlu0 %3371
      %3373 = vrot.lane.b32.xlu0 %v2449, 112
      %v3374 = vpop.permute.xlu0 %3373
      %3375 = vrot.lane.b32.xlu0 %v2452, 112
      %v3376 = vpop.permute.xlu0 %3375
      %3377 = vrot.lane.b32.xlu0 %v2453, 112
      %v3378 = vpop.permute.xlu0 %3377
      %3379 = vrot.lane.b32.xlu0 %v2456, 112
      %v3380 = vpop.permute.xlu0 %3379
      %3381 = vrot.lane.b32.xlu0 %v2457, 112
      %v3382 = vpop.permute.xlu0 %3381
      %3383 = vrot.lane.b32.xlu0 %v2460, 112
      %v3384 = vpop.permute.xlu0 %3383
      %3385 = vrot.lane.b32.xlu0 %v2461, 112
      %v3386 = vpop.permute.xlu0 %3385
      %v3419 = vsel %vm1630, %v2513, %v2748
      %v3420 = vsel %vm1630, %v2515, %v2750
      %v3421 = vsel %vm1630, %v2518, %v2752
      %v3422 = vsel %vm1630, %v2520, %v2754
      %v3423 = vsel %vm1630, %v2523, %v2756
      %v3424 = vsel %vm1630, %v2525, %v2758
      %v3425 = vsel %vm1630, %v2528, %v2760
      %v3426 = vsel %vm1630, %v2530, %v2762
      %v3427 = vsel %vm1630, %v2533, %v2764
      %v3428 = vsel %vm1630, %v2535, %v2766
      %v3429 = vsel %vm1630, %v2538, %v2768
      %v3430 = vsel %vm1630, %v2540, %v2770
      %v3431 = vsel %vm1630, %v2543, %v2772
      %v3432 = vsel %vm1630, %v2545, %v2774
      %v3433 = vsel %vm1630, %v2548, %v2776
      %v3434 = vsel %vm1630, %v2550, %v2778
      %v3435 = vsel %vm1630, %v2553, %v2780
      %v3436 = vsel %vm1630, %v2555, %v2782
      %v3437 = vsel %vm1630, %v2558, %v2784
      %v3438 = vsel %vm1630, %v2560, %v2786
      %v3439 = vsel %vm1630, %v2563, %v2788
      %v3440 = vsel %vm1630, %v2565, %v2790
      %v3441 = vsel %vm1630, %v2568, %v2792
      %v3442 = vsel %vm1630, %v2570, %v2794
      %v3443 = vsel %vm1630, %v2573, %v2796
      %v3444 = vsel %vm1630, %v2575, %v2798
      %v3445 = vsel %vm1630, %v2578, %v2800
      %v3446 = vsel %vm1630, %v2580, %v2802
      %v3447 = vsel %vm1630, %v2583, %v2804
      %v3448 = vsel %vm1630, %v2585, %v2806
      %v3449 = vsel %vm1630, %v2588, %v2808
      %v3450 = vsel %vm1630, %v2590, %v2810
      %v3451 = vsel %vm333, %v3419, %v2844
      %v3452 = vsel %vm333, %v3420, %v2846
      %v3453 = vsel %vm333, %v3421, %v2848
      %v3454 = vsel %vm333, %v3422, %v2850
      %v3455 = vsel %vm333, %v3423, %v2852
      %v3456 = vsel %vm333, %v3424, %v2854
      %v3457 = vsel %vm333, %v3425, %v2856
      %v3458 = vsel %vm333, %v3426, %v2858
      %v3459 = vsel %vm333, %v3427, %v2860
      %v3460 = vsel %vm333, %v3428, %v2862
      %v3461 = vsel %vm333, %v3429, %v2864
      %v3462 = vsel %vm333, %v3430, %v2866
      %v3463 = vsel %vm333, %v3431, %v2868
      %v3464 = vsel %vm333, %v3432, %v2870
      %v3465 = vsel %vm333, %v3433, %v2872
      %v3466 = vsel %vm333, %v3434, %v2874
      %v3467 = vsel %vm333, %v3435, %v2876
      %v3468 = vsel %vm333, %v3436, %v2878
      %v3469 = vsel %vm333, %v3437, %v2880
      %v3470 = vsel %vm333, %v3438, %v2882
      %v3471 = vsel %vm333, %v3439, %v2884
      %v3472 = vsel %vm333, %v3440, %v2886
      %v3473 = vsel %vm333, %v3441, %v2888
      %v3474 = vsel %vm333, %v3442, %v2890
      %v3475 = vsel %vm333, %v3443, %v2892
      %v3476 = vsel %vm333, %v3444, %v2894
      %v3477 = vsel %vm333, %v3445, %v2896
      %v3478 = vsel %vm333, %v3446, %v2898
      %v3479 = vsel %vm333, %v3447, %v2900
      %v3480 = vsel %vm333, %v3448, %v2902
      %v3481 = vsel %vm333, %v3449, %v2904
      %v3482 = vsel %vm333, %v3450, %v2906
      %v3483 = vsel %vm1761, %v3451, %v2940
      %v3484 = vsel %vm1761, %v3452, %v2942
      %v3485 = vsel %vm1761, %v3453, %v2944
      %v3486 = vsel %vm1761, %v3454, %v2946
      %v3487 = vsel %vm1761, %v3455, %v2948
      %v3488 = vsel %vm1761, %v3456, %v2950
      %v3489 = vsel %vm1761, %v3457, %v2952
      %v3490 = vsel %vm1761, %v3458, %v2954
      %v3491 = vsel %vm1761, %v3459, %v2956
      %v3492 = vsel %vm1761, %v3460, %v2958
      %v3493 = vsel %vm1761, %v3461, %v2960
      %v3494 = vsel %vm1761, %v3462, %v2962
      %v3495 = vsel %vm1761, %v3463, %v2964
      %v3496 = vsel %vm1761, %v3464, %v2966
      %v3497 = vsel %vm1761, %v3465, %v2968
      %v3498 = vsel %vm1761, %v3466, %v2970
      %v3499 = vsel %vm1761, %v3467, %v2972
      %v3500 = vsel %vm1761, %v3468, %v2974
      %v3501 = vsel %vm1761, %v3469, %v2976
      %v3502 = vsel %vm1761, %v3470, %v2978
      %v3503 = vsel %vm1761, %v3471, %v2980
      %v3504 = vsel %vm1761, %v3472, %v2982
      %v3505 = vsel %vm1761, %v3473, %v2984
      %v3506 = vsel %vm1761, %v3474, %v2986
      %v3507 = vsel %vm1761, %v3475, %v2988
      %v3508 = vsel %vm1761, %v3476, %v2990
      %v3509 = vsel %vm1761, %v3477, %v2992
      %v3510 = vsel %vm1761, %v3478, %v2994
      %v3511 = vsel %vm1761, %v3479, %v2996
      %v3512 = vsel %vm1761, %v3480, %v2998
      %v3513 = vsel %vm1761, %v3481, %v3000
      %v3514 = vsel %vm1761, %v3482, %v3002
      %v3515 = vsel %vm1827, %v3483, %v3036
      %v3516 = vsel %vm1827, %v3484, %v3038
      %v3517 = vsel %vm1827, %v3485, %v3040
      %v3518 = vsel %vm1827, %v3486, %v3042
      %v3519 = vsel %vm1827, %v3487, %v3044
      %v3520 = vsel %vm1827, %v3488, %v3046
      %v3521 = vsel %vm1827, %v3489, %v3048
      %v3522 = vsel %vm1827, %v3490, %v3050
      %v3523 = vsel %vm1827, %v3491, %v3052
      %v3524 = vsel %vm1827, %v3492, %v3054
      %v3525 = vsel %vm1827, %v3493, %v3056
      %v3526 = vsel %vm1827, %v3494, %v3058
      %v3527 = vsel %vm1827, %v3495, %v3060
      %v3528 = vsel %vm1827, %v3496, %v3062
      %v3529 = vsel %vm1827, %v3497, %v3064
      %v3530 = vsel %vm1827, %v3498, %v3066
      %v3531 = vsel %vm1827, %v3499, %v3068
      %v3532 = vsel %vm1827, %v3500, %v3070
      %v3533 = vsel %vm1827, %v3501, %v3072
      %v3534 = vsel %vm1827, %v3502, %v3074
      %v3535 = vsel %vm1827, %v3503, %v3076
      %v3536 = vsel %vm1827, %v3504, %v3078
      %v3537 = vsel %vm1827, %v3505, %v3080
      %v3538 = vsel %vm1827, %v3506, %v3082
      %v3539 = vsel %vm1827, %v3507, %v3084
      %v3540 = vsel %vm1827, %v3508, %v3086
      %v3541 = vsel %vm1827, %v3509, %v3088
      %v3542 = vsel %vm1827, %v3510, %v3090
      %v3543 = vsel %vm1827, %v3511, %v3092
      %v3544 = vsel %vm1827, %v3512, %v3094
      %v3545 = vsel %vm1827, %v3513, %v3096
      %v3546 = vsel %vm1827, %v3514, %v3098
      %vm3547 = vcmask 654336
      %v3548 = vsel %vm3547, %v3515, %v3132
      %v3549 = vsel %vm3547, %v3516, %v3134
      %v3550 = vsel %vm3547, %v3517, %v3136
      %v3551 = vsel %vm3547, %v3518, %v3138
      %v3552 = vsel %vm3547, %v3519, %v3140
      %v3553 = vsel %vm3547, %v3520, %v3142
      %v3554 = vsel %vm3547, %v3521, %v3144
      %v3555 = vsel %vm3547, %v3522, %v3146
      %v3556 = vsel %vm3547, %v3523, %v3148
      %v3557 = vsel %vm3547, %v3524, %v3150
      %v3558 = vsel %vm3547, %v3525, %v3152
      %v3559 = vsel %vm3547, %v3526, %v3154
      %v3560 = vsel %vm3547, %v3527, %v3156
      %v3561 = vsel %vm3547, %v3528, %v3158
      %v3562 = vsel %vm3547, %v3529, %v3160
      %v3563 = vsel %vm3547, %v3530, %v3162
      %v3564 = vsel %vm3547, %v3531, %v3164
      %v3565 = vsel %vm3547, %v3532, %v3166
      %v3566 = vsel %vm3547, %v3533, %v3168
      %v3567 = vsel %vm3547, %v3534, %v3170
      %v3568 = vsel %vm3547, %v3535, %v3172
      %v3569 = vsel %vm3547, %v3536, %v3174
      %v3570 = vsel %vm3547, %v3537, %v3176
      %v3571 = vsel %vm3547, %v3538, %v3178
      %v3572 = vsel %vm3547, %v3539, %v3180
      %v3573 = vsel %vm3547, %v3540, %v3182
      %v3574 = vsel %vm3547, %v3541, %v3184
      %v3575 = vsel %vm3547, %v3542, %v3186
      %v3576 = vsel %vm3547, %v3543, %v3188
      %v3577 = vsel %vm3547, %v3544, %v3190
      %v3578 = vsel %vm3547, %v3545, %v3192
      %v3579 = vsel %vm3547, %v3546, %v3194
      %vm3580 = vcmask 785408
      %v3581 = vsel %vm3580, %v3548, %v3228
      %v3582 = vsel %vm3580, %v3549, %v3230
      %v3583 = vsel %vm3580, %v3550, %v3232
      %v3584 = vsel %vm3580, %v3551, %v3234
      %v3585 = vsel %vm3580, %v3552, %v3236
      %v3586 = vsel %vm3580, %v3553, %v3238
      %v3587 = vsel %vm3580, %v3554, %v3240
      %v3588 = vsel %vm3580, %v3555, %v3242
      %v3589 = vsel %vm3580, %v3556, %v3244
      %v3590 = vsel %vm3580, %v3557, %v3246
      %v3591 = vsel %vm3580, %v3558, %v3248
      %v3592 = vsel %vm3580, %v3559, %v3250
      %v3593 = vsel %vm3580, %v3560, %v3252
      %v3594 = vsel %vm3580, %v3561, %v3254
      %v3595 = vsel %vm3580, %v3562, %v3256
      %v3596 = vsel %vm3580, %v3563, %v3258
      %v3597 = vsel %vm3580, %v3564, %v3260
      %v3598 = vsel %vm3580, %v3565, %v3262
      %v3599 = vsel %vm3580, %v3566, %v3264
      %v3600 = vsel %vm3580, %v3567, %v3266
      %v3601 = vsel %vm3580, %v3568, %v3268
      %v3602 = vsel %vm3580, %v3569, %v3270
      %v3603 = vsel %vm3580, %v3570, %v3272
      %v3604 = vsel %vm3580, %v3571, %v3274
      %v3605 = vsel %vm3580, %v3572, %v3276
      %v3606 = vsel %vm3580, %v3573, %v3278
      %v3607 = vsel %vm3580, %v3574, %v3280
      %v3608 = vsel %vm3580, %v3575, %v3282
      %v3609 = vsel %vm3580, %v3576, %v3284
      %v3610 = vsel %vm3580, %v3577, %v3286
      %v3611 = vsel %vm3580, %v3578, %v3288
      %v3612 = vsel %vm3580, %v3579, %v3290
      %vm3613 = vcmask 916480
      %v3614 = vsel %vm3613, %v3581, %v3324
      %v3615 = vsel %vm3613, %v3582, %v3326
      %v3616 = vsel %vm3613, %v3583, %v3328
      %v3617 = vsel %vm3613, %v3584, %v3330
      %v3618 = vsel %vm3613, %v3585, %v3332
      %v3619 = vsel %vm3613, %v3586, %v3334
      %v3620 = vsel %vm3613, %v3587, %v3336
      %v3621 = vsel %vm3613, %v3588, %v3338
      %v3622 = vsel %vm3613, %v3589, %v3340
      %v3623 = vsel %vm3613, %v3590, %v3342
      %v3624 = vsel %vm3613, %v3591, %v3344
      %v3625 = vsel %vm3613, %v3592, %v3346
      %v3626 = vsel %vm3613, %v3593, %v3348
      %v3627 = vsel %vm3613, %v3594, %v3350
      %v3628 = vsel %vm3613, %v3595, %v3352
      %v3629 = vsel %vm3613, %v3596, %v3354
      %v3630 = vsel %vm3613, %v3597, %v3356
      %v3631 = vsel %vm3613, %v3598, %v3358
      %v3632 = vsel %vm3613, %v3599, %v3360
      %v3633 = vsel %vm3613, %v3600, %v3362
      %v3634 = vsel %vm3613, %v3601, %v3364
      %v3635 = vsel %vm3613, %v3602, %v3366
      %v3636 = vsel %vm3613, %v3603, %v3368
      %v3637 = vsel %vm3613, %v3604, %v3370
      %v3638 = vsel %vm3613, %v3605, %v3372
      %v3639 = vsel %vm3613, %v3606, %v3374
      %v3640 = vsel %vm3613, %v3607, %v3376
      %v3641 = vsel %vm3613, %v3608, %v3378
      %v3642 = vsel %vm3613, %v3609, %v3380
      %v3643 = vsel %vm3613, %v3610, %v3382
      %v3644 = vsel %vm3613, %v3611, %v3384
      %v3645 = vsel %vm3613, %v3612, %v3386
      %v3646 = vld [vmem:[%s3] sm:$0xff]
      %v3647 = vld [vmem:[%s3 + $0x8] sm:$0xff]
      %v3648 = vld [vmem:[%s3 + $0x10] sm:$0xff]
      %v3649 = vld [vmem:[%s3 + $0x18] sm:$0xff]
      %v3650 = vld [vmem:[%s3 + $0x20] sm:$0xff]
      %v3651 = vld [vmem:[%s3 + $0x28] sm:$0xff]
      %v3652 = vld [vmem:[%s3 + $0x30] sm:$0xff]
      %v3653 = vld [vmem:[%s3 + $0x38] sm:$0xff]
      %v3654 = vld [vmem:[%s3 + $0x40] sm:$0xff]
      %v3655 = vld [vmem:[%s3 + $0x48] sm:$0xff]
      %v3656 = vld [vmem:[%s3 + $0x50] sm:$0xff]
      %v3657 = vld [vmem:[%s3 + $0x58] sm:$0xff]
      %v3658 = vld [vmem:[%s3 + $0x60] sm:$0xff]
      %v3659 = vld [vmem:[%s3 + $0x68] sm:$0xff]
      %v3660 = vld [vmem:[%s3 + $0x70] sm:$0xff]
      %v3661 = vld [vmem:[%s3 + $0x78] sm:$0xff]
      %v3662 = vld [vmem:[%s3 + $0x80] sm:$0xff]
      %v3663 = vld [vmem:[%s3 + $0x88] sm:$0xff]
      %v3664 = vld [vmem:[%s4] sm:$0x1]
      %v3666 = vlaneseq
      %v3667 = vshrl.u32 %v3666, 7
      %v3668 = vsub.s32 0, %v3667
      %v3669 = vrot.slane %v3664, %v3668
      %v3671 = vsel %vm1630, %v2651, 0
      %v3673 = vsel %vm1630, %v2653, 0
      %v3675 = vsel %vm1630, %v2656, 0
      %v3677 = vsel %vm1630, %v2658, 0
      %v3679 = vsel %vm1630, %v2661, 0
      %v3681 = vsel %vm1630, %v2663, 0
      %v3683 = vsel %vm1630, %v2666, 0
      %v3685 = vsel %vm1630, %v2668, 0
      %v3687 = vsel %vm1630, %v2671, 0
      %v3689 = vsel %vm1630, %v2673, 0
      %v3691 = vsel %vm1630, %v2676, 0
      %v3693 = vsel %vm1630, %v2678, 0
      %v3695 = vsel %vm1630, %v2681, 0
      %v3697 = vsel %vm1630, %v2683, 0
      %v3699 = vsel %vm1630, %v2686, 0
      %v3701 = vsel %vm1630, %v2688, 0
      %v3703 = vsel %vm1630, %v2691, 0
      %v3705 = vsel %vm1630, %v2693, 0
      %v3707 = vsel %vm1630, %v2696, 0
      %v3709 = vsel %vm1630, %v2698, 0
      %v3711 = vsel %vm1630, %v2701, 0
      %v3713 = vsel %vm1630, %v2703, 0
      %v3715 = vsel %vm1630, %v2706, 0
      %v3717 = vsel %vm1630, %v2708, 0
      %v3719 = vsel %vm1630, %v2711, 0
      %v3721 = vsel %vm1630, %v2713, 0
      %v3723 = vsel %vm1630, %v2716, 0
      %v3725 = vsel %vm1630, %v2718, 0
      %v3727 = vsel %vm1630, %v2730, 0
      %v3729 = vsel %vm1630, %v2732, 0
      %v3731 = vsel %vm1630, %v2744, 0
      %v3733 = vsel %vm1630, %v2746, 0
      %3735 = vmatprep.subr.mxu0 0.0
      %3736 = vmatpush1.msra.mxu0 %v3661
      %3737 = vmatprep.subr.mxu0 0.0
      %3738 = vmatpush1.msra.mxu0 %v3660
      %3739 = vmatprep.subr.mxu0 0.0
      %3740 = vmatpush1.msra.mxu0 %v3659
      %3741 = vmatprep.subr.mxu0 0.0
      %3742 = vmatpush1.msra.mxu0 %v3658
      %3743 = vmatprep.subr.mxu0 0.0
      %3744 = vmatpush1.msra.mxu0 %v3657
      %3745 = vmatprep.subr.mxu0 0.0
      %3746 = vmatpush1.msra.mxu0 %v3656
      %3747 = vmatprep.subr.mxu0 0.0
      %3748 = vmatpush1.msra.mxu0 %v3655
      %3749 = vmatprep.subr.mxu0 0.0
      %3750 = vmatpush1.msra.mxu0 %v3654
      %3751 = vmatprep.subr.mxu0 0.0
      %3752 = vmatpush1.msra.mxu0 %v3653
      %3753 = vmatprep.subr.mxu0 0.0
      %3754 = vmatpush1.msra.mxu0 %v3652
      %3755 = vmatprep.subr.mxu0 0.0
      %3756 = vmatpush1.msra.mxu0 %v3651
      %3757 = vmatprep.subr.mxu0 0.0
      %3758 = vmatpush1.msra.mxu0 %v3650
      %3759 = vmatprep.subr.mxu0 0.0
      %3760 = vmatpush1.msra.mxu0 %v3649
      %3761 = vmatprep.subr.mxu0 0.0
      %3762 = vmatpush1.msra.mxu0 %v3648
      %3763 = vmatprep.subr.mxu0 0.0
      %3764 = vmatpush1.msra.mxu0 %v3647
      %3765 = vmatprep.subr.mxu0 0.0
      %3766 = vmatpush1.msra.mxu0 %v3646
      %3767 = vmatprep.subr.mxu0 0.0
      %3768 = vmatpush2.msra.mxu0 0.0
      %3769 = vmatprep.subr.mxu0 0.0
      %3770 = vmatpush2.msra.mxu0 0.0
      %3771 = vmatprep.subr.mxu0 0.0
      %3772 = vmatpush2.msra.mxu0 0.0
      %3773 = vmatprep.subr.mxu0 0.0
      %3774 = vmatpush2.msra.mxu0 0.0
      %3775 = vmatprep.subr.mxu0 0.0
      %3776 = vmatpush2.msra.mxu0 0.0
      %3777 = vmatprep.subr.mxu0 0.0
      %3778 = vmatpush2.msra.mxu0 0.0
      %3779 = vmatprep.subr.mxu0 0.0
      %3780 = vmatpush2.msra.mxu0 0.0
      %3781 = vmatprep.subr.mxu0 0.0
      %3782 = vmatpush2.msra.mxu0 0.0
      %3783 = vmatprep.subr.mxu0 0.0
      %3784 = vmatpush2.msra.mxu0 0.0
      %3785 = vmatprep.subr.mxu0 0.0
      %3786 = vmatpush2.msra.mxu0 0.0
      %3787 = vmatprep.subr.mxu0 0.0
      %3788 = vmatpush2.msra.mxu0 0.0
      %3789 = vmatprep.subr.mxu0 0.0
      %3790 = vmatpush2.msra.mxu0 0.0
      %3791 = vmatprep.subr.mxu0 0.0
      %3792 = vmatpush2.msra.mxu0 0.0
      %3793 = vmatprep.subr.mxu0 0.0
      %3794 = vmatpush2.msra.mxu0 0.0
      %3795 = vmatprep.subr.mxu0 0.0
      %3796 = vmatpush2.msra.mxu0 %v3663
      %3797 = vmatprep.subr.mxu0 0.0
      %3798 = vmatpush2.msra.mxu0 %v3662
      %3799 = vmatprep.mubr.f32.mxu0 %v3671
      %3800 = vmatmul.mubr.f32.gmra.mxu0 %v3614
      %v3801 = vpop.f32.mrf.mxu0
      %v3802 = vadd.f32 %v3669, %v3801
      %v3803 = vpop.f32.mrf.mxu0
      %3804 = vmatprep.mubr.f32.mxu0 %v3673
      %3805 = vmatmul.mubr.f32.gmra.mxu0 %v3615
      %v3806 = vpop.f32.mrf.mxu0
      %v3807 = vadd.f32 %v3669, %v3806
      %v3808 = vpop.f32.mrf.mxu0
      %3809 = vmatprep.mubr.f32.mxu0 %v3675
      %3810 = vmatmul.mubr.f32.gmra.mxu0 %v3616
      %v3811 = vpop.f32.mrf.mxu0
      %v3812 = vadd.f32 %v3669, %v3811
      %v3813 = vpop.f32.mrf.mxu0
      %3814 = vmatprep.mubr.f32.mxu0 %v3677
      %3815 = vmatmul.mubr.f32.gmra.mxu0 %v3617
      %v3816 = vpop.f32.mrf.mxu0
      %v3817 = vadd.f32 %v3669, %v3816
      %v3818 = vpop.f32.mrf.mxu0
      %3819 = vmatprep.mubr.f32.mxu0 %v3679
      %3820 = vmatmul.mubr.f32.gmra.mxu0 %v3618
      %v3821 = vpop.f32.mrf.mxu0
      %v3822 = vadd.f32 %v3669, %v3821
      %v3823 = vpop.f32.mrf.mxu0
      %3824 = vmatprep.mubr.f32.mxu0 %v3681
      %3825 = vmatmul.mubr.f32.gmra.mxu0 %v3619
      %v3826 = vpop.f32.mrf.mxu0
      %v3827 = vadd.f32 %v3669, %v3826
      %v3828 = vpop.f32.mrf.mxu0
      %3829 = vmatprep.mubr.f32.mxu0 %v3683
      %3830 = vmatmul.mubr.f32.gmra.mxu0 %v3620
      %v3831 = vpop.f32.mrf.mxu0
      %v3832 = vadd.f32 %v3669, %v3831
      %v3833 = vpop.f32.mrf.mxu0
      %3834 = vmatprep.mubr.f32.mxu0 %v3685
      %3835 = vmatmul.mubr.f32.gmra.mxu0 %v3621
      %v3836 = vpop.f32.mrf.mxu0
      %v3837 = vadd.f32 %v3669, %v3836
      %v3838 = vpop.f32.mrf.mxu0
      %3839 = vmatprep.mubr.f32.mxu0 %v3687
      %3840 = vmatmul.mubr.f32.gmra.mxu0 %v3622
      %v3841 = vpop.f32.mrf.mxu0
      %v3842 = vadd.f32 %v3669, %v3841
      %v3843 = vpop.f32.mrf.mxu0
      %3844 = vmatprep.mubr.f32.mxu0 %v3689
      %3845 = vmatmul.mubr.f32.gmra.mxu0 %v3623
      %v3846 = vpop.f32.mrf.mxu0
      %v3847 = vadd.f32 %v3669, %v3846
      %v3848 = vpop.f32.mrf.mxu0
      %3849 = vmatprep.mubr.f32.mxu0 %v3691
      %3850 = vmatmul.mubr.f32.gmra.mxu0 %v3624
      %v3851 = vpop.f32.mrf.mxu0
      %v3852 = vadd.f32 %v3669, %v3851
      %v3853 = vpop.f32.mrf.mxu0
      %3854 = vmatprep.mubr.f32.mxu0 %v3693
      %3855 = vmatmul.mubr.f32.gmra.mxu0 %v3625
      %v3856 = vpop.f32.mrf.mxu0
      %v3857 = vadd.f32 %v3669, %v3856
      %v3858 = vpop.f32.mrf.mxu0
      %3859 = vmatprep.mubr.f32.mxu0 %v3695
      %3860 = vmatmul.mubr.f32.gmra.mxu0 %v3626
      %v3861 = vpop.f32.mrf.mxu0
      %v3862 = vadd.f32 %v3669, %v3861
      %v3863 = vpop.f32.mrf.mxu0
      %3864 = vmatprep.mubr.f32.mxu0 %v3697
      %3865 = vmatmul.mubr.f32.gmra.mxu0 %v3627
      %v3866 = vpop.f32.mrf.mxu0
      %v3867 = vadd.f32 %v3669, %v3866
      %v3868 = vpop.f32.mrf.mxu0
      %3869 = vmatprep.mubr.f32.mxu0 %v3699
      %3870 = vmatmul.mubr.f32.gmra.mxu0 %v3628
      %v3871 = vpop.f32.mrf.mxu0
      %v3872 = vadd.f32 %v3669, %v3871
      %v3873 = vpop.f32.mrf.mxu0
      %3874 = vmatprep.mubr.f32.mxu0 %v3701
      %3875 = vmatmul.mubr.f32.gmra.mxu0 %v3629
      %v3876 = vpop.f32.mrf.mxu0
      %v3877 = vadd.f32 %v3669, %v3876
      %v3878 = vpop.f32.mrf.mxu0
      %3879 = vmatprep.mubr.f32.mxu0 %v3703
      %3880 = vmatmul.mubr.f32.gmra.mxu0 %v3630
      %v3881 = vpop.f32.mrf.mxu0
      %v3882 = vadd.f32 %v3669, %v3881
      %v3883 = vpop.f32.mrf.mxu0
      %3884 = vmatprep.mubr.f32.mxu0 %v3705
      %3885 = vmatmul.mubr.f32.gmra.mxu0 %v3631
      %v3886 = vpop.f32.mrf.mxu0
      %v3887 = vadd.f32 %v3669, %v3886
      %v3888 = vpop.f32.mrf.mxu0
      %3889 = vmatprep.mubr.f32.mxu0 %v3707
      %3890 = vmatmul.mubr.f32.gmra.mxu0 %v3632
      %v3891 = vpop.f32.mrf.mxu0
      %v3892 = vadd.f32 %v3669, %v3891
      %v3893 = vpop.f32.mrf.mxu0
      %3894 = vmatprep.mubr.f32.mxu0 %v3709
      %3895 = vmatmul.mubr.f32.gmra.mxu0 %v3633
      %v3896 = vpop.f32.mrf.mxu0
      %v3897 = vadd.f32 %v3669, %v3896
      %v3898 = vpop.f32.mrf.mxu0
      %3899 = vmatprep.mubr.f32.mxu0 %v3711
      %3900 = vmatmul.mubr.f32.gmra.mxu0 %v3634
      %v3901 = vpop.f32.mrf.mxu0
      %v3902 = vadd.f32 %v3669, %v3901
      %v3903 = vpop.f32.mrf.mxu0
      %3904 = vmatprep.mubr.f32.mxu0 %v3713
      %3905 = vmatmul.mubr.f32.gmra.mxu0 %v3635
      %v3906 = vpop.f32.mrf.mxu0
      %v3907 = vadd.f32 %v3669, %v3906
      %v3908 = vpop.f32.mrf.mxu0
      %3909 = vmatprep.mubr.f32.mxu0 %v3715
      %3910 = vmatmul.mubr.f32.gmra.mxu0 %v3636
      %v3911 = vpop.f32.mrf.mxu0
      %v3912 = vadd.f32 %v3669, %v3911
      %v3913 = vpop.f32.mrf.mxu0
      %3914 = vmatprep.mubr.f32.mxu0 %v3717
      %3915 = vmatmul.mubr.f32.gmra.mxu0 %v3637
      %v3916 = vpop.f32.mrf.mxu0
      %v3917 = vadd.f32 %v3669, %v3916
      %v3918 = vpop.f32.mrf.mxu0
      %3919 = vmatprep.mubr.f32.mxu0 %v3719
      %3920 = vmatmul.mubr.f32.gmra.mxu0 %v3638
      %v3921 = vpop.f32.mrf.mxu0
      %v3922 = vadd.f32 %v3669, %v3921
      %v3923 = vpop.f32.mrf.mxu0
      %3924 = vmatprep.mubr.f32.mxu0 %v3721
      %3925 = vmatmul.mubr.f32.gmra.mxu0 %v3639
      %v3926 = vpop.f32.mrf.mxu0
      %v3927 = vadd.f32 %v3669, %v3926
      %v3928 = vpop.f32.mrf.mxu0
      %3929 = vmatprep.mubr.f32.mxu0 %v3723
      %3930 = vmatmul.mubr.f32.gmra.mxu0 %v3640
      %v3931 = vpop.f32.mrf.mxu0
      %v3932 = vadd.f32 %v3669, %v3931
      %v3933 = vpop.f32.mrf.mxu0
      %3934 = vmatprep.mubr.f32.mxu0 %v3725
      %3935 = vmatmul.mubr.f32.gmra.mxu0 %v3641
      %v3936 = vpop.f32.mrf.mxu0
      %v3937 = vadd.f32 %v3669, %v3936
      %v3938 = vpop.f32.mrf.mxu0
      %3939 = vmatprep.mubr.f32.mxu0 %v3727
      %3940 = vmatmul.mubr.f32.gmra.mxu0 %v3642
      %v3941 = vpop.f32.mrf.mxu0
      %v3942 = vadd.f32 %v3669, %v3941
      %v3943 = vpop.f32.mrf.mxu0
      %3944 = vmatprep.mubr.f32.mxu0 %v3729
      %3945 = vmatmul.mubr.f32.gmra.mxu0 %v3643
      %v3946 = vpop.f32.mrf.mxu0
      %v3947 = vadd.f32 %v3669, %v3946
      %v3948 = vpop.f32.mrf.mxu0
      %3949 = vmatprep.mubr.f32.mxu0 %v3731
      %3950 = vmatmul.mubr.f32.gmra.mxu0 %v3644
      %v3951 = vpop.f32.mrf.mxu0
      %v3952 = vadd.f32 %v3669, %v3951
      %v3953 = vpop.f32.mrf.mxu0
      %3954 = vmatprep.mubr.f32.mxu0 %v3733
      %3955 = vmatmul.mubr.f32.gmra.mxu0 %v3645
      %v3956 = vpop.f32.mrf.mxu0
      %v3957 = vadd.f32 %v3669, %v3956
      %v3958 = vpop.f32.mrf.mxu0
      %3959 = vdwg.mxu0
      %v3960 = vmax.f32 %v3802, 0.0
      %v3961 = vmax.f32 %v3807, 0.0
      %v3962 = vmax.f32 %v3812, 0.0
      %v3963 = vmax.f32 %v3817, 0.0
      %v3964 = vmax.f32 %v3822, 0.0
      %v3965 = vmax.f32 %v3827, 0.0
      %v3966 = vmax.f32 %v3832, 0.0
      %v3967 = vmax.f32 %v3837, 0.0
      %v3968 = vmax.f32 %v3842, 0.0
      %v3969 = vmax.f32 %v3847, 0.0
      %v3970 = vmax.f32 %v3852, 0.0
      %v3971 = vmax.f32 %v3857, 0.0
      %v3972 = vmax.f32 %v3862, 0.0
      %v3973 = vmax.f32 %v3867, 0.0
      %v3974 = vmax.f32 %v3872, 0.0
      %v3975 = vmax.f32 %v3877, 0.0
      %v3976 = vmax.f32 %v3882, 0.0
      %v3977 = vmax.f32 %v3887, 0.0
      %v3978 = vmax.f32 %v3892, 0.0
      %v3979 = vmax.f32 %v3897, 0.0
      %v3980 = vmax.f32 %v3902, 0.0
      %v3981 = vmax.f32 %v3907, 0.0
      %v3982 = vmax.f32 %v3912, 0.0
      %v3983 = vmax.f32 %v3917, 0.0
      %v3984 = vmax.f32 %v3922, 0.0
      %v3985 = vmax.f32 %v3927, 0.0
      %v3986 = vmax.f32 %v3932, 0.0
      %v3987 = vmax.f32 %v3937, 0.0
      %v3988 = vmax.f32 %v3942, 0.0
      %v3989 = vmax.f32 %v3947, 0.0
      %v3990 = vmax.f32 %v3952, 0.0
      %v3991 = vmax.f32 %v3957, 0.0
      %4024 = vrot.lane.b32.xlu0 %v3960, 16
      %v4025 = vpop.permute.xlu0 %4024
      %4026 = vrot.lane.b32.xlu0 %v3961, 16
      %v4027 = vpop.permute.xlu0 %4026
      %4028 = vrot.lane.b32.xlu0 %v3962, 16
      %v4029 = vpop.permute.xlu0 %4028
      %4030 = vrot.lane.b32.xlu0 %v3963, 16
      %v4031 = vpop.permute.xlu0 %4030
      %4032 = vrot.lane.b32.xlu0 %v3964, 16
      %v4033 = vpop.permute.xlu0 %4032
      %4034 = vrot.lane.b32.xlu0 %v3965, 16
      %v4035 = vpop.permute.xlu0 %4034
      %4036 = vrot.lane.b32.xlu0 %v3966, 16
      %v4037 = vpop.permute.xlu0 %4036
      %4038 = vrot.lane.b32.xlu0 %v3967, 16
      %v4039 = vpop.permute.xlu0 %4038
      %4040 = vrot.lane.b32.xlu0 %v3968, 16
      %v4041 = vpop.permute.xlu0 %4040
      %4042 = vrot.lane.b32.xlu0 %v3969, 16
      %v4043 = vpop.permute.xlu0 %4042
      %4044 = vrot.lane.b32.xlu0 %v3970, 16
      %v4045 = vpop.permute.xlu0 %4044
      %4046 = vrot.lane.b32.xlu0 %v3971, 16
      %v4047 = vpop.permute.xlu0 %4046
      %4048 = vrot.lane.b32.xlu0 %v3972, 16
      %v4049 = vpop.permute.xlu0 %4048
      %4050 = vrot.lane.b32.xlu0 %v3973, 16
      %v4051 = vpop.permute.xlu0 %4050
      %4052 = vrot.lane.b32.xlu0 %v3974, 16
      %v4053 = vpop.permute.xlu0 %4052
      %4054 = vrot.lane.b32.xlu0 %v3975, 16
      %v4055 = vpop.permute.xlu0 %4054
      %4056 = vrot.lane.b32.xlu0 %v3976, 16
      %v4057 = vpop.permute.xlu0 %4056
      %4058 = vrot.lane.b32.xlu0 %v3977, 16
      %v4059 = vpop.permute.xlu0 %4058
      %4060 = vrot.lane.b32.xlu0 %v3978, 16
      %v4061 = vpop.permute.xlu0 %4060
      %4062 = vrot.lane.b32.xlu0 %v3979, 16
      %v4063 = vpop.permute.xlu0 %4062
      %4064 = vrot.lane.b32.xlu0 %v3980, 16
      %v4065 = vpop.permute.xlu0 %4064
      %4066 = vrot.lane.b32.xlu0 %v3981, 16
      %v4067 = vpop.permute.xlu0 %4066
      %4068 = vrot.lane.b32.xlu0 %v3982, 16
      %v4069 = vpop.permute.xlu0 %4068
      %4070 = vrot.lane.b32.xlu0 %v3983, 16
      %v4071 = vpop.permute.xlu0 %4070
      %4072 = vrot.lane.b32.xlu0 %v3984, 16
      %v4073 = vpop.permute.xlu0 %4072
      %4074 = vrot.lane.b32.xlu0 %v3985, 16
      %v4075 = vpop.permute.xlu0 %4074
      %4076 = vrot.lane.b32.xlu0 %v3986, 16
      %v4077 = vpop.permute.xlu0 %4076
      %4078 = vrot.lane.b32.xlu0 %v3987, 16
      %v4079 = vpop.permute.xlu0 %4078
      %4080 = vrot.lane.b32.xlu0 %v3988, 16
      %v4081 = vpop.permute.xlu0 %4080
      %4082 = vrot.lane.b32.xlu0 %v3989, 16
      %v4083 = vpop.permute.xlu0 %4082
      %4084 = vrot.lane.b32.xlu0 %v3990, 16
      %v4085 = vpop.permute.xlu0 %4084
      %4086 = vrot.lane.b32.xlu0 %v3991, 16
      %v4087 = vpop.permute.xlu0 %4086
      %vm4120 = vcmask 195712
      %4121 = vst.msk [vmem:[%s438 + $0x8] sm:$0xff] %vm4120, %v4025
      %4122 = vst.msk [vmem:[%s438 + $0x10] sm:$0xff] %vm4120, %v4027
      %4123 = vst.msk [vmem:[%s438 + $0x28] sm:$0xff] %vm4120, %v4029
      %4124 = vst.msk [vmem:[%s438 + $0x30] sm:$0xff] %vm4120, %v4031
      %4125 = vst.msk [vmem:[%s438 + $0x48] sm:$0xff] %vm4120, %v4033
      %4126 = vst.msk [vmem:[%s438 + $0x50] sm:$0xff] %vm4120, %v4035
      %4127 = vst.msk [vmem:[%s438 + $0x68] sm:$0xff] %vm4120, %v4037
      %4128 = vst.msk [vmem:[%s438 + $0x70] sm:$0xff] %vm4120, %v4039
      %4129 = vst.msk [vmem:[%s438 + $0x88] sm:$0xff] %vm4120, %v4041
      %4130 = vst.msk [vmem:[%s438 + $0x90] sm:$0xff] %vm4120, %v4043
      %4131 = vst.msk [vmem:[%s438 + $0xa8] sm:$0xff] %vm4120, %v4045
      %4132 = vst.msk [vmem:[%s438 + $0xb0] sm:$0xff] %vm4120, %v4047
      %4133 = vst.msk [vmem:[%s438 + $0xc8] sm:$0xff] %vm4120, %v4049
      %4134 = vst.msk [vmem:[%s438 + $0xd0] sm:$0xff] %vm4120, %v4051
      %4135 = vst.msk [vmem:[%s438 + $0xe8] sm:$0xff] %vm4120, %v4053
      %4136 = vst.msk [vmem:[%s438 + $0xf0] sm:$0xff] %vm4120, %v4055
      %4137 = vst.msk [vmem:[%s438 + $0x108] sm:$0xff] %vm4120, %v4057
      %4138 = vst.msk [vmem:[%s438 + $0x110] sm:$0xff] %vm4120, %v4059
      %4139 = vst.msk [vmem:[%s438 + $0x128] sm:$0xff] %vm4120, %v4061
      %4140 = vst.msk [vmem:[%s438 + $0x130] sm:$0xff] %vm4120, %v4063
      %4141 = vst.msk [vmem:[%s438 + $0x148] sm:$0xff] %vm4120, %v4065
      %4142 = vst.msk [vmem:[%s438 + $0x150] sm:$0xff] %vm4120, %v4067
      %4143 = vst.msk [vmem:[%s438 + $0x168] sm:$0xff] %vm4120, %v4069
      %4144 = vst.msk [vmem:[%s438 + $0x170] sm:$0xff] %vm4120, %v4071
      %4145 = vst.msk [vmem:[%s438 + $0x188] sm:$0xff] %vm4120, %v4073
      %4146 = vst.msk [vmem:[%s438 + $0x190] sm:$0xff] %vm4120, %v4075
      %4147 = vst.msk [vmem:[%s438 + $0x1a8] sm:$0xff] %vm4120, %v4077
      %4148 = vst.msk [vmem:[%s438 + $0x1b0] sm:$0xff] %vm4120, %v4079
      %4149 = vst.msk [vmem:[%s438 + $0x1c8] sm:$0xff] %vm4120, %v4081
      %4150 = vst.msk [vmem:[%s438 + $0x1d0] sm:$0xff] %vm4120, %v4083
      %4151 = vst.msk [vmem:[%s438 + $0x1e8] sm:$0xff] %vm4120, %v4085
      %4152 = vst.msk [vmem:[%s438 + $0x1f0] sm:$0xff] %vm4120, %v4087
      %v4153 = vld [vmem:[#allocation2] sm:$0xff]
      %v4154 = vld [vmem:[#allocation2 + $0x8] sm:$0xff]
      %v4155 = vld [vmem:[#allocation2 + $0x10] sm:$0xff]
      %v4156 = vld [vmem:[#allocation2 + $0x18] sm:$0xff]
      %v4157 = vld [vmem:[#allocation2 + $0x20] sm:$0xff]
      %v4158 = vld [vmem:[#allocation2 + $0x28] sm:$0xff]
      %v4159 = vld [vmem:[#allocation2 + $0x30] sm:$0xff]
      %v4160 = vld [vmem:[#allocation2 + $0x38] sm:$0xff]
      %v4161 = vld [vmem:[#allocation2 + $0x40] sm:$0xff]
      %v4162 = vld [vmem:[#allocation2 + $0x48] sm:$0xff]
      %v4163 = vld [vmem:[#allocation2 + $0x50] sm:$0xff]
      %v4164 = vld [vmem:[#allocation2 + $0x58] sm:$0xff]
      %v4165 = vld [vmem:[#allocation2 + $0x60] sm:$0xff]
      %v4166 = vld [vmem:[#allocation2 + $0x68] sm:$0xff]
      %v4167 = vld [vmem:[#allocation2 + $0x70] sm:$0xff]
      %v4168 = vld [vmem:[#allocation2 + $0x78] sm:$0xff]
      %v4169 = vld [vmem:[#allocation2 + $0x80] sm:$0xff]
      %v4170 = vld [vmem:[#allocation2 + $0x88] sm:$0xff]
      %v4171 = vld [vmem:[#allocation2 + $0x90] sm:$0xff]
      %v4172 = vld [vmem:[#allocation2 + $0x98] sm:$0xff]
      %v4173 = vld [vmem:[#allocation2 + $0xa0] sm:$0xff]
      %v4174 = vld [vmem:[#allocation2 + $0xa8] sm:$0xff]
      %v4175 = vld [vmem:[#allocation2 + $0xb0] sm:$0xff]
      %v4176 = vld [vmem:[#allocation2 + $0xb8] sm:$0xff]
      %v4177 = vld [vmem:[#allocation2 + $0xc0] sm:$0xff]
      %v4178 = vld [vmem:[#allocation2 + $0xc8] sm:$0xff]
      %v4179 = vld [vmem:[#allocation2 + $0xd0] sm:$0xff]
      %v4180 = vld [vmem:[#allocation2 + $0xd8] sm:$0xff]
      %v4181 = vld [vmem:[#allocation2 + $0xe0] sm:$0xff]
      %v4182 = vld [vmem:[#allocation2 + $0xe8] sm:$0xff]
      %v4183 = vld [vmem:[#allocation2 + $0xf0] sm:$0xff]
      %v4184 = vld [vmem:[#allocation2 + $0xf8] sm:$0xff]
      %v4185 = vld [vmem:[#allocation2 + $0x100] sm:$0xff]
      %v4186 = vld [vmem:[#allocation2 + $0x108] sm:$0xff]
      %v4187 = vld [vmem:[#allocation2 + $0x110] sm:$0xff]
      %v4188 = vld [vmem:[#allocation2 + $0x118] sm:$0xff]
      %v4189 = vld [vmem:[#allocation2 + $0x120] sm:$0xff]
      %v4190 = vld [vmem:[#allocation2 + $0x128] sm:$0xff]
      %v4191 = vld [vmem:[#allocation2 + $0x130] sm:$0xff]
      %v4192 = vld [vmem:[#allocation2 + $0x138] sm:$0xff]
      %v4193 = vld [vmem:[#allocation2 + $0x140] sm:$0xff]
      %v4194 = vld [vmem:[#allocation2 + $0x148] sm:$0xff]
      %v4195 = vld [vmem:[#allocation2 + $0x150] sm:$0xff]
      %v4196 = vld [vmem:[#allocation2 + $0x158] sm:$0xff]
      %v4197 = vld [vmem:[#allocation2 + $0x160] sm:$0xff]
      %v4198 = vld [vmem:[#allocation2 + $0x168] sm:$0xff]
      %v4199 = vld [vmem:[#allocation2 + $0x170] sm:$0xff]
      %v4200 = vld [vmem:[#allocation2 + $0x178] sm:$0xff]
      %v4201 = vld [vmem:[#allocation2 + $0x180] sm:$0xff]
      %v4202 = vld [vmem:[#allocation2 + $0x188] sm:$0xff]
      %v4203 = vld [vmem:[#allocation2 + $0x190] sm:$0xff]
      %v4204 = vld [vmem:[#allocation2 + $0x198] sm:$0xff]
      %v4205 = vld [vmem:[#allocation2 + $0x1a0] sm:$0xff]
      %v4206 = vld [vmem:[#allocation2 + $0x1a8] sm:$0xff]
      %v4207 = vld [vmem:[#allocation2 + $0x1b0] sm:$0xff]
      %v4208 = vld [vmem:[#allocation2 + $0x1b8] sm:$0xff]
      %v4209 = vld [vmem:[#allocation2 + $0x1c0] sm:$0xff]
      %v4210 = vld [vmem:[#allocation2 + $0x1c8] sm:$0xff]
      %v4211 = vld [vmem:[#allocation2 + $0x1d0] sm:$0xff]
      %v4212 = vld [vmem:[#allocation2 + $0x1d8] sm:$0xff]
      %v4213 = vld [vmem:[#allocation2 + $0x1e0] sm:$0xff]
      %v4214 = vld [vmem:[#allocation2 + $0x1e8] sm:$0xff]
      %v4215 = vld [vmem:[#allocation2 + $0x1f0] sm:$0xff]
      %v4216 = vld [vmem:[#allocation2 + $0x1f8] sm:$0xff]
      %v4217 = vld [vmem:[#allocation2 + $0x200] sm:$0xff]
      %v4218 = vld [vmem:[#allocation2 + $0x208] sm:$0xff]
      %v4219 = vld [vmem:[#allocation2 + $0x210] sm:$0xff]
      %v4220 = vld [vmem:[#allocation2 + $0x218] sm:$0xff]
      %v4221 = vld [vmem:[#allocation2 + $0x220] sm:$0xff]
      %v4222 = vld [vmem:[#allocation2 + $0x228] sm:$0xff]
      %v4223 = vld [vmem:[#allocation2 + $0x230] sm:$0xff]
      %v4224 = vld [vmem:[#allocation2 + $0x238] sm:$0xff]
      %v4273 = vrot.slane %v4153, 7
      %v4274 = vrot.slane %v4154, 7
      %v4275 = vsel %vm592, %v4273, %v4274
      %v4276 = vrot.slane %v4155, 7
      %v4277 = vsel %vm592, %v4274, %v4276
      %v4278 = vrot.slane %v4157, 7
      %v4279 = vrot.slane %v4158, 7
      %v4280 = vsel %vm592, %v4278, %v4279
      %v4281 = vrot.slane %v4159, 7
      %v4282 = vsel %vm592, %v4279, %v4281
      %v4283 = vrot.slane %v4161, 7
      %v4284 = vrot.slane %v4162, 7
      %v4285 = vsel %vm592, %v4283, %v4284
      %v4286 = vrot.slane %v4163, 7
      %v4287 = vsel %vm592, %v4284, %v4286
      %v4288 = vrot.slane %v4165, 7
      %v4289 = vrot.slane %v4166, 7
      %v4290 = vsel %vm592, %v4288, %v4289
      %v4291 = vrot.slane %v4167, 7
      %v4292 = vsel %vm592, %v4289, %v4291
      %v4293 = vrot.slane %v4169, 7
      %v4294 = vrot.slane %v4170, 7
      %v4295 = vsel %vm592, %v4293, %v4294
      %v4296 = vrot.slane %v4171, 7
      %v4297 = vsel %vm592, %v4294, %v4296
      %v4298 = vrot.slane %v4173, 7
      %v4299 = vrot.slane %v4174, 7
      %v4300 = vsel %vm592, %v4298, %v4299
      %v4301 = vrot.slane %v4175, 7
      %v4302 = vsel %vm592, %v4299, %v4301
      %v4303 = vrot.slane %v4177, 7
      %v4304 = vrot.slane %v4178, 7
      %v4305 = vsel %vm592, %v4303, %v4304
      %v4306 = vrot.slane %v4179, 7
      %v4307 = vsel %vm592, %v4304, %v4306
      %v4308 = vrot.slane %v4181, 7
      %v4309 = vrot.slane %v4182, 7
      %v4310 = vsel %vm592, %v4308, %v4309
      %v4311 = vrot.slane %v4183, 7
      %v4312 = vsel %vm592, %v4309, %v4311
      %v4313 = vrot.slane %v4185, 7
      %v4314 = vrot.slane %v4186, 7
      %v4315 = vsel %vm592, %v4313, %v4314
      %v4316 = vrot.slane %v4187, 7
      %v4317 = vsel %vm592, %v4314, %v4316
      %v4318 = vrot.slane %v4189, 7
      %v4319 = vrot.slane %v4190, 7
      %v4320 = vsel %vm592, %v4318, %v4319
      %v4321 = vrot.slane %v4191, 7
      %v4322 = vsel %vm592, %v4319, %v4321
      %v4323 = vrot.slane %v4193, 7
      %v4324 = vrot.slane %v4194, 7
      %v4325 = vsel %vm592, %v4323, %v4324
      %v4326 = vrot.slane %v4195, 7
      %v4327 = vsel %vm592, %v4324, %v4326
      %v4328 = vrot.slane %v4197, 7
      %v4329 = vrot.slane %v4198, 7
      %v4330 = vsel %vm592, %v4328, %v4329
      %v4331 = vrot.slane %v4199, 7
      %v4332 = vsel %vm592, %v4329, %v4331
      %v4333 = vrot.slane %v4201, 7
      %v4334 = vrot.slane %v4202, 7
      %v4335 = vsel %vm592, %v4333, %v4334
      %v4336 = vrot.slane %v4203, 7
      %v4337 = vsel %vm592, %v4334, %v4336
      %v4338 = vrot.slane %v4205, 7
      %v4339 = vrot.slane %v4206, 7
      %v4340 = vsel %vm592, %v4338, %v4339
      %v4341 = vrot.slane %v4207, 7
      %v4342 = vsel %vm592, %v4339, %v4341
      %v4343 = vrot.slane %v4209, 7
      %v4344 = vrot.slane %v4210, 7
      %v4345 = vsel %vm592, %v4343, %v4344
      %v4346 = vrot.slane %v4211, 7
      %v4347 = vsel %vm592, %v4344, %v4346
      %v4348 = vrot.slane %v4213, 7
      %v4349 = vrot.slane %v4214, 7
      %v4350 = vsel %vm592, %v4348, %v4349
      %v4351 = vrot.slane %v4215, 7
      %v4352 = vsel %vm592, %v4349, %v4351
      %v4401 = vrot.slane %v4154, 1
      %v4402 = vrot.slane %v4155, 1
      %v4403 = vsel %vm721, %v4401, %v4402
      %v4404 = vrot.slane %v4156, 1
      %v4405 = vsel %vm721, %v4402, %v4404
      %v4406 = vrot.slane %v4158, 1
      %v4407 = vrot.slane %v4159, 1
      %v4408 = vsel %vm721, %v4406, %v4407
      %v4409 = vrot.slane %v4160, 1
      %v4410 = vsel %vm721, %v4407, %v4409
      %v4411 = vrot.slane %v4162, 1
      %v4412 = vrot.slane %v4163, 1
      %v4413 = vsel %vm721, %v4411, %v4412
      %v4414 = vrot.slane %v4164, 1
      %v4415 = vsel %vm721, %v4412, %v4414
      %v4416 = vrot.slane %v4166, 1
      %v4417 = vrot.slane %v4167, 1
      %v4418 = vsel %vm721, %v4416, %v4417
      %v4419 = vrot.slane %v4168, 1
      %v4420 = vsel %vm721, %v4417, %v4419
      %v4421 = vrot.slane %v4170, 1
      %v4422 = vrot.slane %v4171, 1
      %v4423 = vsel %vm721, %v4421, %v4422
      %v4424 = vrot.slane %v4172, 1
      %v4425 = vsel %vm721, %v4422, %v4424
      %v4426 = vrot.slane %v4174, 1
      %v4427 = vrot.slane %v4175, 1
      %v4428 = vsel %vm721, %v4426, %v4427
      %v4429 = vrot.slane %v4176, 1
      %v4430 = vsel %vm721, %v4427, %v4429
      %v4431 = vrot.slane %v4178, 1
      %v4432 = vrot.slane %v4179, 1
      %v4433 = vsel %vm721, %v4431, %v4432
      %v4434 = vrot.slane %v4180, 1
      %v4435 = vsel %vm721, %v4432, %v4434
      %v4436 = vrot.slane %v4182, 1
      %v4437 = vrot.slane %v4183, 1
      %v4438 = vsel %vm721, %v4436, %v4437
      %v4439 = vrot.slane %v4184, 1
      %v4440 = vsel %vm721, %v4437, %v4439
      %v4441 = vrot.slane %v4186, 1
      %v4442 = vrot.slane %v4187, 1
      %v4443 = vsel %vm721, %v4441, %v4442
      %v4444 = vrot.slane %v4188, 1
      %v4445 = vsel %vm721, %v4442, %v4444
      %v4446 = vrot.slane %v4190, 1
      %v4447 = vrot.slane %v4191, 1
      %v4448 = vsel %vm721, %v4446, %v4447
      %v4449 = vrot.slane %v4192, 1
      %v4450 = vsel %vm721, %v4447, %v4449
      %v4451 = vrot.slane %v4194, 1
      %v4452 = vrot.slane %v4195, 1
      %v4453 = vsel %vm721, %v4451, %v4452
      %v4454 = vrot.slane %v4196, 1
      %v4455 = vsel %vm721, %v4452, %v4454
      %v4456 = vrot.slane %v4198, 1
      %v4457 = vrot.slane %v4199, 1
      %v4458 = vsel %vm721, %v4456, %v4457
      %v4459 = vrot.slane %v4200, 1
      %v4460 = vsel %vm721, %v4457, %v4459
      %v4461 = vrot.slane %v4202, 1
      %v4462 = vrot.slane %v4203, 1
      %v4463 = vsel %vm721, %v4461, %v4462
      %v4464 = vrot.slane %v4204, 1
      %v4465 = vsel %vm721, %v4462, %v4464
      %v4466 = vrot.slane %v4206, 1
      %v4467 = vrot.slane %v4207, 1
      %v4468 = vsel %vm721, %v4466, %v4467
      %v4469 = vrot.slane %v4208, 1
      %v4470 = vsel %vm721, %v4467, %v4469
      %v4471 = vrot.slane %v4210, 1
      %v4472 = vrot.slane %v4211, 1
      %v4473 = vsel %vm721, %v4471, %v4472
      %v4474 = vrot.slane %v4212, 1
      %v4475 = vsel %vm721, %v4472, %v4474
      %v4476 = vrot.slane %v4214, 1
      %v4477 = vrot.slane %v4215, 1
      %v4478 = vsel %vm721, %v4476, %v4477
      %v4479 = vrot.slane %v4216, 1
      %v4480 = vsel %vm721, %v4477, %v4479
      %v4484 = vrot.slane %v4217, 7
      %v4485 = vrot.slane %v4218, 7
      %v4486 = vsel %vm592, %v4484, %v4485
      %v4487 = vrot.slane %v4219, 7
      %v4488 = vsel %vm592, %v4485, %v4487
      %v4490 = vrot.slane %v4218, 1
      %v4491 = vrot.slane %v4219, 1
      %v4492 = vsel %vm721, %v4490, %v4491
      %v4493 = vrot.slane %v4220, 1
      %v4494 = vsel %vm721, %v4491, %v4493
      %v4498 = vrot.slane %v4221, 7
      %v4499 = vrot.slane %v4222, 7
      %v4500 = vsel %vm592, %v4498, %v4499
      %v4501 = vrot.slane %v4223, 7
      %v4502 = vsel %vm592, %v4499, %v4501
      %v4504 = vrot.slane %v4222, 1
      %v4505 = vrot.slane %v4223, 1
      %v4506 = vsel %vm721, %v4504, %v4505
      %v4507 = vrot.slane %v4224, 1
      %v4508 = vsel %vm721, %v4505, %v4507
      %4509 = vrot.lane.b32.xlu0 %v4154, 24
      %v4510 = vpop.permute.xlu0 %4509
      %4511 = vrot.lane.b32.xlu0 %v4155, 24
      %v4512 = vpop.permute.xlu0 %4511
      %4513 = vrot.lane.b32.xlu0 %v4158, 24
      %v4514 = vpop.permute.xlu0 %4513
      %4515 = vrot.lane.b32.xlu0 %v4159, 24
      %v4516 = vpop.permute.xlu0 %4515
      %4517 = vrot.lane.b32.xlu0 %v4162, 24
      %v4518 = vpop.permute.xlu0 %4517
      %4519 = vrot.lane.b32.xlu0 %v4163, 24
      %v4520 = vpop.permute.xlu0 %4519
      %4521 = vrot.lane.b32.xlu0 %v4166, 24
      %v4522 = vpop.permute.xlu0 %4521
      %4523 = vrot.lane.b32.xlu0 %v4167, 24
      %v4524 = vpop.permute.xlu0 %4523
      %4525 = vrot.lane.b32.xlu0 %v4170, 24
      %v4526 = vpop.permute.xlu0 %4525
      %4527 = vrot.lane.b32.xlu0 %v4171, 24
      %v4528 = vpop.permute.xlu0 %4527
      %4529 = vrot.lane.b32.xlu0 %v4174, 24
      %v4530 = vpop.permute.xlu0 %4529
      %4531 = vrot.lane.b32.xlu0 %v4175, 24
      %v4532 = vpop.permute.xlu0 %4531
      %4533 = vrot.lane.b32.xlu0 %v4178, 24
      %v4534 = vpop.permute.xlu0 %4533
      %4535 = vrot.lane.b32.xlu0 %v4179, 24
      %v4536 = vpop.permute.xlu0 %4535
      %4537 = vrot.lane.b32.xlu0 %v4182, 24
      %v4538 = vpop.permute.xlu0 %4537
      %4539 = vrot.lane.b32.xlu0 %v4183, 24
      %v4540 = vpop.permute.xlu0 %4539
      %4541 = vrot.lane.b32.xlu0 %v4186, 24
      %v4542 = vpop.permute.xlu0 %4541
      %4543 = vrot.lane.b32.xlu0 %v4187, 24
      %v4544 = vpop.permute.xlu0 %4543
      %4545 = vrot.lane.b32.xlu0 %v4190, 24
      %v4546 = vpop.permute.xlu0 %4545
      %4547 = vrot.lane.b32.xlu0 %v4191, 24
      %v4548 = vpop.permute.xlu0 %4547
      %4549 = vrot.lane.b32.xlu0 %v4194, 24
      %v4550 = vpop.permute.xlu0 %4549
      %4551 = vrot.lane.b32.xlu0 %v4195, 24
      %v4552 = vpop.permute.xlu0 %4551
      %4553 = vrot.lane.b32.xlu0 %v4198, 24
      %v4554 = vpop.permute.xlu0 %4553
      %4555 = vrot.lane.b32.xlu0 %v4199, 24
      %v4556 = vpop.permute.xlu0 %4555
      %4557 = vrot.lane.b32.xlu0 %v4202, 24
      %v4558 = vpop.permute.xlu0 %4557
      %4559 = vrot.lane.b32.xlu0 %v4203, 24
      %v4560 = vpop.permute.xlu0 %4559
      %4561 = vrot.lane.b32.xlu0 %v4206, 24
      %v4562 = vpop.permute.xlu0 %4561
      %4563 = vrot.lane.b32.xlu0 %v4207, 24
      %v4564 = vpop.permute.xlu0 %4563
      %4565 = vrot.lane.b32.xlu0 %v4210, 24
      %v4566 = vpop.permute.xlu0 %4565
      %4567 = vrot.lane.b32.xlu0 %v4211, 24
      %v4568 = vpop.permute.xlu0 %4567
      %4569 = vrot.lane.b32.xlu0 %v4214, 24
      %v4570 = vpop.permute.xlu0 %4569
      %4571 = vrot.lane.b32.xlu0 %v4215, 24
      %v4572 = vpop.permute.xlu0 %4571
      %4605 = vrot.lane.b32.xlu0 %v4403, 48
      %v4606 = vpop.permute.xlu0 %4605
      %4607 = vrot.lane.b32.xlu0 %v4405, 48
      %v4608 = vpop.permute.xlu0 %4607
      %4609 = vrot.lane.b32.xlu0 %v4408, 48
      %v4610 = vpop.permute.xlu0 %4609
      %4611 = vrot.lane.b32.xlu0 %v4410, 48
      %v4612 = vpop.permute.xlu0 %4611
      %4613 = vrot.lane.b32.xlu0 %v4413, 48
      %v4614 = vpop.permute.xlu0 %4613
      %4615 = vrot.lane.b32.xlu0 %v4415, 48
      %v4616 = vpop.permute.xlu0 %4615
      %4617 = vrot.lane.b32.xlu0 %v4418, 48
      %v4618 = vpop.permute.xlu0 %4617
      %4619 = vrot.lane.b32.xlu0 %v4420, 48
      %v4620 = vpop.permute.xlu0 %4619
      %4621 = vrot.lane.b32.xlu0 %v4423, 48
      %v4622 = vpop.permute.xlu0 %4621
      %4623 = vrot.lane.b32.xlu0 %v4425, 48
      %v4624 = vpop.permute.xlu0 %4623
      %4625 = vrot.lane.b32.xlu0 %v4428, 48
      %v4626 = vpop.permute.xlu0 %4625
      %4627 = vrot.lane.b32.xlu0 %v4430, 48
      %v4628 = vpop.permute.xlu0 %4627
      %4629 = vrot.lane.b32.xlu0 %v4433, 48
      %v4630 = vpop.permute.xlu0 %4629
      %4631 = vrot.lane.b32.xlu0 %v4435, 48
      %v4632 = vpop.permute.xlu0 %4631
      %4633 = vrot.lane.b32.xlu0 %v4438, 48
      %v4634 = vpop.permute.xlu0 %4633
      %4635 = vrot.lane.b32.xlu0 %v4440, 48
      %v4636 = vpop.permute.xlu0 %4635
      %4637 = vrot.lane.b32.xlu0 %v4443, 48
      %v4638 = vpop.permute.xlu0 %4637
      %4639 = vrot.lane.b32.xlu0 %v4445, 48
      %v4640 = vpop.permute.xlu0 %4639
      %4641 = vrot.lane.b32.xlu0 %v4448, 48
      %v4642 = vpop.permute.xlu0 %4641
      %4643 = vrot.lane.b32.xlu0 %v4450, 48
      %v4644 = vpop.permute.xlu0 %4643
      %4645 = vrot.lane.b32.xlu0 %v4453, 48
      %v4646 = vpop.permute.xlu0 %4645
      %4647 = vrot.lane.b32.xlu0 %v4455, 48
      %v4648 = vpop.permute.xlu0 %4647
      %4649 = vrot.lane.b32.xlu0 %v4458, 48
      %v4650 = vpop.permute.xlu0 %4649
      %4651 = vrot.lane.b32.xlu0 %v4460, 48
      %v4652 = vpop.permute.xlu0 %4651
      %4653 = vrot.lane.b32.xlu0 %v4463, 48
      %v4654 = vpop.permute.xlu0 %4653
      %4655 = vrot.lane.b32.xlu0 %v4465, 48
      %v4656 = vpop.permute.xlu0 %4655
      %4657 = vrot.lane.b32.xlu0 %v4468, 48
      %v4658 = vpop.permute.xlu0 %4657
      %4659 = vrot.lane.b32.xlu0 %v4470, 48
      %v4660 = vpop.permute.xlu0 %4659
      %4661 = vrot.lane.b32.xlu0 %v4473, 48
      %v4662 = vpop.permute.xlu0 %4661
      %4663 = vrot.lane.b32.xlu0 %v4475, 48
      %v4664 = vpop.permute.xlu0 %4663
      %4665 = vrot.lane.b32.xlu0 %v4478, 48
      %v4666 = vpop.permute.xlu0 %4665
      %4667 = vrot.lane.b32.xlu0 %v4480, 48
      %v4668 = vpop.permute.xlu0 %4667
      %4701 = vrot.lane.b32.xlu0 %v4280, 72
      %v4702 = vpop.permute.xlu0 %4701
      %4703 = vrot.lane.b32.xlu0 %v4282, 72
      %v4704 = vpop.permute.xlu0 %4703
      %4705 = vrot.lane.b32.xlu0 %v4285, 72
      %v4706 = vpop.permute.xlu0 %4705
      %4707 = vrot.lane.b32.xlu0 %v4287, 72
      %v4708 = vpop.permute.xlu0 %4707
      %4709 = vrot.lane.b32.xlu0 %v4290, 72
      %v4710 = vpop.permute.xlu0 %4709
      %4711 = vrot.lane.b32.xlu0 %v4292, 72
      %v4712 = vpop.permute.xlu0 %4711
      %4713 = vrot.lane.b32.xlu0 %v4295, 72
      %v4714 = vpop.permute.xlu0 %4713
      %4715 = vrot.lane.b32.xlu0 %v4297, 72
      %v4716 = vpop.permute.xlu0 %4715
      %4717 = vrot.lane.b32.xlu0 %v4300, 72
      %v4718 = vpop.permute.xlu0 %4717
      %4719 = vrot.lane.b32.xlu0 %v4302, 72
      %v4720 = vpop.permute.xlu0 %4719
      %4721 = vrot.lane.b32.xlu0 %v4305, 72
      %v4722 = vpop.permute.xlu0 %4721
      %4723 = vrot.lane.b32.xlu0 %v4307, 72
      %v4724 = vpop.permute.xlu0 %4723
      %4725 = vrot.lane.b32.xlu0 %v4310, 72
      %v4726 = vpop.permute.xlu0 %4725
      %4727 = vrot.lane.b32.xlu0 %v4312, 72
      %v4728 = vpop.permute.xlu0 %4727
      %4729 = vrot.lane.b32.xlu0 %v4315, 72
      %v4730 = vpop.permute.xlu0 %4729
      %4731 = vrot.lane.b32.xlu0 %v4317, 72
      %v4732 = vpop.permute.xlu0 %4731
      %4733 = vrot.lane.b32.xlu0 %v4320, 72
      %v4734 = vpop.permute.xlu0 %4733
      %4735 = vrot.lane.b32.xlu0 %v4322, 72
      %v4736 = vpop.permute.xlu0 %4735
      %4737 = vrot.lane.b32.xlu0 %v4325, 72
      %v4738 = vpop.permute.xlu0 %4737
      %4739 = vrot.lane.b32.xlu0 %v4327, 72
      %v4740 = vpop.permute.xlu0 %4739
      %4741 = vrot.lane.b32.xlu0 %v4330, 72
      %v4742 = vpop.permute.xlu0 %4741
      %4743 = vrot.lane.b32.xlu0 %v4332, 72
      %v4744 = vpop.permute.xlu0 %4743
      %4745 = vrot.lane.b32.xlu0 %v4335, 72
      %v4746 = vpop.permute.xlu0 %4745
      %4747 = vrot.lane.b32.xlu0 %v4337, 72
      %v4748 = vpop.permute.xlu0 %4747
      %4749 = vrot.lane.b32.xlu0 %v4340, 72
      %v4750 = vpop.permute.xlu0 %4749
      %4751 = vrot.lane.b32.xlu0 %v4342, 72
      %v4752 = vpop.permute.xlu0 %4751
      %4753 = vrot.lane.b32.xlu0 %v4345, 72
      %v4754 = vpop.permute.xlu0 %4753
      %4755 = vrot.lane.b32.xlu0 %v4347, 72
      %v4756 = vpop.permute.xlu0 %4755
      %4757 = vrot.lane.b32.xlu0 %v4350, 72
      %v4758 = vpop.permute.xlu0 %4757
      %4759 = vrot.lane.b32.xlu0 %v4352, 72
      %v4760 = vpop.permute.xlu0 %4759
      %4761 = vrot.lane.b32.xlu0 %v4486, 72
      %v4762 = vpop.permute.xlu0 %4761
      %4763 = vrot.lane.b32.xlu0 %v4488, 72
      %v4764 = vpop.permute.xlu0 %4763
      %4797 = vrot.lane.b32.xlu0 %v4158, 96
      %v4798 = vpop.permute.xlu0 %4797
      %4799 = vrot.lane.b32.xlu0 %v4159, 96
      %v4800 = vpop.permute.xlu0 %4799
      %4801 = vrot.lane.b32.xlu0 %v4162, 96
      %v4802 = vpop.permute.xlu0 %4801
      %4803 = vrot.lane.b32.xlu0 %v4163, 96
      %v4804 = vpop.permute.xlu0 %4803
      %4805 = vrot.lane.b32.xlu0 %v4166, 96
      %v4806 = vpop.permute.xlu0 %4805
      %4807 = vrot.lane.b32.xlu0 %v4167, 96
      %v4808 = vpop.permute.xlu0 %4807
      %4809 = vrot.lane.b32.xlu0 %v4170, 96
      %v4810 = vpop.permute.xlu0 %4809
      %4811 = vrot.lane.b32.xlu0 %v4171, 96
      %v4812 = vpop.permute.xlu0 %4811
      %4813 = vrot.lane.b32.xlu0 %v4174, 96
      %v4814 = vpop.permute.xlu0 %4813
      %4815 = vrot.lane.b32.xlu0 %v4175, 96
      %v4816 = vpop.permute.xlu0 %4815
      %4817 = vrot.lane.b32.xlu0 %v4178, 96
      %v4818 = vpop.permute.xlu0 %4817
      %4819 = vrot.lane.b32.xlu0 %v4179, 96
      %v4820 = vpop.permute.xlu0 %4819
      %4821 = vrot.lane.b32.xlu0 %v4182, 96
      %v4822 = vpop.permute.xlu0 %4821
      %4823 = vrot.lane.b32.xlu0 %v4183, 96
      %v4824 = vpop.permute.xlu0 %4823
      %4825 = vrot.lane.b32.xlu0 %v4186, 96
      %v4826 = vpop.permute.xlu0 %4825
      %4827 = vrot.lane.b32.xlu0 %v4187, 96
      %v4828 = vpop.permute.xlu0 %4827
      %4829 = vrot.lane.b32.xlu0 %v4190, 96
      %v4830 = vpop.permute.xlu0 %4829
      %4831 = vrot.lane.b32.xlu0 %v4191, 96
      %v4832 = vpop.permute.xlu0 %4831
      %4833 = vrot.lane.b32.xlu0 %v4194, 96
      %v4834 = vpop.permute.xlu0 %4833
      %4835 = vrot.lane.b32.xlu0 %v4195, 96
      %v4836 = vpop.permute.xlu0 %4835
      %4837 = vrot.lane.b32.xlu0 %v4198, 96
      %v4838 = vpop.permute.xlu0 %4837
      %4839 = vrot.lane.b32.xlu0 %v4199, 96
      %v4840 = vpop.permute.xlu0 %4839
      %4841 = vrot.lane.b32.xlu0 %v4202, 96
      %v4842 = vpop.permute.xlu0 %4841
      %4843 = vrot.lane.b32.xlu0 %v4203, 96
      %v4844 = vpop.permute.xlu0 %4843
      %4845 = vrot.lane.b32.xlu0 %v4206, 96
      %v4846 = vpop.permute.xlu0 %4845
      %4847 = vrot.lane.b32.xlu0 %v4207, 96
      %v4848 = vpop.permute.xlu0 %4847
      %4849 = vrot.lane.b32.xlu0 %v4210, 96
      %v4850 = vpop.permute.xlu0 %4849
      %4851 = vrot.lane.b32.xlu0 %v4211, 96
      %v4852 = vpop.permute.xlu0 %4851
      %4853 = vrot.lane.b32.xlu0 %v4214, 96
      %v4854 = vpop.permute.xlu0 %4853
      %4855 = vrot.lane.b32.xlu0 %v4215, 96
      %v4856 = vpop.permute.xlu0 %4855
      %4857 = vrot.lane.b32.xlu0 %v4218, 96
      %v4858 = vpop.permute.xlu0 %4857
      %4859 = vrot.lane.b32.xlu0 %v4219, 96
      %v4860 = vpop.permute.xlu0 %4859
      %4893 = vrot.lane.b32.xlu0 %v4408, 120
      %v4894 = vpop.permute.xlu0 %4893
      %4895 = vrot.lane.b32.xlu0 %v4410, 120
      %v4896 = vpop.permute.xlu0 %4895
      %4897 = vrot.lane.b32.xlu0 %v4413, 120
      %v4898 = vpop.permute.xlu0 %4897
      %4899 = vrot.lane.b32.xlu0 %v4415, 120
      %v4900 = vpop.permute.xlu0 %4899
      %4901 = vrot.lane.b32.xlu0 %v4418, 120
      %v4902 = vpop.permute.xlu0 %4901
      %4903 = vrot.lane.b32.xlu0 %v4420, 120
      %v4904 = vpop.permute.xlu0 %4903
      %4905 = vrot.lane.b32.xlu0 %v4423, 120
      %v4906 = vpop.permute.xlu0 %4905
      %4907 = vrot.lane.b32.xlu0 %v4425, 120
      %v4908 = vpop.permute.xlu0 %4907
      %4909 = vrot.lane.b32.xlu0 %v4428, 120
      %v4910 = vpop.permute.xlu0 %4909
      %4911 = vrot.lane.b32.xlu0 %v4430, 120
      %v4912 = vpop.permute.xlu0 %4911
      %4913 = vrot.lane.b32.xlu0 %v4433, 120
      %v4914 = vpop.permute.xlu0 %4913
      %4915 = vrot.lane.b32.xlu0 %v4435, 120
      %v4916 = vpop.permute.xlu0 %4915
      %4917 = vrot.lane.b32.xlu0 %v4438, 120
      %v4918 = vpop.permute.xlu0 %4917
      %4919 = vrot.lane.b32.xlu0 %v4440, 120
      %v4920 = vpop.permute.xlu0 %4919
      %4921 = vrot.lane.b32.xlu0 %v4443, 120
      %v4922 = vpop.permute.xlu0 %4921
      %4923 = vrot.lane.b32.xlu0 %v4445, 120
      %v4924 = vpop.permute.xlu0 %4923
      %4925 = vrot.lane.b32.xlu0 %v4448, 120
      %v4926 = vpop.permute.xlu0 %4925
      %4927 = vrot.lane.b32.xlu0 %v4450, 120
      %v4928 = vpop.permute.xlu0 %4927
      %4929 = vrot.lane.b32.xlu0 %v4453, 120
      %v4930 = vpop.permute.xlu0 %4929
      %4931 = vrot.lane.b32.xlu0 %v4455, 120
      %v4932 = vpop.permute.xlu0 %4931
      %4933 = vrot.lane.b32.xlu0 %v4458, 120
      %v4934 = vpop.permute.xlu0 %4933
      %4935 = vrot.lane.b32.xlu0 %v4460, 120
      %v4936 = vpop.permute.xlu0 %4935
      %4937 = vrot.lane.b32.xlu0 %v4463, 120
      %v4938 = vpop.permute.xlu0 %4937
      %4939 = vrot.lane.b32.xlu0 %v4465, 120
      %v4940 = vpop.permute.xlu0 %4939
      %4941 = vrot.lane.b32.xlu0 %v4468, 120
      %v4942 = vpop.permute.xlu0 %4941
      %4943 = vrot.lane.b32.xlu0 %v4470, 120
      %v4944 = vpop.permute.xlu0 %4943
      %4945 = vrot.lane.b32.xlu0 %v4473, 120
      %v4946 = vpop.permute.xlu0 %4945
      %4947 = vrot.lane.b32.xlu0 %v4475, 120
      %v4948 = vpop.permute.xlu0 %4947
      %4949 = vrot.lane.b32.xlu0 %v4478, 120
      %v4950 = vpop.permute.xlu0 %4949
      %4951 = vrot.lane.b32.xlu0 %v4480, 120
      %v4952 = vpop.permute.xlu0 %4951
      %4953 = vrot.lane.b32.xlu0 %v4492, 120
      %v4954 = vpop.permute.xlu0 %4953
      %4955 = vrot.lane.b32.xlu0 %v4494, 120
      %v4956 = vpop.permute.xlu0 %4955
      %4989 = vrot.lane.b32.xlu0 %v4285, 16
      %v4990 = vpop.permute.xlu0 %4989
      %4991 = vrot.lane.b32.xlu0 %v4287, 16
      %v4992 = vpop.permute.xlu0 %4991
      %4993 = vrot.lane.b32.xlu0 %v4290, 16
      %v4994 = vpop.permute.xlu0 %4993
      %4995 = vrot.lane.b32.xlu0 %v4292, 16
      %v4996 = vpop.permute.xlu0 %4995
      %4997 = vrot.lane.b32.xlu0 %v4295, 16
      %v4998 = vpop.permute.xlu0 %4997
      %4999 = vrot.lane.b32.xlu0 %v4297, 16
      %v5000 = vpop.permute.xlu0 %4999
      %5001 = vrot.lane.b32.xlu0 %v4300, 16
      %v5002 = vpop.permute.xlu0 %5001
      %5003 = vrot.lane.b32.xlu0 %v4302, 16
      %v5004 = vpop.permute.xlu0 %5003
      %5005 = vrot.lane.b32.xlu0 %v4305, 16
      %v5006 = vpop.permute.xlu0 %5005
      %5007 = vrot.lane.b32.xlu0 %v4307, 16
      %v5008 = vpop.permute.xlu0 %5007
      %5009 = vrot.lane.b32.xlu0 %v4310, 16
      %v5010 = vpop.permute.xlu0 %5009
      %5011 = vrot.lane.b32.xlu0 %v4312, 16
      %v5012 = vpop.permute.xlu0 %5011
      %5013 = vrot.lane.b32.xlu0 %v4315, 16
      %v5014 = vpop.permute.xlu0 %5013
      %5015 = vrot.lane.b32.xlu0 %v4317, 16
      %v5016 = vpop.permute.xlu0 %5015
      %5017 = vrot.lane.b32.xlu0 %v4320, 16
      %v5018 = vpop.permute.xlu0 %5017
      %5019 = vrot.lane.b32.xlu0 %v4322, 16
      %v5020 = vpop.permute.xlu0 %5019
      %5021 = vrot.lane.b32.xlu0 %v4325, 16
      %v5022 = vpop.permute.xlu0 %5021
      %5023 = vrot.lane.b32.xlu0 %v4327, 16
      %v5024 = vpop.permute.xlu0 %5023
      %5025 = vrot.lane.b32.xlu0 %v4330, 16
      %v5026 = vpop.permute.xlu0 %5025
      %5027 = vrot.lane.b32.xlu0 %v4332, 16
      %v5028 = vpop.permute.xlu0 %5027
      %5029 = vrot.lane.b32.xlu0 %v4335, 16
      %v5030 = vpop.permute.xlu0 %5029
      %5031 = vrot.lane.b32.xlu0 %v4337, 16
      %v5032 = vpop.permute.xlu0 %5031
      %5033 = vrot.lane.b32.xlu0 %v4340, 16
      %v5034 = vpop.permute.xlu0 %5033
      %5035 = vrot.lane.b32.xlu0 %v4342, 16
      %v5036 = vpop.permute.xlu0 %5035
      %5037 = vrot.lane.b32.xlu0 %v4345, 16
      %v5038 = vpop.permute.xlu0 %5037
      %5039 = vrot.lane.b32.xlu0 %v4347, 16
      %v5040 = vpop.permute.xlu0 %5039
      %5041 = vrot.lane.b32.xlu0 %v4350, 16
      %v5042 = vpop.permute.xlu0 %5041
      %5043 = vrot.lane.b32.xlu0 %v4352, 16
      %v5044 = vpop.permute.xlu0 %5043
      %5045 = vrot.lane.b32.xlu0 %v4486, 16
      %v5046 = vpop.permute.xlu0 %5045
      %5047 = vrot.lane.b32.xlu0 %v4488, 16
      %v5048 = vpop.permute.xlu0 %5047
      %5049 = vrot.lane.b32.xlu0 %v4500, 16
      %v5050 = vpop.permute.xlu0 %5049
      %5051 = vrot.lane.b32.xlu0 %v4502, 16
      %v5052 = vpop.permute.xlu0 %5051
      %5085 = vrot.lane.b32.xlu0 %v4162, 40
      %v5086 = vpop.permute.xlu0 %5085
      %5087 = vrot.lane.b32.xlu0 %v4163, 40
      %v5088 = vpop.permute.xlu0 %5087
      %5089 = vrot.lane.b32.xlu0 %v4166, 40
      %v5090 = vpop.permute.xlu0 %5089
      %5091 = vrot.lane.b32.xlu0 %v4167, 40
      %v5092 = vpop.permute.xlu0 %5091
      %5093 = vrot.lane.b32.xlu0 %v4170, 40
      %v5094 = vpop.permute.xlu0 %5093
      %5095 = vrot.lane.b32.xlu0 %v4171, 40
      %v5096 = vpop.permute.xlu0 %5095
      %5097 = vrot.lane.b32.xlu0 %v4174, 40
      %v5098 = vpop.permute.xlu0 %5097
      %5099 = vrot.lane.b32.xlu0 %v4175, 40
      %v5100 = vpop.permute.xlu0 %5099
      %5101 = vrot.lane.b32.xlu0 %v4178, 40
      %v5102 = vpop.permute.xlu0 %5101
      %5103 = vrot.lane.b32.xlu0 %v4179, 40
      %v5104 = vpop.permute.xlu0 %5103
      %5105 = vrot.lane.b32.xlu0 %v4182, 40
      %v5106 = vpop.permute.xlu0 %5105
      %5107 = vrot.lane.b32.xlu0 %v4183, 40
      %v5108 = vpop.permute.xlu0 %5107
      %5109 = vrot.lane.b32.xlu0 %v4186, 40
      %v5110 = vpop.permute.xlu0 %5109
      %5111 = vrot.lane.b32.xlu0 %v4187, 40
      %v5112 = vpop.permute.xlu0 %5111
      %5113 = vrot.lane.b32.xlu0 %v4190, 40
      %v5114 = vpop.permute.xlu0 %5113
      %5115 = vrot.lane.b32.xlu0 %v4191, 40
      %v5116 = vpop.permute.xlu0 %5115
      %5117 = vrot.lane.b32.xlu0 %v4194, 40
      %v5118 = vpop.permute.xlu0 %5117
      %5119 = vrot.lane.b32.xlu0 %v4195, 40
      %v5120 = vpop.permute.xlu0 %5119
      %5121 = vrot.lane.b32.xlu0 %v4198, 40
      %v5122 = vpop.permute.xlu0 %5121
      %5123 = vrot.lane.b32.xlu0 %v4199, 40
      %v5124 = vpop.permute.xlu0 %5123
      %5125 = vrot.lane.b32.xlu0 %v4202, 40
      %v5126 = vpop.permute.xlu0 %5125
      %5127 = vrot.lane.b32.xlu0 %v4203, 40
      %v5128 = vpop.permute.xlu0 %5127
      %5129 = vrot.lane.b32.xlu0 %v4206, 40
      %v5130 = vpop.permute.xlu0 %5129
      %5131 = vrot.lane.b32.xlu0 %v4207, 40
      %v5132 = vpop.permute.xlu0 %5131
      %5133 = vrot.lane.b32.xlu0 %v4210, 40
      %v5134 = vpop.permute.xlu0 %5133
      %5135 = vrot.lane.b32.xlu0 %v4211, 40
      %v5136 = vpop.permute.xlu0 %5135
      %5137 = vrot.lane.b32.xlu0 %v4214, 40
      %v5138 = vpop.permute.xlu0 %5137
      %5139 = vrot.lane.b32.xlu0 %v4215, 40
      %v5140 = vpop.permute.xlu0 %5139
      %5141 = vrot.lane.b32.xlu0 %v4218, 40
      %v5142 = vpop.permute.xlu0 %5141
      %5143 = vrot.lane.b32.xlu0 %v4219, 40
      %v5144 = vpop.permute.xlu0 %5143
      %5145 = vrot.lane.b32.xlu0 %v4222, 40
      %v5146 = vpop.permute.xlu0 %5145
      %5147 = vrot.lane.b32.xlu0 %v4223, 40
      %v5148 = vpop.permute.xlu0 %5147
      %5181 = vrot.lane.b32.xlu0 %v4413, 64
      %v5182 = vpop.permute.xlu0 %5181
      %5183 = vrot.lane.b32.xlu0 %v4415, 64
      %v5184 = vpop.permute.xlu0 %5183
      %5185 = vrot.lane.b32.xlu0 %v4418, 64
      %v5186 = vpop.permute.xlu0 %5185
      %5187 = vrot.lane.b32.xlu0 %v4420, 64
      %v5188 = vpop.permute.xlu0 %5187
      %5189 = vrot.lane.b32.xlu0 %v4423, 64
      %v5190 = vpop.permute.xlu0 %5189
      %5191 = vrot.lane.b32.xlu0 %v4425, 64
      %v5192 = vpop.permute.xlu0 %5191
      %5193 = vrot.lane.b32.xlu0 %v4428, 64
      %v5194 = vpop.permute.xlu0 %5193
      %5195 = vrot.lane.b32.xlu0 %v4430, 64
      %v5196 = vpop.permute.xlu0 %5195
      %5197 = vrot.lane.b32.xlu0 %v4433, 64
      %v5198 = vpop.permute.xlu0 %5197
      %5199 = vrot.lane.b32.xlu0 %v4435, 64
      %v5200 = vpop.permute.xlu0 %5199
      %5201 = vrot.lane.b32.xlu0 %v4438, 64
      %v5202 = vpop.permute.xlu0 %5201
      %5203 = vrot.lane.b32.xlu0 %v4440, 64
      %v5204 = vpop.permute.xlu0 %5203
      %5205 = vrot.lane.b32.xlu0 %v4443, 64
      %v5206 = vpop.permute.xlu0 %5205
      %5207 = vrot.lane.b32.xlu0 %v4445, 64
      %v5208 = vpop.permute.xlu0 %5207
      %5209 = vrot.lane.b32.xlu0 %v4448, 64
      %v5210 = vpop.permute.xlu0 %5209
      %5211 = vrot.lane.b32.xlu0 %v4450, 64
      %v5212 = vpop.permute.xlu0 %5211
      %5213 = vrot.lane.b32.xlu0 %v4453, 64
      %v5214 = vpop.permute.xlu0 %5213
      %5215 = vrot.lane.b32.xlu0 %v4455, 64
      %v5216 = vpop.permute.xlu0 %5215
      %5217 = vrot.lane.b32.xlu0 %v4458, 64
      %v5218 = vpop.permute.xlu0 %5217
      %5219 = vrot.lane.b32.xlu0 %v4460, 64
      %v5220 = vpop.permute.xlu0 %5219
      %5221 = vrot.lane.b32.xlu0 %v4463, 64
      %v5222 = vpop.permute.xlu0 %5221
      %5223 = vrot.lane.b32.xlu0 %v4465, 64
      %v5224 = vpop.permute.xlu0 %5223
      %5225 = vrot.lane.b32.xlu0 %v4468, 64
      %v5226 = vpop.permute.xlu0 %5225
      %5227 = vrot.lane.b32.xlu0 %v4470, 64
      %v5228 = vpop.permute.xlu0 %5227
      %5229 = vrot.lane.b32.xlu0 %v4473, 64
      %v5230 = vpop.permute.xlu0 %5229
      %5231 = vrot.lane.b32.xlu0 %v4475, 64
      %v5232 = vpop.permute.xlu0 %5231
      %5233 = vrot.lane.b32.xlu0 %v4478, 64
      %v5234 = vpop.permute.xlu0 %5233
      %5235 = vrot.lane.b32.xlu0 %v4480, 64
      %v5236 = vpop.permute.xlu0 %5235
      %5237 = vrot.lane.b32.xlu0 %v4492, 64
      %v5238 = vpop.permute.xlu0 %5237
      %5239 = vrot.lane.b32.xlu0 %v4494, 64
      %v5240 = vpop.permute.xlu0 %5239
      %5241 = vrot.lane.b32.xlu0 %v4506, 64
      %v5242 = vpop.permute.xlu0 %5241
      %5243 = vrot.lane.b32.xlu0 %v4508, 64
      %v5244 = vpop.permute.xlu0 %5243
      %v5277 = vsel %vm1663, %v4275, %v4510
      %v5278 = vsel %vm1663, %v4277, %v4512
      %v5279 = vsel %vm1663, %v4280, %v4514
      %v5280 = vsel %vm1663, %v4282, %v4516
      %v5281 = vsel %vm1663, %v4285, %v4518
      %v5282 = vsel %vm1663, %v4287, %v4520
      %v5283 = vsel %vm1663, %v4290, %v4522
      %v5284 = vsel %vm1663, %v4292, %v4524
      %v5285 = vsel %vm1663, %v4295, %v4526
      %v5286 = vsel %vm1663, %v4297, %v4528
      %v5287 = vsel %vm1663, %v4300, %v4530
      %v5288 = vsel %vm1663, %v4302, %v4532
      %v5289 = vsel %vm1663, %v4305, %v4534
      %v5290 = vsel %vm1663, %v4307, %v4536
      %v5291 = vsel %vm1663, %v4310, %v4538
      %v5292 = vsel %vm1663, %v4312, %v4540
      %v5293 = vsel %vm1663, %v4315, %v4542
      %v5294 = vsel %vm1663, %v4317, %v4544
      %v5295 = vsel %vm1663, %v4320, %v4546
      %v5296 = vsel %vm1663, %v4322, %v4548
      %v5297 = vsel %vm1663, %v4325, %v4550
      %v5298 = vsel %vm1663, %v4327, %v4552
      %v5299 = vsel %vm1663, %v4330, %v4554
      %v5300 = vsel %vm1663, %v4332, %v4556
      %v5301 = vsel %vm1663, %v4335, %v4558
      %v5302 = vsel %vm1663, %v4337, %v4560
      %v5303 = vsel %vm1663, %v4340, %v4562
      %v5304 = vsel %vm1663, %v4342, %v4564
      %v5305 = vsel %vm1663, %v4345, %v4566
      %v5306 = vsel %vm1663, %v4347, %v4568
      %v5307 = vsel %vm1663, %v4350, %v4570
      %v5308 = vsel %vm1663, %v4352, %v4572
      %v5309 = vsel %vm1761, %v5277, %v4606
      %v5310 = vsel %vm1761, %v5278, %v4608
      %v5311 = vsel %vm1761, %v5279, %v4610
      %v5312 = vsel %vm1761, %v5280, %v4612
      %v5313 = vsel %vm1761, %v5281, %v4614
      %v5314 = vsel %vm1761, %v5282, %v4616
      %v5315 = vsel %vm1761, %v5283, %v4618
      %v5316 = vsel %vm1761, %v5284, %v4620
      %v5317 = vsel %vm1761, %v5285, %v4622
      %v5318 = vsel %vm1761, %v5286, %v4624
      %v5319 = vsel %vm1761, %v5287, %v4626
      %v5320 = vsel %vm1761, %v5288, %v4628
      %v5321 = vsel %vm1761, %v5289, %v4630
      %v5322 = vsel %vm1761, %v5290, %v4632
      %v5323 = vsel %vm1761, %v5291, %v4634
      %v5324 = vsel %vm1761, %v5292, %v4636
      %v5325 = vsel %vm1761, %v5293, %v4638
      %v5326 = vsel %vm1761, %v5294, %v4640
      %v5327 = vsel %vm1761, %v5295, %v4642
      %v5328 = vsel %vm1761, %v5296, %v4644
      %v5329 = vsel %vm1761, %v5297, %v4646
      %v5330 = vsel %vm1761, %v5298, %v4648
      %v5331 = vsel %vm1761, %v5299, %v4650
      %v5332 = vsel %vm1761, %v5300, %v4652
      %v5333 = vsel %vm1761, %v5301, %v4654
      %v5334 = vsel %vm1761, %v5302, %v4656
      %v5335 = vsel %vm1761, %v5303, %v4658
      %v5336 = vsel %vm1761, %v5304, %v4660
      %v5337 = vsel %vm1761, %v5305, %v4662
      %v5338 = vsel %vm1761, %v5306, %v4664
      %v5339 = vsel %vm1761, %v5307, %v4666
      %v5340 = vsel %vm1761, %v5308, %v4668
      %v5341 = vsel %vm1876, %v5309, %v4702
      %v5342 = vsel %vm1876, %v5310, %v4704
      %v5343 = vsel %vm1876, %v5311, %v4706
      %v5344 = vsel %vm1876, %v5312, %v4708
      %v5345 = vsel %vm1876, %v5313, %v4710
      %v5346 = vsel %vm1876, %v5314, %v4712
      %v5347 = vsel %vm1876, %v5315, %v4714
      %v5348 = vsel %vm1876, %v5316, %v4716
      %v5349 = vsel %vm1876, %v5317, %v4718
      %v5350 = vsel %vm1876, %v5318, %v4720
      %v5351 = vsel %vm1876, %v5319, %v4722
      %v5352 = vsel %vm1876, %v5320, %v4724
      %v5353 = vsel %vm1876, %v5321, %v4726
      %v5354 = vsel %vm1876, %v5322, %v4728
      %v5355 = vsel %vm1876, %v5323, %v4730
      %v5356 = vsel %vm1876, %v5324, %v4732
      %v5357 = vsel %vm1876, %v5325, %v4734
      %v5358 = vsel %vm1876, %v5326, %v4736
      %v5359 = vsel %vm1876, %v5327, %v4738
      %v5360 = vsel %vm1876, %v5328, %v4740
      %v5361 = vsel %vm1876, %v5329, %v4742
      %v5362 = vsel %vm1876, %v5330, %v4744
      %v5363 = vsel %vm1876, %v5331, %v4746
      %v5364 = vsel %vm1876, %v5332, %v4748
      %v5365 = vsel %vm1876, %v5333, %v4750
      %v5366 = vsel %vm1876, %v5334, %v4752
      %v5367 = vsel %vm1876, %v5335, %v4754
      %v5368 = vsel %vm1876, %v5336, %v4756
      %v5369 = vsel %vm1876, %v5337, %v4758
      %v5370 = vsel %vm1876, %v5338, %v4760
      %v5371 = vsel %vm1876, %v5339, %v4762
      %v5372 = vsel %vm1876, %v5340, %v4764
      %v5373 = vsel %vm3580, %v5341, %v4798
      %v5374 = vsel %vm3580, %v5342, %v4800
      %v5375 = vsel %vm3580, %v5343, %v4802
      %v5376 = vsel %vm3580, %v5344, %v4804
      %v5377 = vsel %vm3580, %v5345, %v4806
      %v5378 = vsel %vm3580, %v5346, %v4808
      %v5379 = vsel %vm3580, %v5347, %v4810
      %v5380 = vsel %vm3580, %v5348, %v4812
      %v5381 = vsel %vm3580, %v5349, %v4814
      %v5382 = vsel %vm3580, %v5350, %v4816
      %v5383 = vsel %vm3580, %v5351, %v4818
      %v5384 = vsel %vm3580, %v5352, %v4820
      %v5385 = vsel %vm3580, %v5353, %v4822
      %v5386 = vsel %vm3580, %v5354, %v4824
      %v5387 = vsel %vm3580, %v5355, %v4826
      %v5388 = vsel %vm3580, %v5356, %v4828
      %v5389 = vsel %vm3580, %v5357, %v4830
      %v5390 = vsel %vm3580, %v5358, %v4832
      %v5391 = vsel %vm3580, %v5359, %v4834
      %v5392 = vsel %vm3580, %v5360, %v4836
      %v5393 = vsel %vm3580, %v5361, %v4838
      %v5394 = vsel %vm3580, %v5362, %v4840
      %v5395 = vsel %vm3580, %v5363, %v4842
      %v5396 = vsel %vm3580, %v5364, %v4844
      %v5397 = vsel %vm3580, %v5365, %v4846
      %v5398 = vsel %vm3580, %v5366, %v4848
      %v5399 = vsel %vm3580, %v5367, %v4850
      %v5400 = vsel %vm3580, %v5368, %v4852
      %v5401 = vsel %vm3580, %v5369, %v4854
      %v5402 = vsel %vm3580, %v5370, %v4856
      %v5403 = vsel %vm3580, %v5371, %v4858
      %v5404 = vsel %vm3580, %v5372, %v4860
      %vm5405 = vcmask 982016
      %v5406 = vsel %vm5405, %v5373, %v4894
      %v5407 = vsel %vm5405, %v5374, %v4896
      %v5408 = vsel %vm5405, %v5375, %v4898
      %v5409 = vsel %vm5405, %v5376, %v4900
      %v5410 = vsel %vm5405, %v5377, %v4902
      %v5411 = vsel %vm5405, %v5378, %v4904
      %v5412 = vsel %vm5405, %v5379, %v4906
      %v5413 = vsel %vm5405, %v5380, %v4908
      %v5414 = vsel %vm5405, %v5381, %v4910
      %v5415 = vsel %vm5405, %v5382, %v4912
      %v5416 = vsel %vm5405, %v5383, %v4914
      %v5417 = vsel %vm5405, %v5384, %v4916
      %v5418 = vsel %vm5405, %v5385, %v4918
      %v5419 = vsel %vm5405, %v5386, %v4920
      %v5420 = vsel %vm5405, %v5387, %v4922
      %v5421 = vsel %vm5405, %v5388, %v4924
      %v5422 = vsel %vm5405, %v5389, %v4926
      %v5423 = vsel %vm5405, %v5390, %v4928
      %v5424 = vsel %vm5405, %v5391, %v4930
      %v5425 = vsel %vm5405, %v5392, %v4932
      %v5426 = vsel %vm5405, %v5393, %v4934
      %v5427 = vsel %vm5405, %v5394, %v4936
      %v5428 = vsel %vm5405, %v5395, %v4938
      %v5429 = vsel %vm5405, %v5396, %v4940
      %v5430 = vsel %vm5405, %v5397, %v4942
      %v5431 = vsel %vm5405, %v5398, %v4944
      %v5432 = vsel %vm5405, %v5399, %v4946
      %v5433 = vsel %vm5405, %v5400, %v4948
      %v5434 = vsel %vm5405, %v5401, %v4950
      %v5435 = vsel %vm5405, %v5402, %v4952
      %v5436 = vsel %vm5405, %v5403, %v4954
      %v5437 = vsel %vm5405, %v5404, %v4956
      %v5438 = vsel %vm1630, %v4894, %v4990
      %v5439 = vsel %vm1630, %v4896, %v4992
      %v5440 = vsel %vm1630, %v4898, %v4994
      %v5441 = vsel %vm1630, %v4900, %v4996
      %v5442 = vsel %vm1630, %v4902, %v4998
      %v5443 = vsel %vm1630, %v4904, %v5000
      %v5444 = vsel %vm1630, %v4906, %v5002
      %v5445 = vsel %vm1630, %v4908, %v5004
      %v5446 = vsel %vm1630, %v4910, %v5006
      %v5447 = vsel %vm1630, %v4912, %v5008
      %v5448 = vsel %vm1630, %v4914, %v5010
      %v5449 = vsel %vm1630, %v4916, %v5012
      %v5450 = vsel %vm1630, %v4918, %v5014
      %v5451 = vsel %vm1630, %v4920, %v5016
      %v5452 = vsel %vm1630, %v4922, %v5018
      %v5453 = vsel %vm1630, %v4924, %v5020
      %v5454 = vsel %vm1630, %v4926, %v5022
      %v5455 = vsel %vm1630, %v4928, %v5024
      %v5456 = vsel %vm1630, %v4930, %v5026
      %v5457 = vsel %vm1630, %v4932, %v5028
      %v5458 = vsel %vm1630, %v4934, %v5030
      %v5459 = vsel %vm1630, %v4936, %v5032
      %v5460 = vsel %vm1630, %v4938, %v5034
      %v5461 = vsel %vm1630, %v4940, %v5036
      %v5462 = vsel %vm1630, %v4942, %v5038
      %v5463 = vsel %vm1630, %v4944, %v5040
      %v5464 = vsel %vm1630, %v4946, %v5042
      %v5465 = vsel %vm1630, %v4948, %v5044
      %v5466 = vsel %vm1630, %v4950, %v5046
      %v5467 = vsel %vm1630, %v4952, %v5048
      %v5468 = vsel %vm1630, %v4954, %v5050
      %v5469 = vsel %vm1630, %v4956, %v5052
      %v5470 = vsel %vm1728, %v5438, %v5086
      %v5471 = vsel %vm1728, %v5439, %v5088
      %v5472 = vsel %vm1728, %v5440, %v5090
      %v5473 = vsel %vm1728, %v5441, %v5092
      %v5474 = vsel %vm1728, %v5442, %v5094
      %v5475 = vsel %vm1728, %v5443, %v5096
      %v5476 = vsel %vm1728, %v5444, %v5098
      %v5477 = vsel %vm1728, %v5445, %v5100
      %v5478 = vsel %vm1728, %v5446, %v5102
      %v5479 = vsel %vm1728, %v5447, %v5104
      %v5480 = vsel %vm1728, %v5448, %v5106
      %v5481 = vsel %vm1728, %v5449, %v5108
      %v5482 = vsel %vm1728, %v5450, %v5110
      %v5483 = vsel %vm1728, %v5451, %v5112
      %v5484 = vsel %vm1728, %v5452, %v5114
      %v5485 = vsel %vm1728, %v5453, %v5116
      %v5486 = vsel %vm1728, %v5454, %v5118
      %v5487 = vsel %vm1728, %v5455, %v5120
      %v5488 = vsel %vm1728, %v5456, %v5122
      %v5489 = vsel %vm1728, %v5457, %v5124
      %v5490 = vsel %vm1728, %v5458, %v5126
      %v5491 = vsel %vm1728, %v5459, %v5128
      %v5492 = vsel %vm1728, %v5460, %v5130
      %v5493 = vsel %vm1728, %v5461, %v5132
      %v5494 = vsel %vm1728, %v5462, %v5134
      %v5495 = vsel %vm1728, %v5463, %v5136
      %v5496 = vsel %vm1728, %v5464, %v5138
      %v5497 = vsel %vm1728, %v5465, %v5140
      %v5498 = vsel %vm1728, %v5466, %v5142
      %v5499 = vsel %vm1728, %v5467, %v5144
      %v5500 = vsel %vm1728, %v5468, %v5146
      %v5501 = vsel %vm1728, %v5469, %v5148
      %v5502 = vsel %vm1827, %v5470, %v5182
      %v5503 = vsel %vm1827, %v5471, %v5184
      %v5504 = vsel %vm1827, %v5472, %v5186
      %v5505 = vsel %vm1827, %v5473, %v5188
      %v5506 = vsel %vm1827, %v5474, %v5190
      %v5507 = vsel %vm1827, %v5475, %v5192
      %v5508 = vsel %vm1827, %v5476, %v5194
      %v5509 = vsel %vm1827, %v5477, %v5196
      %v5510 = vsel %vm1827, %v5478, %v5198
      %v5511 = vsel %vm1827, %v5479, %v5200
      %v5512 = vsel %vm1827, %v5480, %v5202
      %v5513 = vsel %vm1827, %v5481, %v5204
      %v5514 = vsel %vm1827, %v5482, %v5206
      %v5515 = vsel %vm1827, %v5483, %v5208
      %v5516 = vsel %vm1827, %v5484, %v5210
      %v5517 = vsel %vm1827, %v5485, %v5212
      %v5518 = vsel %vm1827, %v5486, %v5214
      %v5519 = vsel %vm1827, %v5487, %v5216
      %v5520 = vsel %vm1827, %v5488, %v5218
      %v5521 = vsel %vm1827, %v5489, %v5220
      %v5522 = vsel %vm1827, %v5490, %v5222
      %v5523 = vsel %vm1827, %v5491, %v5224
      %v5524 = vsel %vm1827, %v5492, %v5226
      %v5525 = vsel %vm1827, %v5493, %v5228
      %v5526 = vsel %vm1827, %v5494, %v5230
      %v5527 = vsel %vm1827, %v5495, %v5232
      %v5528 = vsel %vm1827, %v5496, %v5234
      %v5529 = vsel %vm1827, %v5497, %v5236
      %v5530 = vsel %vm1827, %v5498, %v5238
      %v5531 = vsel %vm1827, %v5499, %v5240
      %v5532 = vsel %vm1827, %v5500, %v5242
      %v5533 = vsel %vm1827, %v5501, %v5244
      %v5534 = vld [vmem:[%s5] sm:$0xff]
      %v5535 = vld [vmem:[%s5 + $0x8] sm:$0xff]
      %v5536 = vld [vmem:[%s5 + $0x10] sm:$0xff]
      %v5537 = vld [vmem:[%s5 + $0x18] sm:$0xff]
      %v5538 = vld [vmem:[%s5 + $0x20] sm:$0xff]
      %v5539 = vld [vmem:[%s5 + $0x28] sm:$0xff]
      %v5540 = vld [vmem:[%s5 + $0x30] sm:$0xff]
      %v5541 = vld [vmem:[%s5 + $0x38] sm:$0xff]
      %v5542 = vld [vmem:[%s5 + $0x40] sm:$0xff]
      %v5543 = vld [vmem:[%s5 + $0x48] sm:$0xff]
      %v5544 = vld [vmem:[%s5 + $0x50] sm:$0xff]
      %v5545 = vld [vmem:[%s5 + $0x58] sm:$0xff]
      %v5546 = vld [vmem:[%s5 + $0x60] sm:$0xff]
      %v5547 = vld [vmem:[%s5 + $0x68] sm:$0xff]
      %v5548 = vld [vmem:[%s5 + $0x70] sm:$0xff]
      %v5549 = vld [vmem:[%s5 + $0x78] sm:$0xff]
      %v5550 = vld [vmem:[%s5 + $0x80] sm:$0xff]
      %v5551 = vld [vmem:[%s5 + $0x88] sm:$0xff]
      %v5552 = vld [vmem:[%s5 + $0x90] sm:$0xff]
      %v5553 = vld [vmem:[%s5 + $0x98] sm:$0xff]
      %v5554 = vld [vmem:[%s5 + $0xa0] sm:$0xff]
      %v5555 = vld [vmem:[%s5 + $0xa8] sm:$0xff]
      %v5556 = vld [vmem:[%s5 + $0xb0] sm:$0xff]
      %v5557 = vld [vmem:[%s5 + $0xb8] sm:$0xff]
      %v5558 = vld [vmem:[%s5 + $0xc0] sm:$0xff]
      %v5559 = vld [vmem:[%s5 + $0xc8] sm:$0xff]
      %v5560 = vld [vmem:[%s5 + $0xd0] sm:$0xff]
      %v5561 = vld [vmem:[%s6] sm:$0x1]
      %v5563 = vlaneseq
      %v5564 = vshrl.u32 %v5563, 7
      %v5565 = vsub.s32 0, %v5564
      %v5566 = vrot.slane %v5561, %v5565
      %vm5568 = vcmask 719872
      %v5570 = vsel %vm5568, %v5502, 0
      %v5573 = vsel %vm5568, %v5503, 0
      %v5576 = vsel %vm5568, %v5504, 0
      %v5579 = vsel %vm5568, %v5505, 0
      %v5582 = vsel %vm5568, %v5506, 0
      %v5585 = vsel %vm5568, %v5507, 0
      %v5588 = vsel %vm5568, %v5508, 0
      %v5591 = vsel %vm5568, %v5509, 0
      %v5594 = vsel %vm5568, %v5510, 0
      %v5597 = vsel %vm5568, %v5511, 0
      %v5600 = vsel %vm5568, %v5512, 0
      %v5603 = vsel %vm5568, %v5513, 0
      %v5606 = vsel %vm5568, %v5514, 0
      %v5609 = vsel %vm5568, %v5515, 0
      %v5612 = vsel %vm5568, %v5516, 0
      %v5615 = vsel %vm5568, %v5517, 0
      %v5618 = vsel %vm5568, %v5518, 0
      %v5621 = vsel %vm5568, %v5519, 0
      %v5624 = vsel %vm5568, %v5520, 0
      %v5627 = vsel %vm5568, %v5521, 0
      %v5630 = vsel %vm5568, %v5522, 0
      %v5633 = vsel %vm5568, %v5523, 0
      %v5636 = vsel %vm5568, %v5524, 0
      %v5639 = vsel %vm5568, %v5525, 0
      %v5642 = vsel %vm5568, %v5526, 0
      %v5645 = vsel %vm5568, %v5527, 0
      %v5648 = vsel %vm5568, %v5528, 0
      %v5651 = vsel %vm5568, %v5529, 0
      %v5654 = vsel %vm5568, %v5530, 0
      %v5657 = vsel %vm5568, %v5531, 0
      %v5660 = vsel %vm5568, %v5532, 0
      %v5663 = vsel %vm5568, %v5533, 0
      %5665 = vmatprep.subr.mxu0 0.0
      %5666 = vmatpush1.msra.mxu0 %v5549
      %5667 = vmatprep.subr.mxu0 0.0
      %5668 = vmatpush1.msra.mxu0 %v5548
      %5669 = vmatprep.subr.mxu0 0.0
      %5670 = vmatpush1.msra.mxu0 %v5547
      %5671 = vmatprep.subr.mxu0 0.0
      %5672 = vmatpush1.msra.mxu0 %v5546
      %5673 = vmatprep.subr.mxu0 0.0
      %5674 = vmatpush1.msra.mxu0 %v5545
      %5675 = vmatprep.subr.mxu0 0.0
      %5676 = vmatpush1.msra.mxu0 %v5544
      %5677 = vmatprep.subr.mxu0 0.0
      %5678 = vmatpush1.msra.mxu0 %v5543
      %5679 = vmatprep.subr.mxu0 0.0
      %5680 = vmatpush1.msra.mxu0 %v5542
      %5681 = vmatprep.subr.mxu0 0.0
      %5682 = vmatpush1.msra.mxu0 %v5541
      %5683 = vmatprep.subr.mxu0 0.0
      %5684 = vmatpush1.msra.mxu0 %v5540
      %5685 = vmatprep.subr.mxu0 0.0
      %5686 = vmatpush1.msra.mxu0 %v5539
      %5687 = vmatprep.subr.mxu0 0.0
      %5688 = vmatpush1.msra.mxu0 %v5538
      %5689 = vmatprep.subr.mxu0 0.0
      %5690 = vmatpush1.msra.mxu0 %v5537
      %5691 = vmatprep.subr.mxu0 0.0
      %5692 = vmatpush1.msra.mxu0 %v5536
      %5693 = vmatprep.subr.mxu0 0.0
      %5694 = vmatpush1.msra.mxu0 %v5535
      %5695 = vmatprep.subr.mxu0 0.0
      %5696 = vmatpush1.msra.mxu0 %v5534
      %5697 = vmatprep.subr.mxu0 0.0
      %5698 = vmatpush2.msra.mxu0 0.0
      %5699 = vmatprep.subr.mxu0 0.0
      %5700 = vmatpush2.msra.mxu0 0.0
      %5701 = vmatprep.subr.mxu0 0.0
      %5702 = vmatpush2.msra.mxu0 0.0
      %5703 = vmatprep.subr.mxu0 0.0
      %5704 = vmatpush2.msra.mxu0 0.0
      %5705 = vmatprep.subr.mxu0 0.0
      %5706 = vmatpush2.msra.mxu0 0.0
      %5707 = vmatprep.subr.mxu0 0.0
      %5708 = vmatpush2.msra.mxu0 %v5560
      %5709 = vmatprep.subr.mxu0 0.0
      %5710 = vmatpush2.msra.mxu0 %v5559
      %5711 = vmatprep.subr.mxu0 0.0
      %5712 = vmatpush2.msra.mxu0 %v5558
      %5713 = vmatprep.subr.mxu0 0.0
      %5714 = vmatpush2.msra.mxu0 %v5557
      %5715 = vmatprep.subr.mxu0 0.0
      %5716 = vmatpush2.msra.mxu0 %v5556
      %5717 = vmatprep.subr.mxu0 0.0
      %5718 = vmatpush2.msra.mxu0 %v5555
      %5719 = vmatprep.subr.mxu0 0.0
      %5720 = vmatpush2.msra.mxu0 %v5554
      %5721 = vmatprep.subr.mxu0 0.0
      %5722 = vmatpush2.msra.mxu0 %v5553
      %5723 = vmatprep.subr.mxu0 0.0
      %5724 = vmatpush2.msra.mxu0 %v5552
      %5725 = vmatprep.subr.mxu0 0.0
      %5726 = vmatpush2.msra.mxu0 %v5551
      %5727 = vmatprep.subr.mxu0 0.0
      %5728 = vmatpush2.msra.mxu0 %v5550
      %5729 = vmatprep.mubr.f32.mxu0 %v5570
      %5730 = vmatmul.mubr.f32.gmra.mxu0 %v5406
      %v5731 = vpop.f32.mrf.mxu0
      %v5732 = vadd.f32 %v5566, %v5731
      %v5733 = vpop.f32.mrf.mxu0
      %5734 = vmatprep.mubr.f32.mxu0 %v5573
      %5735 = vmatmul.mubr.f32.gmra.mxu0 %v5407
      %v5736 = vpop.f32.mrf.mxu0
      %v5737 = vadd.f32 %v5566, %v5736
      %v5738 = vpop.f32.mrf.mxu0
      %5739 = vmatprep.mubr.f32.mxu0 %v5576
      %5740 = vmatmul.mubr.f32.gmra.mxu0 %v5408
      %v5741 = vpop.f32.mrf.mxu0
      %v5742 = vadd.f32 %v5566, %v5741
      %v5743 = vpop.f32.mrf.mxu0
      %5744 = vmatprep.mubr.f32.mxu0 %v5579
      %5745 = vmatmul.mubr.f32.gmra.mxu0 %v5409
      %v5746 = vpop.f32.mrf.mxu0
      %v5747 = vadd.f32 %v5566, %v5746
      %v5748 = vpop.f32.mrf.mxu0
      %5749 = vmatprep.mubr.f32.mxu0 %v5582
      %5750 = vmatmul.mubr.f32.gmra.mxu0 %v5410
      %v5751 = vpop.f32.mrf.mxu0
      %v5752 = vadd.f32 %v5566, %v5751
      %v5753 = vpop.f32.mrf.mxu0
      %5754 = vmatprep.mubr.f32.mxu0 %v5585
      %5755 = vmatmul.mubr.f32.gmra.mxu0 %v5411
      %v5756 = vpop.f32.mrf.mxu0
      %v5757 = vadd.f32 %v5566, %v5756
      %v5758 = vpop.f32.mrf.mxu0
      %5759 = vmatprep.mubr.f32.mxu0 %v5588
      %5760 = vmatmul.mubr.f32.gmra.mxu0 %v5412
      %v5761 = vpop.f32.mrf.mxu0
      %v5762 = vadd.f32 %v5566, %v5761
      %v5763 = vpop.f32.mrf.mxu0
      %5764 = vmatprep.mubr.f32.mxu0 %v5591
      %5765 = vmatmul.mubr.f32.gmra.mxu0 %v5413
      %v5766 = vpop.f32.mrf.mxu0
      %v5767 = vadd.f32 %v5566, %v5766
      %v5768 = vpop.f32.mrf.mxu0
      %5769 = vmatprep.mubr.f32.mxu0 %v5594
      %5770 = vmatmul.mubr.f32.gmra.mxu0 %v5414
      %v5771 = vpop.f32.mrf.mxu0
      %v5772 = vadd.f32 %v5566, %v5771
      %v5773 = vpop.f32.mrf.mxu0
      %5774 = vmatprep.mubr.f32.mxu0 %v5597
      %5775 = vmatmul.mubr.f32.gmra.mxu0 %v5415
      %v5776 = vpop.f32.mrf.mxu0
      %v5777 = vadd.f32 %v5566, %v5776
      %v5778 = vpop.f32.mrf.mxu0
      %5779 = vmatprep.mubr.f32.mxu0 %v5600
      %5780 = vmatmul.mubr.f32.gmra.mxu0 %v5416
      %v5781 = vpop.f32.mrf.mxu0
      %v5782 = vadd.f32 %v5566, %v5781
      %v5783 = vpop.f32.mrf.mxu0
      %5784 = vmatprep.mubr.f32.mxu0 %v5603
      %5785 = vmatmul.mubr.f32.gmra.mxu0 %v5417
      %v5786 = vpop.f32.mrf.mxu0
      %v5787 = vadd.f32 %v5566, %v5786
      %v5788 = vpop.f32.mrf.mxu0
      %5789 = vmatprep.mubr.f32.mxu0 %v5606
      %5790 = vmatmul.mubr.f32.gmra.mxu0 %v5418
      %v5791 = vpop.f32.mrf.mxu0
      %v5792 = vadd.f32 %v5566, %v5791
      %v5793 = vpop.f32.mrf.mxu0
      %5794 = vmatprep.mubr.f32.mxu0 %v5609
      %5795 = vmatmul.mubr.f32.gmra.mxu0 %v5419
      %v5796 = vpop.f32.mrf.mxu0
      %v5797 = vadd.f32 %v5566, %v5796
      %v5798 = vpop.f32.mrf.mxu0
      %5799 = vmatprep.mubr.f32.mxu0 %v5612
      %5800 = vmatmul.mubr.f32.gmra.mxu0 %v5420
      %v5801 = vpop.f32.mrf.mxu0
      %v5802 = vadd.f32 %v5566, %v5801
      %v5803 = vpop.f32.mrf.mxu0
      %5804 = vmatprep.mubr.f32.mxu0 %v5615
      %5805 = vmatmul.mubr.f32.gmra.mxu0 %v5421
      %v5806 = vpop.f32.mrf.mxu0
      %v5807 = vadd.f32 %v5566, %v5806
      %v5808 = vpop.f32.mrf.mxu0
      %5809 = vmatprep.mubr.f32.mxu0 %v5618
      %5810 = vmatmul.mubr.f32.gmra.mxu0 %v5422
      %v5811 = vpop.f32.mrf.mxu0
      %v5812 = vadd.f32 %v5566, %v5811
      %v5813 = vpop.f32.mrf.mxu0
      %5814 = vmatprep.mubr.f32.mxu0 %v5621
      %5815 = vmatmul.mubr.f32.gmra.mxu0 %v5423
      %v5816 = vpop.f32.mrf.mxu0
      %v5817 = vadd.f32 %v5566, %v5816
      %v5818 = vpop.f32.mrf.mxu0
      %5819 = vmatprep.mubr.f32.mxu0 %v5624
      %5820 = vmatmul.mubr.f32.gmra.mxu0 %v5424
      %v5821 = vpop.f32.mrf.mxu0
      %v5822 = vadd.f32 %v5566, %v5821
      %v5823 = vpop.f32.mrf.mxu0
      %5824 = vmatprep.mubr.f32.mxu0 %v5627
      %5825 = vmatmul.mubr.f32.gmra.mxu0 %v5425
      %v5826 = vpop.f32.mrf.mxu0
      %v5827 = vadd.f32 %v5566, %v5826
      %v5828 = vpop.f32.mrf.mxu0
      %5829 = vmatprep.mubr.f32.mxu0 %v5630
      %5830 = vmatmul.mubr.f32.gmra.mxu0 %v5426
      %v5831 = vpop.f32.mrf.mxu0
      %v5832 = vadd.f32 %v5566, %v5831
      %v5833 = vpop.f32.mrf.mxu0
      %5834 = vmatprep.mubr.f32.mxu0 %v5633
      %5835 = vmatmul.mubr.f32.gmra.mxu0 %v5427
      %v5836 = vpop.f32.mrf.mxu0
      %v5837 = vadd.f32 %v5566, %v5836
      %v5838 = vpop.f32.mrf.mxu0
      %5839 = vmatprep.mubr.f32.mxu0 %v5636
      %5840 = vmatmul.mubr.f32.gmra.mxu0 %v5428
      %v5841 = vpop.f32.mrf.mxu0
      %v5842 = vadd.f32 %v5566, %v5841
      %v5843 = vpop.f32.mrf.mxu0
      %5844 = vmatprep.mubr.f32.mxu0 %v5639
      %5845 = vmatmul.mubr.f32.gmra.mxu0 %v5429
      %v5846 = vpop.f32.mrf.mxu0
      %v5847 = vadd.f32 %v5566, %v5846
      %v5848 = vpop.f32.mrf.mxu0
      %5849 = vmatprep.mubr.f32.mxu0 %v5642
      %5850 = vmatmul.mubr.f32.gmra.mxu0 %v5430
      %v5851 = vpop.f32.mrf.mxu0
      %v5852 = vadd.f32 %v5566, %v5851
      %v5853 = vpop.f32.mrf.mxu0
      %5854 = vmatprep.mubr.f32.mxu0 %v5645
      %5855 = vmatmul.mubr.f32.gmra.mxu0 %v5431
      %v5856 = vpop.f32.mrf.mxu0
      %v5857 = vadd.f32 %v5566, %v5856
      %v5858 = vpop.f32.mrf.mxu0
      %5859 = vmatprep.mubr.f32.mxu0 %v5648
      %5860 = vmatmul.mubr.f32.gmra.mxu0 %v5432
      %v5861 = vpop.f32.mrf.mxu0
      %v5862 = vadd.f32 %v5566, %v5861
      %v5863 = vpop.f32.mrf.mxu0
      %5864 = vmatprep.mubr.f32.mxu0 %v5651
      %5865 = vmatmul.mubr.f32.gmra.mxu0 %v5433
      %v5866 = vpop.f32.mrf.mxu0
      %v5867 = vadd.f32 %v5566, %v5866
      %v5868 = vpop.f32.mrf.mxu0
      %5869 = vmatprep.mubr.f32.mxu0 %v5654
      %5870 = vmatmul.mubr.f32.gmra.mxu0 %v5434
      %v5871 = vpop.f32.mrf.mxu0
      %v5872 = vadd.f32 %v5566, %v5871
      %v5873 = vpop.f32.mrf.mxu0
      %5874 = vmatprep.mubr.f32.mxu0 %v5657
      %5875 = vmatmul.mubr.f32.gmra.mxu0 %v5435
      %v5876 = vpop.f32.mrf.mxu0
      %v5877 = vadd.f32 %v5566, %v5876
      %v5878 = vpop.f32.mrf.mxu0
      %5879 = vmatprep.mubr.f32.mxu0 %v5660
      %5880 = vmatmul.mubr.f32.gmra.mxu0 %v5436
      %v5881 = vpop.f32.mrf.mxu0
      %v5882 = vadd.f32 %v5566, %v5881
      %v5883 = vpop.f32.mrf.mxu0
      %5884 = vmatprep.mubr.f32.mxu0 %v5663
      %5885 = vmatmul.mubr.f32.gmra.mxu0 %v5437
      %v5886 = vpop.f32.mrf.mxu0
      %v5887 = vadd.f32 %v5566, %v5886
      %v5888 = vpop.f32.mrf.mxu0
      %5889 = vdwg.mxu0
      %v5890 = vmax.f32 %v5732, 0.0
      %v5891 = vmax.f32 %v5737, 0.0
      %v5892 = vmax.f32 %v5742, 0.0
      %v5893 = vmax.f32 %v5747, 0.0
      %v5894 = vmax.f32 %v5752, 0.0
      %v5895 = vmax.f32 %v5757, 0.0
      %v5896 = vmax.f32 %v5762, 0.0
      %v5897 = vmax.f32 %v5767, 0.0
      %v5898 = vmax.f32 %v5772, 0.0
      %v5899 = vmax.f32 %v5777, 0.0
      %v5900 = vmax.f32 %v5782, 0.0
      %v5901 = vmax.f32 %v5787, 0.0
      %v5902 = vmax.f32 %v5792, 0.0
      %v5903 = vmax.f32 %v5797, 0.0
      %v5904 = vmax.f32 %v5802, 0.0
      %v5905 = vmax.f32 %v5807, 0.0
      %v5906 = vmax.f32 %v5812, 0.0
      %v5907 = vmax.f32 %v5817, 0.0
      %v5908 = vmax.f32 %v5822, 0.0
      %v5909 = vmax.f32 %v5827, 0.0
      %v5910 = vmax.f32 %v5832, 0.0
      %v5911 = vmax.f32 %v5837, 0.0
      %v5912 = vmax.f32 %v5842, 0.0
      %v5913 = vmax.f32 %v5847, 0.0
      %v5914 = vmax.f32 %v5852, 0.0
      %v5915 = vmax.f32 %v5857, 0.0
      %v5916 = vmax.f32 %v5862, 0.0
      %v5917 = vmax.f32 %v5867, 0.0
      %v5918 = vmax.f32 %v5872, 0.0
      %v5919 = vmax.f32 %v5877, 0.0
      %v5920 = vmax.f32 %v5882, 0.0
      %v5921 = vmax.f32 %v5887, 0.0
      %5954 = vrot.lane.b32.xlu0 %v5890, 24
      %v5955 = vpop.permute.xlu0 %5954
      %5956 = vrot.lane.b32.xlu0 %v5891, 24
      %v5957 = vpop.permute.xlu0 %5956
      %5958 = vrot.lane.b32.xlu0 %v5892, 24
      %v5959 = vpop.permute.xlu0 %5958
      %5960 = vrot.lane.b32.xlu0 %v5893, 24
      %v5961 = vpop.permute.xlu0 %5960
      %5962 = vrot.lane.b32.xlu0 %v5894, 24
      %v5963 = vpop.permute.xlu0 %5962
      %5964 = vrot.lane.b32.xlu0 %v5895, 24
      %v5965 = vpop.permute.xlu0 %5964
      %5966 = vrot.lane.b32.xlu0 %v5896, 24
      %v5967 = vpop.permute.xlu0 %5966
      %5968 = vrot.lane.b32.xlu0 %v5897, 24
      %v5969 = vpop.permute.xlu0 %5968
      %5970 = vrot.lane.b32.xlu0 %v5898, 24
      %v5971 = vpop.permute.xlu0 %5970
      %5972 = vrot.lane.b32.xlu0 %v5899, 24
      %v5973 = vpop.permute.xlu0 %5972
      %5974 = vrot.lane.b32.xlu0 %v5900, 24
      %v5975 = vpop.permute.xlu0 %5974
      %5976 = vrot.lane.b32.xlu0 %v5901, 24
      %v5977 = vpop.permute.xlu0 %5976
      %5978 = vrot.lane.b32.xlu0 %v5902, 24
      %v5979 = vpop.permute.xlu0 %5978
      %5980 = vrot.lane.b32.xlu0 %v5903, 24
      %v5981 = vpop.permute.xlu0 %5980
      %5982 = vrot.lane.b32.xlu0 %v5904, 24
      %v5983 = vpop.permute.xlu0 %5982
      %5984 = vrot.lane.b32.xlu0 %v5905, 24
      %v5985 = vpop.permute.xlu0 %5984
      %5986 = vrot.lane.b32.xlu0 %v5906, 24
      %v5987 = vpop.permute.xlu0 %5986
      %5988 = vrot.lane.b32.xlu0 %v5907, 24
      %v5989 = vpop.permute.xlu0 %5988
      %5990 = vrot.lane.b32.xlu0 %v5908, 24
      %v5991 = vpop.permute.xlu0 %5990
      %5992 = vrot.lane.b32.xlu0 %v5909, 24
      %v5993 = vpop.permute.xlu0 %5992
      %5994 = vrot.lane.b32.xlu0 %v5910, 24
      %v5995 = vpop.permute.xlu0 %5994
      %5996 = vrot.lane.b32.xlu0 %v5911, 24
      %v5997 = vpop.permute.xlu0 %5996
      %5998 = vrot.lane.b32.xlu0 %v5912, 24
      %v5999 = vpop.permute.xlu0 %5998
      %6000 = vrot.lane.b32.xlu0 %v5913, 24
      %v6001 = vpop.permute.xlu0 %6000
      %6002 = vrot.lane.b32.xlu0 %v5914, 24
      %v6003 = vpop.permute.xlu0 %6002
      %6004 = vrot.lane.b32.xlu0 %v5915, 24
      %v6005 = vpop.permute.xlu0 %6004
      %6006 = vrot.lane.b32.xlu0 %v5916, 24
      %v6007 = vpop.permute.xlu0 %6006
      %6008 = vrot.lane.b32.xlu0 %v5917, 24
      %v6009 = vpop.permute.xlu0 %6008
      %6010 = vrot.lane.b32.xlu0 %v5918, 24
      %v6011 = vpop.permute.xlu0 %6010
      %6012 = vrot.lane.b32.xlu0 %v5919, 24
      %v6013 = vpop.permute.xlu0 %6012
      %6014 = vrot.lane.b32.xlu0 %v5920, 24
      %v6015 = vpop.permute.xlu0 %6014
      %6016 = vrot.lane.b32.xlu0 %v5921, 24
      %v6017 = vpop.permute.xlu0 %6016
      %vm6050 = vcmask 261312
      %6051 = vst.msk [vmem:[%s438 + $0x8] sm:$0xff] %vm6050, %v5955
      %6052 = vst.msk [vmem:[%s438 + $0x10] sm:$0xff] %vm6050, %v5957
      %6053 = vst.msk [vmem:[%s438 + $0x28] sm:$0xff] %vm6050, %v5959
      %6054 = vst.msk [vmem:[%s438 + $0x30] sm:$0xff] %vm6050, %v5961
      %6055 = vst.msk [vmem:[%s438 + $0x48] sm:$0xff] %vm6050, %v5963
      %6056 = vst.msk [vmem:[%s438 + $0x50] sm:$0xff] %vm6050, %v5965
      %6057 = vst.msk [vmem:[%s438 + $0x68] sm:$0xff] %vm6050, %v5967
      %6058 = vst.msk [vmem:[%s438 + $0x70] sm:$0xff] %vm6050, %v5969
      %6059 = vst.msk [vmem:[%s438 + $0x88] sm:$0xff] %vm6050, %v5971
      %6060 = vst.msk [vmem:[%s438 + $0x90] sm:$0xff] %vm6050, %v5973
      %6061 = vst.msk [vmem:[%s438 + $0xa8] sm:$0xff] %vm6050, %v5975
      %6062 = vst.msk [vmem:[%s438 + $0xb0] sm:$0xff] %vm6050, %v5977
      %6063 = vst.msk [vmem:[%s438 + $0xc8] sm:$0xff] %vm6050, %v5979
      %6064 = vst.msk [vmem:[%s438 + $0xd0] sm:$0xff] %vm6050, %v5981
      %6065 = vst.msk [vmem:[%s438 + $0xe8] sm:$0xff] %vm6050, %v5983
      %6066 = vst.msk [vmem:[%s438 + $0xf0] sm:$0xff] %vm6050, %v5985
      %6067 = vst.msk [vmem:[%s438 + $0x108] sm:$0xff] %vm6050, %v5987
      %6068 = vst.msk [vmem:[%s438 + $0x110] sm:$0xff] %vm6050, %v5989
      %6069 = vst.msk [vmem:[%s438 + $0x128] sm:$0xff] %vm6050, %v5991
      %6070 = vst.msk [vmem:[%s438 + $0x130] sm:$0xff] %vm6050, %v5993
      %6071 = vst.msk [vmem:[%s438 + $0x148] sm:$0xff] %vm6050, %v5995
      %6072 = vst.msk [vmem:[%s438 + $0x150] sm:$0xff] %vm6050, %v5997
      %6073 = vst.msk [vmem:[%s438 + $0x168] sm:$0xff] %vm6050, %v5999
      %6074 = vst.msk [vmem:[%s438 + $0x170] sm:$0xff] %vm6050, %v6001
      %6075 = vst.msk [vmem:[%s438 + $0x188] sm:$0xff] %vm6050, %v6003
      %6076 = vst.msk [vmem:[%s438 + $0x190] sm:$0xff] %vm6050, %v6005
      %6077 = vst.msk [vmem:[%s438 + $0x1a8] sm:$0xff] %vm6050, %v6007
      %6078 = vst.msk [vmem:[%s438 + $0x1b0] sm:$0xff] %vm6050, %v6009
      %6079 = vst.msk [vmem:[%s438 + $0x1c8] sm:$0xff] %vm6050, %v6011
      %6080 = vst.msk [vmem:[%s438 + $0x1d0] sm:$0xff] %vm6050, %v6013
      %6081 = vst.msk [vmem:[%s438 + $0x1e8] sm:$0xff] %vm6050, %v6015
      %6082 = vst.msk [vmem:[%s438 + $0x1f0] sm:$0xff] %vm6050, %v6017
      %v6083 = vld [vmem:[#allocation2 + $0x28] sm:$0xff]
      %v6084 = vld [vmem:[#allocation2 + $0x30] sm:$0xff]
      %v6085 = vld [vmem:[#allocation2 + $0x48] sm:$0xff]
      %v6086 = vld [vmem:[#allocation2 + $0x50] sm:$0xff]
      %v6087 = vld [vmem:[#allocation2 + $0x68] sm:$0xff]
      %v6088 = vld [vmem:[#allocation2 + $0x70] sm:$0xff]
      %v6089 = vld [vmem:[#allocation2 + $0x88] sm:$0xff]
      %v6090 = vld [vmem:[#allocation2 + $0x90] sm:$0xff]
      %v6091 = vld [vmem:[#allocation2 + $0xa8] sm:$0xff]
      %v6092 = vld [vmem:[#allocation2 + $0xb0] sm:$0xff]
      %v6093 = vld [vmem:[#allocation2 + $0xc8] sm:$0xff]
      %v6094 = vld [vmem:[#allocation2 + $0xd0] sm:$0xff]
      %v6095 = vld [vmem:[#allocation2 + $0xe8] sm:$0xff]
      %v6096 = vld [vmem:[#allocation2 + $0xf0] sm:$0xff]
      %v6097 = vld [vmem:[#allocation2 + $0x108] sm:$0xff]
      %v6098 = vld [vmem:[#allocation2 + $0x110] sm:$0xff]
      %v6099 = vld [vmem:[#allocation2 + $0x128] sm:$0xff]
      %v6100 = vld [vmem:[#allocation2 + $0x130] sm:$0xff]
      %v6101 = vld [vmem:[#allocation2 + $0x148] sm:$0xff]
      %v6102 = vld [vmem:[#allocation2 + $0x150] sm:$0xff]
      %v6103 = vld [vmem:[#allocation2 + $0x168] sm:$0xff]
      %v6104 = vld [vmem:[#allocation2 + $0x170] sm:$0xff]
      %v6105 = vld [vmem:[#allocation2 + $0x188] sm:$0xff]
      %v6106 = vld [vmem:[#allocation2 + $0x190] sm:$0xff]
      %v6107 = vld [vmem:[#allocation2 + $0x1a8] sm:$0xff]
      %v6108 = vld [vmem:[#allocation2 + $0x1b0] sm:$0xff]
      %v6109 = vld [vmem:[#allocation2 + $0x1c8] sm:$0xff]
      %v6110 = vld [vmem:[#allocation2 + $0x1d0] sm:$0xff]
      %v6111 = vld [vmem:[#allocation2 + $0x1e8] sm:$0xff]
      %v6112 = vld [vmem:[#allocation2 + $0x1f0] sm:$0xff]
      %v6113 = vld [vmem:[#allocation2 + $0x208] sm:$0xff]
      %v6114 = vld [vmem:[#allocation2 + $0x210] sm:$0xff]
      %v6115 = vld [vmem:[%s7] sm:$0xff]
      %v6116 = vld [vmem:[%s7 + $0x8] sm:$0xff]
      %v6117 = vld [vmem:[%s7 + $0x10] sm:$0xff]
      %v6118 = vld [vmem:[%s7 + $0x18] sm:$0xff]
      %v6119 = vld [vmem:[%s8] sm:$0x1]
      %v6121 = vlaneseq
      %v6122 = vshrl.u32 %v6121, 7
      %v6123 = vsub.s32 0, %v6122
      %v6124 = vrot.slane %v6119, %v6123
      %v6127 = vsel %vm333, %v6083, 0
      %v6130 = vsel %vm333, %v6084, 0
      %v6133 = vsel %vm333, %v6085, 0
      %v6136 = vsel %vm333, %v6086, 0
      %v6139 = vsel %vm333, %v6087, 0
      %v6142 = vsel %vm333, %v6088, 0
      %v6145 = vsel %vm333, %v6089, 0
      %v6148 = vsel %vm333, %v6090, 0
      %v6151 = vsel %vm333, %v6091, 0
      %v6154 = vsel %vm333, %v6092, 0
      %v6157 = vsel %vm333, %v6093, 0
      %v6160 = vsel %vm333, %v6094, 0
      %v6163 = vsel %vm333, %v6095, 0
      %v6166 = vsel %vm333, %v6096, 0
      %v6169 = vsel %vm333, %v6097, 0
      %v6172 = vsel %vm333, %v6098, 0
      %v6175 = vsel %vm333, %v6099, 0
      %v6178 = vsel %vm333, %v6100, 0
      %v6181 = vsel %vm333, %v6101, 0
      %v6184 = vsel %vm333, %v6102, 0
      %v6187 = vsel %vm333, %v6103, 0
      %v6190 = vsel %vm333, %v6104, 0
      %v6193 = vsel %vm333, %v6105, 0
      %v6196 = vsel %vm333, %v6106, 0
      %v6199 = vsel %vm333, %v6107, 0
      %v6202 = vsel %vm333, %v6108, 0
      %v6205 = vsel %vm333, %v6109, 0
      %v6208 = vsel %vm333, %v6110, 0
      %v6211 = vsel %vm333, %v6111, 0
      %v6214 = vsel %vm333, %v6112, 0
      %v6217 = vsel %vm333, %v6113, 0
      %v6220 = vsel %vm333, %v6114, 0
      %6222 = vmatprep.subr.mxu0 0.0
      %6223 = vmatpush1.msra.mxu0 0.0
      %6224 = vmatprep.subr.mxu0 0.0
      %6225 = vmatpush1.msra.mxu0 0.0
      %6226 = vmatprep.subr.mxu0 0.0
      %6227 = vmatpush1.msra.mxu0 0.0
      %6228 = vmatprep.subr.mxu0 0.0
      %6229 = vmatpush1.msra.mxu0 0.0
      %6230 = vmatprep.subr.mxu0 0.0
      %6231 = vmatpush1.msra.mxu0 0.0
      %6232 = vmatprep.subr.mxu0 0.0
      %6233 = vmatpush1.msra.mxu0 0.0
      %6234 = vmatprep.subr.mxu0 0.0
      %6235 = vmatpush1.msra.mxu0 0.0
      %6236 = vmatprep.subr.mxu0 0.0
      %6237 = vmatpush1.msra.mxu0 0.0
      %6238 = vmatprep.subr.mxu0 0.0
      %6239 = vmatpush1.msra.mxu0 0.0
      %6240 = vmatprep.subr.mxu0 0.0
      %6241 = vmatpush1.msra.mxu0 0.0
      %6242 = vmatprep.subr.mxu0 0.0
      %6243 = vmatpush1.msra.mxu0 0.0
      %6244 = vmatprep.subr.mxu0 0.0
      %6245 = vmatpush1.msra.mxu0 0.0
      %6246 = vmatprep.subr.mxu0 0.0
      %6247 = vmatpush1.msra.mxu0 %v6118
      %6248 = vmatprep.subr.mxu0 0.0
      %6249 = vmatpush1.msra.mxu0 %v6117
      %6250 = vmatprep.subr.mxu0 0.0
      %6251 = vmatpush1.msra.mxu0 %v6116
      %6252 = vmatprep.subr.mxu0 0.0
      %6253 = vmatpush1.msra.mxu0 %v6115
      %6254 = vmatprep.subr.mxu0 0.0
      %6255 = vmatpush2.msra.mxu0 0.0
      %6256 = vmatprep.subr.mxu0 0.0
      %6257 = vmatpush2.msra.mxu0 0.0
      %6258 = vmatprep.subr.mxu0 0.0
      %6259 = vmatpush2.msra.mxu0 0.0
      %6260 = vmatprep.subr.mxu0 0.0
      %6261 = vmatpush2.msra.mxu0 0.0
      %6262 = vmatprep.subr.mxu0 0.0
      %6263 = vmatpush2.msra.mxu0 0.0
      %6264 = vmatprep.subr.mxu0 0.0
      %6265 = vmatpush2.msra.mxu0 0.0
      %6266 = vmatprep.subr.mxu0 0.0
      %6267 = vmatpush2.msra.mxu0 0.0
      %6268 = vmatprep.subr.mxu0 0.0
      %6269 = vmatpush2.msra.mxu0 0.0
      %6270 = vmatprep.subr.mxu0 0.0
      %6271 = vmatpush2.msra.mxu0 0.0
      %6272 = vmatprep.subr.mxu0 0.0
      %6273 = vmatpush2.msra.mxu0 0.0
      %6274 = vmatprep.subr.mxu0 0.0
      %6275 = vmatpush2.msra.mxu0 0.0
      %6276 = vmatprep.subr.mxu0 0.0
      %6277 = vmatpush2.msra.mxu0 0.0
      %6278 = vmatprep.subr.mxu0 0.0
      %6279 = vmatpush2.msra.mxu0 0.0
      %6280 = vmatprep.subr.mxu0 0.0
      %6281 = vmatpush2.msra.mxu0 0.0
      %6282 = vmatprep.subr.mxu0 0.0
      %6283 = vmatpush2.msra.mxu0 0.0
      %6284 = vmatprep.subr.mxu0 0.0
      %6285 = vmatpush2.msra.mxu0 0.0
      %6286 = vmatprep.mubr.f32.mxu0 0.0
      %6287 = vmatmul.mubr.f32.gmra.mxu0 %v6127
      %v6288 = vpop.f32.mrf.mxu0
      %v6289 = vadd.f32 %v6124, %v6288
      %v6290 = vpop.f32.mrf.mxu0
      %6291 = vmatprep.mubr.f32.mxu0 0.0
      %6292 = vmatmul.mubr.f32.gmra.mxu0 %v6130
      %v6293 = vpop.f32.mrf.mxu0
      %v6294 = vadd.f32 %v6124, %v6293
      %v6295 = vpop.f32.mrf.mxu0
      %6296 = vmatprep.mubr.f32.mxu0 0.0
      %6297 = vmatmul.mubr.f32.gmra.mxu0 %v6133
      %v6298 = vpop.f32.mrf.mxu0
      %v6299 = vadd.f32 %v6124, %v6298
      %v6300 = vpop.f32.mrf.mxu0
      %6301 = vmatprep.mubr.f32.mxu0 0.0
      %6302 = vmatmul.mubr.f32.gmra.mxu0 %v6136
      %v6303 = vpop.f32.mrf.mxu0
      %v6304 = vadd.f32 %v6124, %v6303
      %v6305 = vpop.f32.mrf.mxu0
      %6306 = vmatprep.mubr.f32.mxu0 0.0
      %6307 = vmatmul.mubr.f32.gmra.mxu0 %v6139
      %v6308 = vpop.f32.mrf.mxu0
      %v6309 = vadd.f32 %v6124, %v6308
      %v6310 = vpop.f32.mrf.mxu0
      %6311 = vmatprep.mubr.f32.mxu0 0.0
      %6312 = vmatmul.mubr.f32.gmra.mxu0 %v6142
      %v6313 = vpop.f32.mrf.mxu0
      %v6314 = vadd.f32 %v6124, %v6313
      %v6315 = vpop.f32.mrf.mxu0
      %6316 = vmatprep.mubr.f32.mxu0 0.0
      %6317 = vmatmul.mubr.f32.gmra.mxu0 %v6145
      %v6318 = vpop.f32.mrf.mxu0
      %v6319 = vadd.f32 %v6124, %v6318
      %v6320 = vpop.f32.mrf.mxu0
      %6321 = vmatprep.mubr.f32.mxu0 0.0
      %6322 = vmatmul.mubr.f32.gmra.mxu0 %v6148
      %v6323 = vpop.f32.mrf.mxu0
      %v6324 = vadd.f32 %v6124, %v6323
      %v6325 = vpop.f32.mrf.mxu0
      %6326 = vmatprep.mubr.f32.mxu0 0.0
      %6327 = vmatmul.mubr.f32.gmra.mxu0 %v6151
      %v6328 = vpop.f32.mrf.mxu0
      %v6329 = vadd.f32 %v6124, %v6328
      %v6330 = vpop.f32.mrf.mxu0
      %6331 = vmatprep.mubr.f32.mxu0 0.0
      %6332 = vmatmul.mubr.f32.gmra.mxu0 %v6154
      %v6333 = vpop.f32.mrf.mxu0
      %v6334 = vadd.f32 %v6124, %v6333
      %v6335 = vpop.f32.mrf.mxu0
      %6336 = vmatprep.mubr.f32.mxu0 0.0
      %6337 = vmatmul.mubr.f32.gmra.mxu0 %v6157
      %v6338 = vpop.f32.mrf.mxu0
      %v6339 = vadd.f32 %v6124, %v6338
      %v6340 = vpop.f32.mrf.mxu0
      %6341 = vmatprep.mubr.f32.mxu0 0.0
      %6342 = vmatmul.mubr.f32.gmra.mxu0 %v6160
      %v6343 = vpop.f32.mrf.mxu0
      %v6344 = vadd.f32 %v6124, %v6343
      %v6345 = vpop.f32.mrf.mxu0
      %6346 = vmatprep.mubr.f32.mxu0 0.0
      %6347 = vmatmul.mubr.f32.gmra.mxu0 %v6163
      %v6348 = vpop.f32.mrf.mxu0
      %v6349 = vadd.f32 %v6124, %v6348
      %v6350 = vpop.f32.mrf.mxu0
      %6351 = vmatprep.mubr.f32.mxu0 0.0
      %6352 = vmatmul.mubr.f32.gmra.mxu0 %v6166
      %v6353 = vpop.f32.mrf.mxu0
      %v6354 = vadd.f32 %v6124, %v6353
      %v6355 = vpop.f32.mrf.mxu0
      %6356 = vmatprep.mubr.f32.mxu0 0.0
      %6357 = vmatmul.mubr.f32.gmra.mxu0 %v6169
      %v6358 = vpop.f32.mrf.mxu0
      %v6359 = vadd.f32 %v6124, %v6358
      %v6360 = vpop.f32.mrf.mxu0
      %6361 = vmatprep.mubr.f32.mxu0 0.0
      %6362 = vmatmul.mubr.f32.gmra.mxu0 %v6172
      %v6363 = vpop.f32.mrf.mxu0
      %v6364 = vadd.f32 %v6124, %v6363
      %v6365 = vpop.f32.mrf.mxu0
      %6366 = vmatprep.mubr.f32.mxu0 0.0
      %6367 = vmatmul.mubr.f32.gmra.mxu0 %v6175
      %v6368 = vpop.f32.mrf.mxu0
      %v6369 = vadd.f32 %v6124, %v6368
      %v6370 = vpop.f32.mrf.mxu0
      %6371 = vmatprep.mubr.f32.mxu0 0.0
      %6372 = vmatmul.mubr.f32.gmra.mxu0 %v6178
      %v6373 = vpop.f32.mrf.mxu0
      %v6374 = vadd.f32 %v6124, %v6373
      %v6375 = vpop.f32.mrf.mxu0
      %6376 = vmatprep.mubr.f32.mxu0 0.0
      %6377 = vmatmul.mubr.f32.gmra.mxu0 %v6181
      %v6378 = vpop.f32.mrf.mxu0
      %v6379 = vadd.f32 %v6124, %v6378
      %v6380 = vpop.f32.mrf.mxu0
      %6381 = vmatprep.mubr.f32.mxu0 0.0
      %6382 = vmatmul.mubr.f32.gmra.mxu0 %v6184
      %v6383 = vpop.f32.mrf.mxu0
      %v6384 = vadd.f32 %v6124, %v6383
      %v6385 = vpop.f32.mrf.mxu0
      %6386 = vmatprep.mubr.f32.mxu0 0.0
      %6387 = vmatmul.mubr.f32.gmra.mxu0 %v6187
      %v6388 = vpop.f32.mrf.mxu0
      %v6389 = vadd.f32 %v6124, %v6388
      %v6390 = vpop.f32.mrf.mxu0
      %6391 = vmatprep.mubr.f32.mxu0 0.0
      %6392 = vmatmul.mubr.f32.gmra.mxu0 %v6190
      %v6393 = vpop.f32.mrf.mxu0
      %v6394 = vadd.f32 %v6124, %v6393
      %v6395 = vpop.f32.mrf.mxu0
      %6396 = vmatprep.mubr.f32.mxu0 0.0
      %6397 = vmatmul.mubr.f32.gmra.mxu0 %v6193
      %v6398 = vpop.f32.mrf.mxu0
      %v6399 = vadd.f32 %v6124, %v6398
      %v6400 = vpop.f32.mrf.mxu0
      %6401 = vmatprep.mubr.f32.mxu0 0.0
      %6402 = vmatmul.mubr.f32.gmra.mxu0 %v6196
      %v6403 = vpop.f32.mrf.mxu0
      %v6404 = vadd.f32 %v6124, %v6403
      %v6405 = vpop.f32.mrf.mxu0
      %6406 = vmatprep.mubr.f32.mxu0 0.0
      %6407 = vmatmul.mubr.f32.gmra.mxu0 %v6199
      %v6408 = vpop.f32.mrf.mxu0
      %v6409 = vadd.f32 %v6124, %v6408
      %v6410 = vpop.f32.mrf.mxu0
      %6411 = vmatprep.mubr.f32.mxu0 0.0
      %6412 = vmatmul.mubr.f32.gmra.mxu0 %v6202
      %v6413 = vpop.f32.mrf.mxu0
      %v6414 = vadd.f32 %v6124, %v6413
      %v6415 = vpop.f32.mrf.mxu0
      %6416 = vmatprep.mubr.f32.mxu0 0.0
      %6417 = vmatmul.mubr.f32.gmra.mxu0 %v6205
      %v6418 = vpop.f32.mrf.mxu0
      %v6419 = vadd.f32 %v6124, %v6418
      %v6420 = vpop.f32.mrf.mxu0
      %6421 = vmatprep.mubr.f32.mxu0 0.0
      %6422 = vmatmul.mubr.f32.gmra.mxu0 %v6208
      %v6423 = vpop.f32.mrf.mxu0
      %v6424 = vadd.f32 %v6124, %v6423
      %v6425 = vpop.f32.mrf.mxu0
      %6426 = vmatprep.mubr.f32.mxu0 0.0
      %6427 = vmatmul.mubr.f32.gmra.mxu0 %v6211
      %v6428 = vpop.f32.mrf.mxu0
      %v6429 = vadd.f32 %v6124, %v6428
      %v6430 = vpop.f32.mrf.mxu0
      %6431 = vmatprep.mubr.f32.mxu0 0.0
      %6432 = vmatmul.mubr.f32.gmra.mxu0 %v6214
      %v6433 = vpop.f32.mrf.mxu0
      %v6434 = vadd.f32 %v6124, %v6433
      %v6435 = vpop.f32.mrf.mxu0
      %6436 = vmatprep.mubr.f32.mxu0 0.0
      %6437 = vmatmul.mubr.f32.gmra.mxu0 %v6217
      %v6438 = vpop.f32.mrf.mxu0
      %v6439 = vadd.f32 %v6124, %v6438
      %v6440 = vpop.f32.mrf.mxu0
      %6441 = vmatprep.mubr.f32.mxu0 0.0
      %6442 = vmatmul.mubr.f32.gmra.mxu0 %v6220
      %v6443 = vpop.f32.mrf.mxu0
      %v6444 = vadd.f32 %v6124, %v6443
      %v6445 = vpop.f32.mrf.mxu0
      %6446 = vdwg.mxu0
      %v6447 = vld [vmem:[%s327] sm:$0xff]
      %v6448 = vld [vmem:[%s327 + $0x8] sm:$0xff]
      %v6449 = vld [vmem:[%s327 + $0x10] sm:$0xff]
      %v6450 = vld [vmem:[%s327 + $0x18] sm:$0xff]
      %v6451 = vld [vmem:[%s327 + $0x20] sm:$0xff]
      %v6452 = vld [vmem:[%s327 + $0x28] sm:$0xff]
      %v6453 = vld [vmem:[%s327 + $0x30] sm:$0xff]
      %v6454 = vld [vmem:[%s327 + $0x38] sm:$0xff]
      %v6455 = vld [vmem:[%s327 + $0x40] sm:$0xff]
      %v6456 = vld [vmem:[%s327 + $0x48] sm:$0xff]
      %v6457 = vld [vmem:[%s327 + $0x50] sm:$0xff]
      %v6458 = vld [vmem:[%s327 + $0x58] sm:$0xff]
      %v6459 = vld [vmem:[%s327 + $0x60] sm:$0xff]
      %v6460 = vld [vmem:[%s327 + $0x68] sm:$0xff]
      %v6461 = vld [vmem:[%s327 + $0x70] sm:$0xff]
      %v6462 = vld [vmem:[%s327 + $0x78] sm:$0xff]
      %v6463 = vld [vmem:[%s327 + $0x80] sm:$0xff]
      %v6464 = vld [vmem:[%s327 + $0x88] sm:$0xff]
      %v6465 = vld [vmem:[%s327 + $0x90] sm:$0xff]
      %v6466 = vld [vmem:[%s327 + $0x98] sm:$0xff]
      %v6467 = vld [vmem:[%s327 + $0xa0] sm:$0xff]
      %v6468 = vld [vmem:[%s327 + $0xa8] sm:$0xff]
      %v6469 = vld [vmem:[%s327 + $0xb0] sm:$0xff]
      %v6470 = vld [vmem:[%s327 + $0xb8] sm:$0xff]
      %v6471 = vld [vmem:[%s327 + $0xc0] sm:$0xff]
      %v6472 = vld [vmem:[%s327 + $0xc8] sm:$0xff]
      %v6473 = vld [vmem:[%s327 + $0xd0] sm:$0xff]
      %v6474 = vld [vmem:[%s327 + $0xd8] sm:$0xff]
      %v6475 = vld [vmem:[%s327 + $0xe0] sm:$0xff]
      %v6476 = vld [vmem:[%s327 + $0xe8] sm:$0xff]
      %v6477 = vld [vmem:[%s327 + $0xf0] sm:$0xff]
      %v6478 = vld [vmem:[%s327 + $0xf8] sm:$0xff]
      %v6479 = vadd.f32 %v6289, %v6447
      %v6480 = vadd.f32 %v6294, %v6448
      %v6481 = vadd.f32 %v6299, %v6449
      %v6482 = vadd.f32 %v6304, %v6450
      %v6483 = vadd.f32 %v6309, %v6451
      %v6484 = vadd.f32 %v6314, %v6452
      %v6485 = vadd.f32 %v6319, %v6453
      %v6486 = vadd.f32 %v6324, %v6454
      %v6487 = vadd.f32 %v6329, %v6455
      %v6488 = vadd.f32 %v6334, %v6456
      %v6489 = vadd.f32 %v6339, %v6457
      %v6490 = vadd.f32 %v6344, %v6458
      %v6491 = vadd.f32 %v6349, %v6459
      %v6492 = vadd.f32 %v6354, %v6460
      %v6493 = vadd.f32 %v6359, %v6461
      %v6494 = vadd.f32 %v6364, %v6462
      %v6495 = vadd.f32 %v6369, %v6463
      %v6496 = vadd.f32 %v6374, %v6464
      %v6497 = vadd.f32 %v6379, %v6465
      %v6498 = vadd.f32 %v6384, %v6466
      %v6499 = vadd.f32 %v6389, %v6467
      %v6500 = vadd.f32 %v6394, %v6468
      %v6501 = vadd.f32 %v6399, %v6469
      %v6502 = vadd.f32 %v6404, %v6470
      %v6503 = vadd.f32 %v6409, %v6471
      %v6504 = vadd.f32 %v6414, %v6472
      %v6505 = vadd.f32 %v6419, %v6473
      %v6506 = vadd.f32 %v6424, %v6474
      %v6507 = vadd.f32 %v6429, %v6475
      %v6508 = vadd.f32 %v6434, %v6476
      %v6509 = vadd.f32 %v6439, %v6477
      %v6510 = vadd.f32 %v6444, %v6478
      %6511 = vst.msk [vmem:[%s332] sm:$0xff] %vm439, %v6479
      %6512 = vst.msk [vmem:[%s332 + $0x8] sm:$0xff] %vm439, %v6480
      %6513 = vst.msk [vmem:[%s332 + $0x10] sm:$0xff] %vm439, %v6481
      %6514 = vst.msk [vmem:[%s332 + $0x18] sm:$0xff] %vm439, %v6482
      %6515 = vst.msk [vmem:[%s332 + $0x20] sm:$0xff] %vm439, %v6483
      %6516 = vst.msk [vmem:[%s332 + $0x28] sm:$0xff] %vm439, %v6484
      %6517 = vst.msk [vmem:[%s332 + $0x30] sm:$0xff] %vm439, %v6485
      %6518 = vst.msk [vmem:[%s332 + $0x38] sm:$0xff] %vm439, %v6486
      %6519 = vst.msk [vmem:[%s332 + $0x40] sm:$0xff] %vm439, %v6487
      %6520 = vst.msk [vmem:[%s332 + $0x48] sm:$0xff] %vm439, %v6488
      %6521 = vst.msk [vmem:[%s332 + $0x50] sm:$0xff] %vm439, %v6489
      %6522 = vst.msk [vmem:[%s332 + $0x58] sm:$0xff] %vm439, %v6490
      %6523 = vst.msk [vmem:[%s332 + $0x60] sm:$0xff] %vm439, %v6491
      %6524 = vst.msk [vmem:[%s332 + $0x68] sm:$0xff] %vm439, %v6492
      %6525 = vst.msk [vmem:[%s332 + $0x70] sm:$0xff] %vm439, %v6493
      %6526 = vst.msk [vmem:[%s332 + $0x78] sm:$0xff] %vm439, %v6494
      %6527 = vst.msk [vmem:[%s332 + $0x80] sm:$0xff] %vm439, %v6495
      %6528 = vst.msk [vmem:[%s332 + $0x88] sm:$0xff] %vm439, %v6496
      %6529 = vst.msk [vmem:[%s332 + $0x90] sm:$0xff] %vm439, %v6497
      %6530 = vst.msk [vmem:[%s332 + $0x98] sm:$0xff] %vm439, %v6498
      %6531 = vst.msk [vmem:[%s332 + $0xa0] sm:$0xff] %vm439, %v6499
      %6532 = vst.msk [vmem:[%s332 + $0xa8] sm:$0xff] %vm439, %v6500
      %6533 = vst.msk [vmem:[%s332 + $0xb0] sm:$0xff] %vm439, %v6501
      %6534 = vst.msk [vmem:[%s332 + $0xb8] sm:$0xff] %vm439, %v6502
      %6535 = vst.msk [vmem:[%s332 + $0xc0] sm:$0xff] %vm439, %v6503
      %6536 = vst.msk [vmem:[%s332 + $0xc8] sm:$0xff] %vm439, %v6504
      %6537 = vst.msk [vmem:[%s332 + $0xd0] sm:$0xff] %vm439, %v6505
      %6538 = vst.msk [vmem:[%s332 + $0xd8] sm:$0xff] %vm439, %v6506
      %6539 = vst.msk [vmem:[%s332 + $0xe0] sm:$0xff] %vm439, %v6507
      %6540 = vst.msk [vmem:[%s332 + $0xe8] sm:$0xff] %vm439, %v6508
      %6541 = vst.msk [vmem:[%s332 + $0xf0] sm:$0xff] %vm439, %v6509
      %6542 = vst.msk [vmem:[%s332 + $0xf8] sm:$0xff] %vm439, %v6510
      %p6543 = scmp.lt.s32.totalorder %s20, 1
      %s6544 = scalar_select %p6543, %s20, 1
      %s6545 = smul.addr %s6544, 32
      %s6546 = smul.addr %s6545, 8
      %s6547 = scalar_lea.vmem %s9, %s6546
      // Predicated region
      $region57: #{rdb_forward.1} parent=55 // pred_check
        %p6548 = pneg %p232
      $region58: #{rdb_forward.1} parent=55 // pred_check_branch
        %6550 = sbr.rel (%p6548) target = $region60
      $region59: #{rdb_forward.1} parent=55 // pred_region
        _
      $region60: #{rdb_forward.1} parent=55 // pred_fallthru
        _
    $region56: #{rdb_forward.1} parent=5 // pred_fallthru
      _
    %p6551 = scmp.le.s32.totalorder 2, %s15
    // Predicated region
    $region61: #{rdb_forward.1} parent=5 // pred_check
      %p6552 = pneg %p6551
    $region62: #{rdb_forward.1} parent=5 // pred_check_branch
      %6554 = sbr.rel (%p6552) target = $region64
    $region63: #{rdb_forward.1} parent=5 // pred_region
      %s6555 = ssub.s32 %s15, 2
      // Predicated region
      $region65: #{rdb_forward.1} parent=63 // pred_check
        %p6556 = pneg %p238
      $region66: #{rdb_forward.1} parent=63 // pred_check_branch
        %6558 = sbr.rel (%p6556) target = $region68
      $region67: #{rdb_forward.1} parent=63 // pred_region
        %p6559 = scmp.lt.s32.totalorder %s21, 1
        %s6560 = scalar_select %p6559, %s21, 1
        %s6561 = smul.addr %s6560, 32
        %s6562 = smul.addr %s6561, 8
        %s6563 = scalar_lea.vmem %s9, %s6562
      $region68: #{rdb_forward.1} parent=63 // pred_fallthru
        _
    $region64: #{rdb_forward.1} parent=5 // pred_fallthru
      _
  $region6: #{rdb_forward.1} parent=0 // loop_footer
    %s19 = sadd.s32 1, %s15
  $region7: #{rdb_forward.1} parent=0 // loop_footer_branch
    %14 = sbr.rel target = $region3
  $region8: #{rdb_forward.1} parent=0 // loop_exit
    _

</llo_original>
